<compile_context>
chip_gen: v5e
topology: v5e:2x2
jax: 0.10.0
libtpu: 0.0.40
codegen_flags: <defaults>
</compile_context>

<pallas_src>
import numpy as np
import jax
import jax.numpy as jnp
from jax import lax
from jax.experimental import pallas as pl
from jax.experimental.pallas import tpu as pltpu

EPS = 1e-5                       # nn.BatchNorm2d / nn.InstanceNorm2d default
VMEM_LIMIT = 32 * 1024 * 1024    # <= v7x 64 MiB physical / 32 MiB scoped default
LANES = 128
ROW_TILE_CAP = 512               # P-tile cap (rows of the conv matmul)


def _round_up(n, m):
    return ((n + m - 1) // m) * m


def _row_tile(p, cap=ROW_TILE_CAP):
    """Largest row tile that divides p, is a multiple of 8 (or == p) and <= cap."""
    if p <= cap:
        return p
    for t in range(cap, 7, -1):
        if p % t == 0 and t % 8 == 0:
            return t
    return p


def _pad_lanes(a, target):
    pad = target - a.shape[-1]
    if pad == 0:
        return a
    return jnp.pad(a, [(0, 0)] * (a.ndim - 1) + [(0, pad)])


def _bf16(a):
    return a.astype(jnp.bfloat16)


# ----------------------------- Pallas kernels ------------------------------

def _se_kernel(x_ref, w1_ref, w2_ref, o_ref):
    # x: (B, H*W, C) f32 ; w1: (C, C//r) bf16 ; w2: (C//r, C) bf16
    x = x_ref[...]
    pool = jnp.mean(x, axis=1)                                       # (B, C) f32
    h = jnp.maximum(
        jnp.dot(_bf16(pool), w1_ref[...], preferred_element_type=jnp.float32), 0.0)
    wgt = jax.nn.sigmoid(
        jnp.dot(_bf16(h), w2_ref[...], preferred_element_type=jnp.float32))  # (B, C)
    o_ref[...] = (x * wgt[:, None, :]).astype(o_ref.dtype)


def _upsample_rows_kernel(u_ref, x_ref, o_ref):
    # u: (2H, H) bf16 ; x: (H, W*C) bf16 -> o: (2H, W*C) f32
    o_ref[...] = jnp.dot(u_ref[...], x_ref[...],
                         preferred_element_type=jnp.float32).astype(o_ref.dtype)


def _upsample_cols_kernel(u_ref, x_ref, o_ref):
    # u: (2W, W) bf16 ; x: (G, W, C) bf16 -> o: (G, 2W, C) f32   (G = 2H rows)
    g = x_ref.shape[0]
    u = jnp.broadcast_to(u_ref[...][None, :, :], (g,) + u_ref.shape)
    o_ref[...] = jnp.einsum('gvw,gwc->gvc', u, x_ref[...],
                            preferred_element_type=jnp.float32).astype(o_ref.dtype)


def _conv_bias_stats_kernel(p_ref, w_ref, b_ref, y_ref, s_ref):
    # pass 1: conv-as-matmul + bias, plus per-sample per-channel sum / sumsq.
    # p: (TP, K) bf16 ; w: (K, Cp) bf16 ; b: (1, Cp) f32
    # y: (TP, Cp) f32 ; s: (2, Cp) f32 — resident across the P ("arbitrary") axis.
    y = jnp.dot(p_ref[...], w_ref[...], preferred_element_type=jnp.float32) + b_ref[...]
    y_ref[...] = y

    @pl.when(pl.program_id(1) == 0)
    def _init():
        s_ref[...] = jnp.zeros_like(s_ref)

    tile_stats = jnp.concatenate(
        [jnp.sum(y, axis=0, keepdims=True),
         jnp.sum(y * y, axis=0, keepdims=True)], axis=0)             # (2, Cp)
    s_ref[...] = s_ref[...] + tile_stats


def _scale_shift_relu_kernel(y_ref, sc_ref, sh_ref, o_ref):
    # pass 2: IBNorm (folded into per-sample scale/shift) + ReLU, lane-dense.
    o_ref[...] = jnp.maximum(y_ref[...] * sc_ref[...] + sh_ref[...], 0.0
                             ).astype(o_ref.dtype)


def _conv_sigmoid_kernel(p_ref, w_ref, b_ref, o_ref):
    # conv_lr (no IBNorm / no ReLU) + sigmoid; Cout padded to 128 lanes.
    y = jnp.dot(p_ref[...], w_ref[...], preferred_element_type=jnp.float32) + b_ref[...]
    o_ref[...] = jax.nn.sigmoid(y).astype(o_ref.dtype)


# ------------------------------ op wrappers --------------------------------

def se_block(x, w1, w2, use_pallas=True):
    B, H, W, C = x.shape
    xf = x.reshape(B, H * W, C)
    w1b, w2b = _bf16(w1), _bf16(w2)
    if use_pallas:
        out = pl.pallas_call(
            _se_kernel,
            out_shape=jax.ShapeDtypeStruct(xf.shape, jnp.float32),
        )(xf, w1b, w2b)
    else:
        pool = jnp.mean(xf, axis=1)
        h = jnp.maximum(jnp.dot(_bf16(pool), w1b,
                                preferred_element_type=jnp.float32), 0.0)
        wgt = jax.nn.sigmoid(jnp.dot(_bf16(h), w2b,
                                     preferred_element_type=jnp.float32))
        out = xf * wgt[:, None, :]
    return out.reshape(B, H, W, C)


def _bilinear_matrix(n):
    """(2n, n) matrix == F.interpolate(scale=2, bilinear, align_corners=False)."""
    m = np.zeros((2 * n, n), dtype=np.float32)
    for i in range(2 * n):
        src = (i + 0.5) / 2.0 - 0.5
        src = max(src, 0.0)
        i0 = min(int(np.floor(src)), n - 1)
        i1 = min(i0 + 1, n - 1)
        lam = min(max(src - i0, 0.0), 1.0)
        m[i, i0] += 1.0 - lam
        m[i, i1] += lam
    return jnp.asarray(m)


def upsample2x_bilinear(x, use_pallas=True):
    B, H, W, C = x.shape
    uh = _bf16(_bilinear_matrix(H))                  # (2H, H), weights exact in bf16
    uw = _bf16(_bilinear_matrix(W))                  # (2W, W)
    xr = _bf16(x.reshape(B, H, W * C))

    if use_pallas:
        y = pl.pallas_call(
            _upsample_rows_kernel,
            grid=(B,),
            in_specs=[pl.BlockSpec((2 * H, H), lambda b: (0, 0)),
                      pl.BlockSpec((None, H, W * C), lambda b: (b, 0, 0))],
            out_specs=pl.BlockSpec((None, 2 * H, W * C), lambda b: (b, 0, 0)),
            out_shape=jax.ShapeDtypeStruct((B, 2 * H, W * C), jnp.float32),
            compiler_params=pltpu.CompilerParams(
                dimension_semantics=("parallel",), vmem_limit_bytes=VMEM_LIMIT),
        )(uh, xr)
    else:
        y = jnp.einsum('vh,bhn->bvn', uh, xr, preferred_element_type=jnp.float32)

    y4 = _bf16(y.reshape(B, 2 * H, W, C))
    if use_pallas:
        out = pl.pallas_call(
            _upsample_cols_kernel,
            grid=(B,),
            in_specs=[pl.BlockSpec((2 * W, W), lambda b: (0, 0)),
                      pl.BlockSpec((None, 2 * H, W, C), lambda b: (b, 0, 0, 0))],
            out_specs=pl.BlockSpec((None, 2 * H, 2 * W, C), lambda b: (b, 0, 0, 0)),
            out_shape=jax.ShapeDtypeStruct((B, 2 * H, 2 * W, C), jnp.float32),
            compiler_params=pltpu.CompilerParams(
                dimension_semantics=("parallel",), vmem_limit_bytes=VMEM_LIMIT),
        )(uw, y4)
    else:
        out = jnp.einsum('vw,bgwc->bgvc', uw, y4, preferred_element_type=jnp.float32)
    return out


def _im2col(x, k, stride, pad):
    # TODO(synk): fuse into the conv kernel (halo-tiled input) to avoid the k*k blowup.
    B, H, W, C = x.shape
    xp = jnp.pad(x, ((0, 0), (pad, pad), (pad, pad), (0, 0)))
    Ho = (H + 2 * pad - k) // stride + 1
    Wo = (W + 2 * pad - k) // stride + 1
    cols = []
    for kh in range(k):
        for kw in range(k):
            cols.append(xp[:, kh:kh + stride * (Ho - 1) + 1:stride,
                           kw:kw + stride * (Wo - 1) + 1:stride, :])
    patches = jnp.concatenate(cols, axis=-1).reshape(B, Ho * Wo, k * k * C)
    return patches, Ho, Wo


def conv_ibn_relu(x, wmat, bias, k, pad, use_pallas=True):
    """Conv2d(k, pad, stride=1) + IBNorm(train stats, identity affine) + ReLU."""
    B, H, W, Cin = x.shape
    Cout = wmat.shape[1]
    cb = Cout // 2                                   # BN channels; rest are IN
    Cp = _round_up(Cout, LANES)
    patches, Ho, Wo = _im2col(x, k, 1, pad)
    P = Ho * Wo
    K = patches.shape[-1]
    patches = _bf16(patches)
    w_p = _bf16(_pad_lanes(wmat, Cp))
    b_p = _pad_lanes(bias, Cp).astype(jnp.float32)
    TP = _row_tile(P)
    nP = P // TP

    if use_pallas:
        y, stats = pl.pallas_call(
            _conv_bias_stats_kernel,
            grid=(B, nP),
            in_specs=[pl.BlockSpec((None, TP, K), lambda b, p: (b, p, 0)),
                      pl.BlockSpec((K, Cp), lambda b, p: (0, 0)),
                      pl.BlockSpec((1, Cp), lambda b, p: (0, 0))],
            out_specs=[pl.BlockSpec((None, TP, Cp), lambda b, p: (b, p, 0)),
                       pl.BlockSpec((None, 2, Cp), lambda b, p: (b, 0, 0))],
            out_shape=(jax.ShapeDtypeStruct((B, P, Cp), jnp.float32),
                       jax.ShapeDtypeStruct((B, 2, Cp), jnp.float32)),
            compiler_params=pltpu.CompilerParams(
                dimension_semantics=("parallel", "arbitrary"),
                vmem_limit_bytes=VMEM_LIMIT),
        )(patches, w_p, b_p)
    else:
        y = jnp.einsum('bpk,kc->bpc', patches, w_p,
                       preferred_element_type=jnp.float32) + b_p
        stats = jnp.concatenate([jnp.sum(y, axis=1, keepdims=True),
                                 jnp.sum(y * y, axis=1, keepdims=True)], axis=1)

    # ---- fold IBNorm statistics into per-sample scale / shift (tiny, f32) ----
    s1, s2 = stats[:, 0, :], stats[:, 1, :]                    # (B, Cp)
    n_bn = float(B * P)
    bn_mean = jnp.sum(s1[:, :cb], axis=0) / n_bn               # BatchNorm over (N,H,W)
    bn_var = jnp.sum(s2[:, :cb], axis=0) / n_bn - bn_mean * bn_mean
    bn_inv = lax.rsqrt(bn_var + EPS)
    in_mean = s1[:, cb:Cout] / float(P)                        # InstanceNorm per sample
    in_var = s2[:, cb:Cout] / float(P) - in_mean * in_mean
    in_inv = lax.rsqrt(in_var + EPS)
    scale = jnp.concatenate(
        [jnp.broadcast_to(bn_inv, (B, cb)), in_inv,
         jnp.ones((B, Cp - Cout), jnp.float32)], axis=1)[:, None, :]      # (B,1,Cp)
    shift = jnp.concatenate(
        [jnp.broadcast_to(-bn_mean * bn_inv, (B, cb)), -in_mean * in_inv,
         jnp.zeros((B, Cp - Cout), jnp.float32)], axis=1)[:, None, :]

    if use_pallas:
        out = pl.pallas_call(
            _scale_shift_relu_kernel,
            grid=(B, nP),
            in_specs=[pl.BlockSpec((None, TP, Cp), lambda b, p: (b, p, 0)),
                      pl.BlockSpec((None, 1, Cp), lambda b, p: (b, 0, 0)),
                      pl.BlockSpec((None, 1, Cp), lambda b, p: (b, 0, 0))],
            out_specs=pl.BlockSpec((None, TP, Cp), lambda b, p: (b, p, 0)),
            out_shape=jax.ShapeDtypeStruct((B, P, Cp), jnp.float32),
            compiler_params=pltpu.CompilerParams(
                dimension_semantics=("parallel", "parallel"),
                vmem_limit_bytes=VMEM_LIMIT),
        )(y, scale, shift)
    else:
        out = jnp.maximum(y * scale + shift, 0.0)
    return out[..., :Cout].reshape(B, Ho, Wo, Cout)


def conv_sigmoid(x, wmat, bias, k, stride, pad, use_pallas=True):
    """conv_lr (Cout=1, no norm, no ReLU) + sigmoid; output padded to 128 lanes."""
    B = x.shape[0]
    Cout = wmat.shape[1]
    Cp = _round_up(Cout, LANES)
    patches, Ho, Wo = _im2col(x, k, stride, pad)
    P = Ho * Wo
    K = patches.shape[-1]
    patches = _bf16(patches)
    w_p = _bf16(_pad_lanes(wmat, Cp))
    b_p = _pad_lanes(bias, Cp).astype(jnp.float32)
    TP = _row_tile(P)
    nP = P // TP

    if use_pallas:
        y = pl.pallas_call(
            _conv_sigmoid_kernel,
            grid=(B, nP),
            in_specs=[pl.BlockSpec((None, TP, K), lambda b, p: (b, p, 0)),
                      pl.BlockSpec((K, Cp), lambda b, p: (0, 0)),
                      pl.BlockSpec((1, Cp), lambda b, p: (0, 0))],
            out_specs=pl.BlockSpec((None, TP, Cp), lambda b, p: (b, p, 0)),
            out_shape=jax.ShapeDtypeStruct((B, P, Cp), jnp.float32),
            compiler_params=pltpu.CompilerParams(
                dimension_semantics=("parallel", "parallel"),
                vmem_limit_bytes=VMEM_LIMIT),
        )(patches, w_p, b_p)
    else:
        y = jax.nn.sigmoid(
            jnp.einsum('bpk,kc->bpc', patches, w_p,
                       preferred_element_type=jnp.float32) + b_p)
    return y[..., :Cout].reshape(B, Ho, Wo, Cout)


# ------------------------- synthetic backbone (glue) ------------------------

def backbone_forward(img_nhwc, bb_params):
    # TODO(synk): stand-in for MobileNetV2; returns stride-2..32 features.
    feats = []
    x = img_nhwc
    for w, b in bb_params:
        x = lax.conv_general_dilated(x, w, window_strides=(2, 2), padding='SAME',
                                     dimension_numbers=('NHWC', 'HWIO', 'NHWC'))
        x = jnp.maximum(x + b, 0.0)
        feats.append(x)
    return feats


# ------------------------------ LRBranch forward ----------------------------

def lr_branch_forward(img_nchw, params, inference=True, use_pallas=True):
    # PyTorch NCHW input -> NHWC once (channels in the 128-lane dim everywhere).
    x = jnp.transpose(img_nchw, (0, 2, 3, 1)).astype(jnp.float32)
    feats = backbone_forward(x, params['backbone'])
    enc2x, enc4x, enc32x = feats[0], feats[1], feats[4]

    enc32x = se_block(enc32x, params['se_w1'], params['se_w2'], use_pallas)

    lr16x = upsample2x_bilinear(enc32x, use_pallas)
    lr16x = conv_ibn_relu(lr16x, params['w_lr16x'], params['b_lr16x'], k=5, pad=2,
                          use_pallas=use_pallas)

    lr8x = upsample2x_bilinear(lr16x, use_pallas)
    lr8x = conv_ibn_relu(lr8x, params['w_lr8x'], params['b_lr8x'], k=5, pad=2,
                         use_pallas=use_pallas)

    pred_semantic = None
    if not inference:
        pred_semantic = conv_sigmoid(lr8x, params['w_lr'], params['b_lr'],
                                     k=3, stride=2, pad=1, use_pallas=use_pallas)
    return pred_semantic, lr8x, [enc2x, enc4x]


# ------------------------------ deterministic init ---------------------------

def init_params(key, enc_channels):
    keys = jax.random.split(key, 20)
    bb = []
    cin = 3
    for i, cout in enumerate(enc_channels):
        w = jax.random.normal(keys[i], (3, 3, cin, cout), jnp.float32) * np.sqrt(2.0 / (9 * cin))
        b = jax.random.normal(keys[5 + i], (cout,), jnp.float32) * 0.01
        bb.append((w, b))
        cin = cout

    c4, c3, c2 = enc_channels[4], enc_channels[3], enc_channels[2]
    params = {
        'backbone': bb,
        # SEBlock(reduction=4): Linear(c4, c4//4, bias=False), Linear(c4//4, c4, bias=False)
        'se_w1': jax.random.normal(keys[10], (c4, c4 // 4), jnp.float32) / np.sqrt(c4),
        'se_w2': jax.random.normal(keys[11], (c4 // 4, c4), jnp.float32) / np.sqrt(c4 // 4),
        # Conv2dIBNormRelu(c4, c3, 5, pad=2): weight stored as (kh*kw*cin, cout)
        'w_lr16x': jax.random.normal(keys[12], (5 * 5 * c4, c3), jnp.float32) * np.sqrt(2.0 / (25 * c4)),
        'b_lr16x': jax.random.normal(keys[13], (1, c3), jnp.float32) * 0.01,
        # Conv2dIBNormRelu(c3, c2, 5, pad=2)
        'w_lr8x': jax.random.normal(keys[14], (5 * 5 * c3, c2), jnp.float32) * np.sqrt(2.0 / (25 * c3)),
        'b_lr8x': jax.random.normal(keys[15], (1, c2), jnp.float32) * 0.01,
        # conv_lr: Conv2d(c2, 1, 3, stride=2, pad=1), no IBNorm / no ReLU
        'w_lr': jax.random.normal(keys[16], (3 * 3 * c2, 1), jnp.float32) * np.sqrt(2.0 / (9 * c2)),
        'b_lr': jax.random.normal(keys[17], (1, 1), jnp.float32) * 0.01,
    }
    return params


# ----------------------------------- main ------------------------------------

if __name__ == "__main__":
    enc_channels = [8, 8, 16, 16, 32]          # small stand-in for MobileNetV2 channels
    key = jax.random.PRNGKey(0)
    k_params, k_img = jax.random.split(key)
    params = init_params(k_params, enc_channels)

    img = jax.random.normal(k_img, (2, 3, 64, 64), jnp.float32)   # NCHW like PyTorch

    fwd = jax.jit(lr_branch_forward, static_argnames=("inference", "use_pallas"))

    # Pallas forward (inference=False exercises every sub-module incl. conv_lr + sigmoid)
    pred, lr8x, (enc2x, enc4x) = fwd(img, params, inference=False, use_pallas=True)
    jax.block_until_ready(lr8x)
    jax.block_until_ready(pred)

    # pure-JAX reference with identical parameters and identical (bf16-operand) math
    pred_ref, lr8x_ref, _ = fwd(img, params, inference=False, use_pallas=False)

    np.testing.assert_allclose(np.asarray(lr8x), np.asarray(lr8x_ref), rtol=2e-3, atol=2e-3)
    np.testing.assert_allclose(np.asarray(pred), np.asarray(pred_ref), rtol=2e-3, atol=2e-3)

    # default-path semantics check (inference=True -> pred_semantic is None)
    pred_none, lr8x_inf, _ = fwd(img, params, inference=True, use_pallas=True)
    jax.block_until_ready(lr8x_inf)
    assert pred_none is None

    print("KERNEL_OK")
</pallas_src>

<mosaic_0001>
module attributes {stable_mosaic.version = 11 : i64} {
  func.func @_se_kernel(%arg0: memref<2x4x32xf32, #tpu.memory_space<vmem>>, %arg1: memref<32x8xbf16, #tpu.memory_space<vmem>>, %arg2: memref<8x32xbf16, #tpu.memory_space<vmem>>, %arg3: memref<2x4x32xf32, #tpu.memory_space<vmem>>) attributes {dimension_semantics = [], scalar_prefetch = 0 : i64, scratch_operands = 0 : i64, tpu.core_type = #tpu.core_type<tc>} {
    %c0 = arith.constant 0 : index
    %c0_0 = arith.constant 0 : index
    %c0_1 = arith.constant 0 : index
    %0 = vector.load %arg0[%c0, %c0_0, %c0_1] : memref<2x4x32xf32, #tpu.memory_space<vmem>>, vector<2x4x32xf32>
    %cst = arith.constant dense<0.000000e+00> : vector<2x32xf32>
    %1 = vector.multi_reduction <add>, %0, %cst [1] : vector<2x4x32xf32> to vector<2x32xf32>
    %cst_2 = arith.constant 4.000000e+00 : f32
    %2 = vector.broadcast %cst_2 : f32 to vector<2x32xf32>
    %3 = arith.divf %1, %2 : vector<2x32xf32>
    %4 = arith.truncf %3 : vector<2x32xf32> to vector<2x32xbf16>
    %c0_3 = arith.constant 0 : index
    %c0_4 = arith.constant 0 : index
    %5 = vector.load %arg1[%c0_3, %c0_4] : memref<32x8xbf16, #tpu.memory_space<vmem>>, vector<32x8xbf16>
    %cst_5 = arith.constant dense<0.000000e+00> : vector<2x8xf32>
    %6 = tpu.matmul %4, %5, %cst_5 {dimension_numbers = #tpu.dot_dimension_numbers<[1], [0], [0], [1], [0, 0, 1, 1], [], []>} : vector<2x32xbf16>, vector<32x8xbf16>, vector<2x8xf32> -> vector<2x8xf32>
    %cst_6 = arith.constant 0.000000e+00 : f32
    %7 = vector.broadcast %cst_6 : f32 to vector<2x8xf32>
    %8 = arith.maximumf %6, %7 : vector<2x8xf32>
    %9 = arith.truncf %8 : vector<2x8xf32> to vector<2x8xbf16>
    %c0_7 = arith.constant 0 : index
    %c0_8 = arith.constant 0 : index
    %10 = vector.load %arg2[%c0_7, %c0_8] : memref<8x32xbf16, #tpu.memory_space<vmem>>, vector<8x32xbf16>
    %cst_9 = arith.constant dense<0.000000e+00> : vector<2x32xf32>
    %11 = tpu.matmul %9, %10, %cst_9 {dimension_numbers = #tpu.dot_dimension_numbers<[1], [0], [0], [1], [0, 0, 1, 1], [], []>} : vector<2x8xbf16>, vector<8x32xbf16>, vector<2x32xf32> -> vector<2x32xf32>
    %12 = arith.negf %11 : vector<2x32xf32>
    %13 = math.exp %12 : vector<2x32xf32>
    %cst_10 = arith.constant 1.000000e+00 : f32
    %14 = vector.broadcast %cst_10 : f32 to vector<2x32xf32>
    %15 = arith.addf %14, %13 : vector<2x32xf32>
    %16 = arith.divf %14, %15 : vector<2x32xf32>
    %17 = vector.shape_cast %16 : vector<2x32xf32> to vector<2x1x32xf32>
    %18 = vector.broadcast %17 : vector<2x1x32xf32> to vector<2x4x32xf32>
    %19 = arith.mulf %0, %18 : vector<2x4x32xf32>
    %c0_11 = arith.constant 0 : index
    %c0_12 = arith.constant 0 : index
    %c0_13 = arith.constant 0 : index
    %20 = vector.load %arg3[%c0_11, %c0_12, %c0_13] : memref<2x4x32xf32, #tpu.memory_space<vmem>>, vector<2x4x32xf32>
    tpu.vector_store %arg3[%c0_11, %c0_12, %c0_13], %19 {strides = array<i32>} : memref<2x4x32xf32, #tpu.memory_space<vmem>>, vector<2x4x32xf32>,
    return
  }
}

module attributes {stable_mosaic.version = 11 : i64} {
  func.func @_upsample_cols_kernel(%arg0: i32, %arg1: memref<4x2xbf16, #tpu.memory_space<vmem>>, %arg2: memref<1x4x2x32xbf16, #tpu.memory_space<vmem>>, %arg3: memref<1x4x4x32xf32, #tpu.memory_space<vmem>>) attributes {dimension_semantics = [#tpu.dimension_semantics<parallel>], iteration_bounds = array<i64: 2>, scalar_prefetch = 0 : i64, scratch_operands = 0 : i64, tpu.core_type = #tpu.core_type<tc>, window_params = [{pipeline_mode = #tpu.pipeline_mode<synchronous>, transform_indices = @transform_0, window_bounds = array<i64: 4, 2>}, {transform_indices = @transform_1, window_bounds = array<i64: 1, 4, 2, 32>}, {transform_indices = @transform_2, window_bounds = array<i64: 1, 4, 4, 32>}]} {
    %c0 = arith.constant 0 : index
    %c0_0 = arith.constant 0 : index
    %0 = vector.load %arg1[%c0, %c0_0] : memref<4x2xbf16, #tpu.memory_space<vmem>>, vector<4x2xbf16>
    %1 = vector.shape_cast %0 : vector<4x2xbf16> to vector<1x4x2xbf16>
    %2 = vector.shape_cast %1 : vector<1x4x2xbf16> to vector<1x4x2xbf16>
    %3 = vector.broadcast %2 : vector<1x4x2xbf16> to vector<4x4x2xbf16>
    %c0_1 = arith.constant 0 : index
    %c0_2 = arith.constant 0 : index
    %c0_3 = arith.constant 0 : index
    %c0_4 = arith.constant 0 : index
    %4 = vector.load %arg2[%c0_1, %c0_2, %c0_3, %c0_4] : memref<1x4x2x32xbf16, #tpu.memory_space<vmem>>, vector<1x4x2x32xbf16>
    %5 = vector.shape_cast %4 : vector<1x4x2x32xbf16> to vector<4x2x32xbf16>
    "tpu.trace_start"() <{level = 10 : i32, message = "gvw,gwc->gvc"}> : () -> ()
    %cst = arith.constant dense<0.000000e+00> : vector<4x4x32xf32>
    %6 = tpu.matmul %3, %5, %cst {dimension_numbers = #tpu.dot_dimension_numbers<[2], [1], [1], [2], [0, 0, 0, 1, 1, 2], [0], [0]>} : vector<4x4x2xbf16>, vector<4x2x32xbf16>, vector<4x4x32xf32> -> vector<4x4x32xf32>
    "tpu.trace_stop"() : () -> ()
    %c0_5 = arith.constant 0 : index
    %c0_6 = arith.constant 0 : index
    %c0_7 = arith.constant 0 : index
    %c0_8 = arith.constant 0 : index
    %7 = vector.load %arg3[%c0_5, %c0_6, %c0_7, %c0_8] : memref<1x4x4x32xf32, #tpu.memory_space<vmem>>, vector<1x4x4x32xf32>
    %8 = vector.shape_cast %7 : vector<1x4x4x32xf32> to vector<4x4x32xf32>
    %9 = vector.shape_cast %6 : vector<4x4x32xf32> to vector<1x4x4x32xf32>
    tpu.vector_store %arg3[%c0_5, %c0_6, %c0_7, %c0_8], %9 {strides = array<i32>} : memref<1x4x4x32xf32, #tpu.memory_space<vmem>>, vector<1x4x4x32xf32>,
    return
  }
  func.func @transform_0(%arg0: i32) -> (i32, i32) {
    %c0_i32 = arith.constant 0 : i32
    %c0_i32_0 = arith.constant 0 : i32
    %c0_i32_1 = arith.constant 0 : i32
    return %c0_i32, %c0_i32_0 : i32, i32
  }
  func.func @transform_1(%arg0: i32) -> (i32, i32, i32, i32) {
    %c0_i32 = arith.constant 0 : i32
    %c0_i32_0 = arith.constant 0 : i32
    %c0_i32_1 = arith.constant 0 : i32
    %c0_i32_2 = arith.constant 0 : i32
    return %arg0, %c0_i32, %c0_i32_0, %c0_i32_1 : i32, i32, i32, i32
  }
  func.func @transform_2(%arg0: i32) -> (i32, i32, i32, i32) {
    %c0_i32 = arith.constant 0 : i32
    %c0_i32_0 = arith.constant 0 : i32
    %c0_i32_1 = arith.constant 0 : i32
    %c0_i32_2 = arith.constant 0 : i32
    return %arg0, %c0_i32, %c0_i32_0, %c0_i32_1 : i32, i32, i32, i32
  }
}

module attributes {stable_mosaic.version = 11 : i64} {
  func.func @_upsample_rows_kernel(%arg0: i32, %arg1: memref<4x2xbf16, #tpu.memory_space<vmem>>, %arg2: memref<1x2x64xbf16, #tpu.memory_space<vmem>>, %arg3: memref<1x4x64xf32, #tpu.memory_space<vmem>>) attributes {dimension_semantics = [#tpu.dimension_semantics<parallel>], iteration_bounds = array<i64: 2>, scalar_prefetch = 0 : i64, scratch_operands = 0 : i64, tpu.core_type = #tpu.core_type<tc>, window_params = [{pipeline_mode = #tpu.pipeline_mode<synchronous>, transform_indices = @transform_0, window_bounds = array<i64: 4, 2>}, {transform_indices = @transform_1, window_bounds = array<i64: 1, 2, 64>}, {transform_indices = @transform_2, window_bounds = array<i64: 1, 4, 64>}]} {
    %c0 = arith.constant 0 : index
    %c0_0 = arith.constant 0 : index
    %0 = vector.load %arg1[%c0, %c0_0] : memref<4x2xbf16, #tpu.memory_space<vmem>>, vector<4x2xbf16>
    %c0_1 = arith.constant 0 : index
    %c0_2 = arith.constant 0 : index
    %c0_3 = arith.constant 0 : index
    %1 = vector.load %arg2[%c0_1, %c0_2, %c0_3] : memref<1x2x64xbf16, #tpu.memory_space<vmem>>, vector<1x2x64xbf16>
    %2 = vector.shape_cast %1 : vector<1x2x64xbf16> to vector<2x64xbf16>
    %cst = arith.constant dense<0.000000e+00> : vector<4x64xf32>
    %3 = tpu.matmul %0, %2, %cst {dimension_numbers = #tpu.dot_dimension_numbers<[1], [0], [0], [1], [0, 0, 1, 1], [], []>} : vector<4x2xbf16>, vector<2x64xbf16>, vector<4x64xf32> -> vector<4x64xf32>
    %c0_4 = arith.constant 0 : index
    %c0_5 = arith.constant 0 : index
    %c0_6 = arith.constant 0 : index
    %4 = vector.load %arg3[%c0_4, %c0_5, %c0_6] : memref<1x4x64xf32, #tpu.memory_space<vmem>>, vector<1x4x64xf32>
    %5 = vector.shape_cast %4 : vector<1x4x64xf32> to vector<4x64xf32>
    %6 = vector.shape_cast %3 : vector<4x64xf32> to vector<1x4x64xf32>
    tpu.vector_store %arg3[%c0_4, %c0_5, %c0_6], %6 {strides = array<i32>} : memref<1x4x64xf32, #tpu.memory_space<vmem>>, vector<1x4x64xf32>,
    return
  }
  func.func @transform_0(%arg0: i32) -> (i32, i32) {
    %c0_i32 = arith.constant 0 : i32
    %c0_i32_0 = arith.constant 0 : i32
    %c0_i32_1 = arith.constant 0 : i32
    return %c0_i32, %c0_i32_0 : i32, i32
  }
  func.func @transform_1(%arg0: i32) -> (i32, i32, i32) {
    %c0_i32 = arith.constant 0 : i32
    %c0_i32_0 = arith.constant 0 : i32
    %c0_i32_1 = arith.constant 0 : i32
    return %arg0, %c0_i32, %c0_i32_0 : i32, i32, i32
  }
  func.func @transform_2(%arg0: i32) -> (i32, i32, i32) {
    %c0_i32 = arith.constant 0 : i32
    %c0_i32_0 = arith.constant 0 : i32
    %c0_i32_1 = arith.constant 0 : i32
    return %arg0, %c0_i32, %c0_i32_0 : i32, i32, i32
  }
}

module attributes {stable_mosaic.version = 11 : i64} {
  func.func @_conv_bias_stats_kernel(%arg0: i32, %arg1: i32, %arg2: memref<1x16x800xbf16, #tpu.memory_space<vmem>>, %arg3: memref<800x128xbf16, #tpu.memory_space<vmem>>, %arg4: memref<1x128xf32, #tpu.memory_space<vmem>>, %arg5: memref<1x16x128xf32, #tpu.memory_space<vmem>>, %arg6: memref<1x2x128xf32, #tpu.memory_space<vmem>>) attributes {dimension_semantics = [#tpu.dimension_semantics<parallel>, #tpu.dimension_semantics<arbitrary>], iteration_bounds = array<i64: 2, 1>, scalar_prefetch = 0 : i64, scratch_operands = 0 : i64, tpu.core_type = #tpu.core_type<tc>, window_params = [{transform_indices = @transform_0, window_bounds = array<i64: 1, 16, 800>}, {pipeline_mode = #tpu.pipeline_mode<synchronous>, transform_indices = @transform_1, window_bounds = array<i64: 800, 128>}, {pipeline_mode = #tpu.pipeline_mode<synchronous>, transform_indices = @transform_2, window_bounds = array<i64: 1, 128>}, {transform_indices = @transform_3, window_bounds = array<i64: 1, 16, 128>}, {transform_indices = @transform_4, window_bounds = array<i64: 1, 2, 128>}]} {
    %c0 = arith.constant 0 : index
    %c0_0 = arith.constant 0 : index
    %c0_1 = arith.constant 0 : index
    %0 = vector.load %arg2[%c0, %c0_0, %c0_1] : memref<1x16x800xbf16, #tpu.memory_space<vmem>>, vector<1x16x800xbf16>
    %1 = vector.shape_cast %0 : vector<1x16x800xbf16> to vector<16x800xbf16>
    %c0_2 = arith.constant 0 : index
    %c0_3 = arith.constant 0 : index
    %2 = vector.load %arg3[%c0_2, %c0_3] : memref<800x128xbf16, #tpu.memory_space<vmem>>, vector<800x128xbf16>
    %cst = arith.constant dense<0.000000e+00> : vector<16x128xf32>
    %3 = tpu.matmul %1, %2, %cst {dimension_numbers = #tpu.dot_dimension_numbers<[1], [0], [0], [1], [0, 0, 1, 1], [], []>} : vector<16x800xbf16>, vector<800x128xbf16>, vector<16x128xf32> -> vector<16x128xf32>
    %c0_4 = arith.constant 0 : index
    %c0_5 = arith.constant 0 : index
    %4 = vector.load %arg4[%c0_4, %c0_5] : memref<1x128xf32, #tpu.memory_space<vmem>>, vector<1x128xf32>
    %5 = vector.broadcast %4 : vector<1x128xf32> to vector<16x128xf32>
    %6 = arith.addf %3, %5 : vector<16x128xf32>
    %c0_6 = arith.constant 0 : index
    %c0_7 = arith.constant 0 : index
    %c0_8 = arith.constant 0 : index
    %7 = vector.load %arg5[%c0_6, %c0_7, %c0_8] : memref<1x16x128xf32, #tpu.memory_space<vmem>>, vector<1x16x128xf32>
    %8 = vector.shape_cast %7 : vector<1x16x128xf32> to vector<16x128xf32>
    %9 = vector.shape_cast %6 : vector<16x128xf32> to vector<1x16x128xf32>
    tpu.vector_store %arg5[%c0_6, %c0_7, %c0_8], %9 {strides = array<i32>} : memref<1x16x128xf32, #tpu.memory_space<vmem>>, vector<1x16x128xf32>,
    %c0_i32 = arith.constant 0 : i32
    %10 = arith.cmpi eq, %arg1, %c0_i32 : i32
    %11 = arith.extui %10 : i1 to i32
    %c0_i32_9 = arith.constant 0 : i32
    %12 = arith.cmpi ne, %11, %c0_i32_9 : i32
    scf.if %12 {
      %cst_18 = arith.constant 0.000000e+00 : f32
      %25 = vector.broadcast %cst_18 : f32 to vector<2x128xf32>
      %c0_19 = arith.constant 0 : index
      %c0_20 = arith.constant 0 : index
      %c0_21 = arith.constant 0 : index
      %26 = vector.load %arg6[%c0_19, %c0_20, %c0_21] : memref<1x2x128xf32, #tpu.memory_space<vmem>>, vector<1x2x128xf32>
      %27 = vector.shape_cast %26 : vector<1x2x128xf32> to vector<2x128xf32>
      %28 = vector.shape_cast %25 : vector<2x128xf32> to vector<1x2x128xf32>
      tpu.vector_store %arg6[%c0_19, %c0_20, %c0_21], %28 {strides = array<i32>} : memref<1x2x128xf32, #tpu.memory_space<vmem>>, vector<1x2x128xf32>,
    } else {
    }
    %cst_10 = arith.constant dense<0.000000e+00> : vector<128xf32>
    %13 = vector.multi_reduction <add>, %6, %cst_10 [0] : vector<16x128xf32> to vector<128xf32>
    %14 = vector.shape_cast %13 : vector<128xf32> to vector<1x128xf32>
    %15 = arith.mulf %6, %6 : vector<16x128xf32>
    %cst_11 = arith.constant dense<0.000000e+00> : vector<128xf32>
    %16 = vector.multi_reduction <add>, %15, %cst_11 [0] : vector<16x128xf32> to vector<128xf32>
    %17 = vector.shape_cast %16 : vector<128xf32> to vector<1x128xf32>
    %18 = tpu.concatenate %14, %17 in 0 : vector<1x128xf32>, vector<1x128xf32> -> vector<2x128xf32>
    %c0_12 = arith.constant 0 : index
    %c0_13 = arith.constant 0 : index
    %c0_14 = arith.constant 0 : index
    %19 = vector.load %arg6[%c0_12, %c0_13, %c0_14] : memref<1x2x128xf32, #tpu.memory_space<vmem>>, vector<1x2x128xf32>
    %20 = vector.shape_cast %19 : vector<1x2x128xf32> to vector<2x128xf32>
    %21 = arith.addf %20, %18 : vector<2x128xf32>
    %c0_15 = arith.constant 0 : index
    %c0_16 = arith.constant 0 : index
    %c0_17 = arith.constant 0 : index
    %22 = vector.load %arg6[%c0_15, %c0_16, %c0_17] : memref<1x2x128xf32, #tpu.memory_space<vmem>>, vector<1x2x128xf32>
    %23 = vector.shape_cast %22 : vector<1x2x128xf32> to vector<2x128xf32>
    %24 = vector.shape_cast %21 : vector<2x128xf32> to vector<1x2x128xf32>
    tpu.vector_store %arg6[%c0_15, %c0_16, %c0_17], %24 {strides = array<i32>} : memref<1x2x128xf32, #tpu.memory_space<vmem>>, vector<1x2x128xf32>,
    return
  }
  func.func @transform_0(%arg0: i32, %arg1: i32) -> (i32, i32, i32) {
    %c0_i32 = arith.constant 0 : i32
    %c0_i32_0 = arith.constant 0 : i32
    return %arg0, %arg1, %c0_i32 : i32, i32, i32
  }
  func.func @transform_1(%arg0: i32, %arg1: i32) -> (i32, i32) {
    %c0_i32 = arith.constant 0 : i32
    %c0_i32_0 = arith.constant 0 : i32
    %c0_i32_1 = arith.constant 0 : i32
    return %c0_i32, %c0_i32_0 : i32, i32
  }
  func.func @transform_2(%arg0: i32, %arg1: i32) -> (i32, i32) {
    %c0_i32 = arith.constant 0 : i32
    %c0_i32_0 = arith.constant 0 : i32
    %c0_i32_1 = arith.constant 0 : i32
    return %c0_i32, %c0_i32_0 : i32, i32
  }
  func.func @transform_3(%arg0: i32, %arg1: i32) -> (i32, i32, i32) {
    %c0_i32 = arith.constant 0 : i32
    %c0_i32_0 = arith.constant 0 : i32
    return %arg0, %arg1, %c0_i32 : i32, i32, i32
  }
  func.func @transform_4(%arg0: i32, %arg1: i32) -> (i32, i32, i32) {
    %c0_i32 = arith.constant 0 : i32
    %c0_i32_0 = arith.constant 0 : i32
    %c0_i32_1 = arith.constant 0 : i32
    return %arg0, %c0_i32, %c0_i32_0 : i32, i32, i32
  }
}

module attributes {stable_mosaic.version = 11 : i64} {
  func.func @_scale_shift_relu_kernel(%arg0: i32, %arg1: i32, %arg2: memref<1x16x128xf32, #tpu.memory_space<vmem>>, %arg3: memref<1x1x128xf32, #tpu.memory_space<vmem>>, %arg4: memref<1x1x128xf32, #tpu.memory_space<vmem>>, %arg5: memref<1x16x128xf32, #tpu.memory_space<vmem>>) attributes {dimension_semantics = [#tpu.dimension_semantics<parallel>, #tpu.dimension_semantics<parallel>], iteration_bounds = array<i64: 2, 1>, scalar_prefetch = 0 : i64, scratch_operands = 0 : i64, tpu.core_type = #tpu.core_type<tc>, window_params = [{transform_indices = @transform_0, window_bounds = array<i64: 1, 16, 128>}, {transform_indices = @transform_1, window_bounds = array<i64: 1, 1, 128>}, {transform_indices = @transform_2, window_bounds = array<i64: 1, 1, 128>}, {transform_indices = @transform_3, window_bounds = array<i64: 1, 16, 128>}]} {
    %c0 = arith.constant 0 : index
    %c0_0 = arith.constant 0 : index
    %c0_1 = arith.constant 0 : index
    %0 = vector.load %arg2[%c0, %c0_0, %c0_1] : memref<1x16x128xf32, #tpu.memory_space<vmem>>, vector<1x16x128xf32>
    %1 = vector.shape_cast %0 : vector<1x16x128xf32> to vector<16x128xf32>
    %c0_2 = arith.constant 0 : index
    %c0_3 = arith.constant 0 : index
    %c0_4 = arith.constant 0 : index
    %2 = vector.load %arg3[%c0_2, %c0_3, %c0_4] : memref<1x1x128xf32, #tpu.memory_space<vmem>>, vector<1x1x128xf32>
    %3 = vector.shape_cast %2 : vector<1x1x128xf32> to vector<1x128xf32>
    %4 = vector.broadcast %3 : vector<1x128xf32> to vector<16x128xf32>
    %5 = arith.mulf %1, %4 : vector<16x128xf32>
    %c0_5 = arith.constant 0 : index
    %c0_6 = arith.constant 0 : index
    %c0_7 = arith.constant 0 : index
    %6 = vector.load %arg4[%c0_5, %c0_6, %c0_7] : memref<1x1x128xf32, #tpu.memory_space<vmem>>, vector<1x1x128xf32>
    %7 = vector.shape_cast %6 : vector<1x1x128xf32> to vector<1x128xf32>
    %8 = vector.broadcast %7 : vector<1x128xf32> to vector<16x128xf32>
    %9 = arith.addf %5, %8 : vector<16x128xf32>
    %cst = arith.constant 0.000000e+00 : f32
    %10 = vector.broadcast %cst : f32 to vector<16x128xf32>
    %11 = arith.maximumf %9, %10 : vector<16x128xf32>
    %c0_8 = arith.constant 0 : index
    %c0_9 = arith.constant 0 : index
    %c0_10 = arith.constant 0 : index
    %12 = vector.load %arg5[%c0_8, %c0_9, %c0_10] : memref<1x16x128xf32, #tpu.memory_space<vmem>>, vector<1x16x128xf32>
    %13 = vector.shape_cast %12 : vector<1x16x128xf32> to vector<16x128xf32>
    %14 = vector.shape_cast %11 : vector<16x128xf32> to vector<1x16x128xf32>
    tpu.vector_store %arg5[%c0_8, %c0_9, %c0_10], %14 {strides = array<i32>} : memref<1x16x128xf32, #tpu.memory_space<vmem>>, vector<1x16x128xf32>,
    return
  }
  func.func @transform_0(%arg0: i32, %arg1: i32) -> (i32, i32, i32) {
    %c0_i32 = arith.constant 0 : i32
    %c0_i32_0 = arith.constant 0 : i32
    return %arg0, %arg1, %c0_i32 : i32, i32, i32
  }
  func.func @transform_1(%arg0: i32, %arg1: i32) -> (i32, i32, i32) {
    %c0_i32 = arith.constant 0 : i32
    %c0_i32_0 = arith.constant 0 : i32
    %c0_i32_1 = arith.constant 0 : i32
    return %arg0, %c0_i32, %c0_i32_0 : i32, i32, i32
  }
  func.func @transform_2(%arg0: i32, %arg1: i32) -> (i32, i32, i32) {
    %c0_i32 = arith.constant 0 : i32
    %c0_i32_0 = arith.constant 0 : i32
    %c0_i32_1 = arith.constant 0 : i32
    return %arg0, %c0_i32, %c0_i32_0 : i32, i32, i32
  }
  func.func @transform_3(%arg0: i32, %arg1: i32) -> (i32, i32, i32) {
    %c0_i32 = arith.constant 0 : i32
    %c0_i32_0 = arith.constant 0 : i32
    return %arg0, %arg1, %c0_i32 : i32, i32, i32
  }
}

module attributes {stable_mosaic.version = 11 : i64} {
  func.func @_upsample_rows_kernel(%arg0: i32, %arg1: memref<8x4xbf16, #tpu.memory_space<vmem>>, %arg2: memref<1x4x64xbf16, #tpu.memory_space<vmem>>, %arg3: memref<1x8x64xf32, #tpu.memory_space<vmem>>) attributes {dimension_semantics = [#tpu.dimension_semantics<parallel>], iteration_bounds = array<i64: 2>, scalar_prefetch = 0 : i64, scratch_operands = 0 : i64, tpu.core_type = #tpu.core_type<tc>, window_params = [{pipeline_mode = #tpu.pipeline_mode<synchronous>, transform_indices = @transform_0, window_bounds = array<i64: 8, 4>}, {transform_indices = @transform_1, window_bounds = array<i64: 1, 4, 64>}, {transform_indices = @transform_2, window_bounds = array<i64: 1, 8, 64>}]} {
    %c0 = arith.constant 0 : index
    %c0_0 = arith.constant 0 : index
    %0 = vector.load %arg1[%c0, %c0_0] : memref<8x4xbf16, #tpu.memory_space<vmem>>, vector<8x4xbf16>
    %c0_1 = arith.constant 0 : index
    %c0_2 = arith.constant 0 : index
    %c0_3 = arith.constant 0 : index
    %1 = vector.load %arg2[%c0_1, %c0_2, %c0_3] : memref<1x4x64xbf16, #tpu.memory_space<vmem>>, vector<1x4x64xbf16>
    %2 = vector.shape_cast %1 : vector<1x4x64xbf16> to vector<4x64xbf16>
    %cst = arith.constant dense<0.000000e+00> : vector<8x64xf32>
    %3 = tpu.matmul %0, %2, %cst {dimension_numbers = #tpu.dot_dimension_numbers<[1], [0], [0], [1], [0, 0, 1, 1], [], []>} : vector<8x4xbf16>, vector<4x64xbf16>, vector<8x64xf32> -> vector<8x64xf32>
    %c0_4 = arith.constant 0 : index
    %c0_5 = arith.constant 0 : index
    %c0_6 = arith.constant 0 : index
    %4 = vector.load %arg3[%c0_4, %c0_5, %c0_6] : memref<1x8x64xf32, #tpu.memory_space<vmem>>, vector<1x8x64xf32>
    %5 = vector.shape_cast %4 : vector<1x8x64xf32> to vector<8x64xf32>
    %6 = vector.shape_cast %3 : vector<8x64xf32> to vector<1x8x64xf32>
    tpu.vector_store %arg3[%c0_4, %c0_5, %c0_6], %6 {strides = array<i32>} : memref<1x8x64xf32, #tpu.memory_space<vmem>>, vector<1x8x64xf32>,
    return
  }
  func.func @transform_0(%arg0: i32) -> (i32, i32) {
    %c0_i32 = arith.constant 0 : i32
    %c0_i32_0 = arith.constant 0 : i32
    %c0_i32_1 = arith.constant 0 : i32
    return %c0_i32, %c0_i32_0 : i32, i32
  }
  func.func @transform_1(%arg0: i32) -> (i32, i32, i32) {
    %c0_i32 = arith.constant 0 : i32
    %c0_i32_0 = arith.constant 0 : i32
    %c0_i32_1 = arith.constant 0 : i32
    return %arg0, %c0_i32, %c0_i32_0 : i32, i32, i32
  }
  func.func @transform_2(%arg0: i32) -> (i32, i32, i32) {
    %c0_i32 = arith.constant 0 : i32
    %c0_i32_0 = arith.constant 0 : i32
    %c0_i32_1 = arith.constant 0 : i32
    return %arg0, %c0_i32, %c0_i32_0 : i32, i32, i32
  }
}

module attributes {stable_mosaic.version = 11 : i64} {
  func.func @_upsample_cols_kernel(%arg0: i32, %arg1: memref<8x4xbf16, #tpu.memory_space<vmem>>, %arg2: memref<1x8x4x16xbf16, #tpu.memory_space<vmem>>, %arg3: memref<1x8x8x16xf32, #tpu.memory_space<vmem>>) attributes {dimension_semantics = [#tpu.dimension_semantics<parallel>], iteration_bounds = array<i64: 2>, scalar_prefetch = 0 : i64, scratch_operands = 0 : i64, tpu.core_type = #tpu.core_type<tc>, window_params = [{pipeline_mode = #tpu.pipeline_mode<synchronous>, transform_indices = @transform_0, window_bounds = array<i64: 8, 4>}, {transform_indices = @transform_1, window_bounds = array<i64: 1, 8, 4, 16>}, {transform_indices = @transform_2, window_bounds = array<i64: 1, 8, 8, 16>}]} {
    %c0 = arith.constant 0 : index
    %c0_0 = arith.constant 0 : index
    %0 = vector.load %arg1[%c0, %c0_0] : memref<8x4xbf16, #tpu.memory_space<vmem>>, vector<8x4xbf16>
    %1 = vector.shape_cast %0 : vector<8x4xbf16> to vector<1x8x4xbf16>
    %2 = vector.shape_cast %1 : vector<1x8x4xbf16> to vector<1x8x4xbf16>
    %3 = vector.broadcast %2 : vector<1x8x4xbf16> to vector<8x8x4xbf16>
    %c0_1 = arith.constant 0 : index
    %c0_2 = arith.constant 0 : index
    %c0_3 = arith.constant 0 : index
    %c0_4 = arith.constant 0 : index
    %4 = vector.load %arg2[%c0_1, %c0_2, %c0_3, %c0_4] : memref<1x8x4x16xbf16, #tpu.memory_space<vmem>>, vector<1x8x4x16xbf16>
    %5 = vector.shape_cast %4 : vector<1x8x4x16xbf16> to vector<8x4x16xbf16>
    "tpu.trace_start"() <{level = 10 : i32, message = "gvw,gwc->gvc"}> : () -> ()
    %cst = arith.constant dense<0.000000e+00> : vector<8x8x16xf32>
    %6 = tpu.matmul %3, %5, %cst {dimension_numbers = #tpu.dot_dimension_numbers<[2], [1], [1], [2], [0, 0, 0, 1, 1, 2], [0], [0]>} : vector<8x8x4xbf16>, vector<8x4x16xbf16>, vector<8x8x16xf32> -> vector<8x8x16xf32>
    "tpu.trace_stop"() : () -> ()
    %c0_5 = arith.constant 0 : index
    %c0_6 = arith.constant 0 : index
    %c0_7 = arith.constant 0 : index
    %c0_8 = arith.constant 0 : index
    %7 = vector.load %arg3[%c0_5, %c0_6, %c0_7, %c0_8] : memref<1x8x8x16xf32, #tpu.memory_space<vmem>>, vector<1x8x8x16xf32>
    %8 = vector.shape_cast %7 : vector<1x8x8x16xf32> to vector<8x8x16xf32>
    %9 = vector.shape_cast %6 : vector<8x8x16xf32> to vector<1x8x8x16xf32>
    tpu.vector_store %arg3[%c0_5, %c0_6, %c0_7, %c0_8], %9 {strides = array<i32>} : memref<1x8x8x16xf32, #tpu.memory_space<vmem>>, vector<1x8x8x16xf32>,
    return
  }
  func.func @transform_0(%arg0: i32) -> (i32, i32) {
    %c0_i32 = arith.constant 0 : i32
    %c0_i32_0 = arith.constant 0 : i32
    %c0_i32_1 = arith.constant 0 : i32
    return %c0_i32, %c0_i32_0 : i32, i32
  }
  func.func @transform_1(%arg0: i32) -> (i32, i32, i32, i32) {
    %c0_i32 = arith.constant 0 : i32
    %c0_i32_0 = arith.constant 0 : i32
    %c0_i32_1 = arith.constant 0 : i32
    %c0_i32_2 = arith.constant 0 : i32
    return %arg0, %c0_i32, %c0_i32_0, %c0_i32_1 : i32, i32, i32, i32
  }
  func.func @transform_2(%arg0: i32) -> (i32, i32, i32, i32) {
    %c0_i32 = arith.constant 0 : i32
    %c0_i32_0 = arith.constant 0 : i32
    %c0_i32_1 = arith.constant 0 : i32
    %c0_i32_2 = arith.constant 0 : i32
    return %arg0, %c0_i32, %c0_i32_0, %c0_i32_1 : i32, i32, i32, i32
  }
}

module attributes {stable_mosaic.version = 11 : i64} {
  func.func @_conv_bias_stats_kernel(%arg0: i32, %arg1: i32, %arg2: memref<1x64x400xbf16, #tpu.memory_space<vmem>>, %arg3: memref<400x128xbf16, #tpu.memory_space<vmem>>, %arg4: memref<1x128xf32, #tpu.memory_space<vmem>>, %arg5: memref<1x64x128xf32, #tpu.memory_space<vmem>>, %arg6: memref<1x2x128xf32, #tpu.memory_space<vmem>>) attributes {dimension_semantics = [#tpu.dimension_semantics<parallel>, #tpu.dimension_semantics<arbitrary>], iteration_bounds = array<i64: 2, 1>, scalar_prefetch = 0 : i64, scratch_operands = 0 : i64, tpu.core_type = #tpu.core_type<tc>, window_params = [{transform_indices = @transform_0, window_bounds = array<i64: 1, 64, 400>}, {pipeline_mode = #tpu.pipeline_mode<synchronous>, transform_indices = @transform_1, window_bounds = array<i64: 400, 128>}, {pipeline_mode = #tpu.pipeline_mode<synchronous>, transform_indices = @transform_2, window_bounds = array<i64: 1, 128>}, {transform_indices = @transform_3, window_bounds = array<i64: 1, 64, 128>}, {transform_indices = @transform_4, window_bounds = array<i64: 1, 2, 128>}]} {
    %c0 = arith.constant 0 : index
    %c0_0 = arith.constant 0 : index
    %c0_1 = arith.constant 0 : index
    %0 = vector.load %arg2[%c0, %c0_0, %c0_1] : memref<1x64x400xbf16, #tpu.memory_space<vmem>>, vector<1x64x400xbf16>
    %1 = vector.shape_cast %0 : vector<1x64x400xbf16> to vector<64x400xbf16>
    %c0_2 = arith.constant 0 : index
    %c0_3 = arith.constant 0 : index
    %2 = vector.load %arg3[%c0_2, %c0_3] : memref<400x128xbf16, #tpu.memory_space<vmem>>, vector<400x128xbf16>
    %cst = arith.constant dense<0.000000e+00> : vector<64x128xf32>
    %3 = tpu.matmul %1, %2, %cst {dimension_numbers = #tpu.dot_dimension_numbers<[1], [0], [0], [1], [0, 0, 1, 1], [], []>} : vector<64x400xbf16>, vector<400x128xbf16>, vector<64x128xf32> -> vector<64x128xf32>
    %c0_4 = arith.constant 0 : index
    %c0_5 = arith.constant 0 : index
    %4 = vector.load %arg4[%c0_4, %c0_5] : memref<1x128xf32, #tpu.memory_space<vmem>>, vector<1x128xf32>
    %5 = vector.broadcast %4 : vector<1x128xf32> to vector<64x128xf32>
    %6 = arith.addf %3, %5 : vector<64x128xf32>
    %c0_6 = arith.constant 0 : index
    %c0_7 = arith.constant 0 : index
    %c0_8 = arith.constant 0 : index
    %7 = vector.load %arg5[%c0_6, %c0_7, %c0_8] : memref<1x64x128xf32, #tpu.memory_space<vmem>>, vector<1x64x128xf32>
    %8 = vector.shape_cast %7 : vector<1x64x128xf32> to vector<64x128xf32>
    %9 = vector.shape_cast %6 : vector<64x128xf32> to vector<1x64x128xf32>
    tpu.vector_store %arg5[%c0_6, %c0_7, %c0_8], %9 {strides = array<i32>} : memref<1x64x128xf32, #tpu.memory_space<vmem>>, vector<1x64x128xf32>,
    %c0_i32 = arith.constant 0 : i32
    %10 = arith.cmpi eq, %arg1, %c0_i32 : i32
    %11 = arith.extui %10 : i1 to i32
    %c0_i32_9 = arith.constant 0 : i32
    %12 = arith.cmpi ne, %11, %c0_i32_9 : i32
    scf.if %12 {
      %cst_18 = arith.constant 0.000000e+00 : f32
      %25 = vector.broadcast %cst_18 : f32 to vector<2x128xf32>
      %c0_19 = arith.constant 0 : index
      %c0_20 = arith.constant 0 : index
      %c0_21 = arith.constant 0 : index
      %26 = vector.load %arg6[%c0_19, %c0_20, %c0_21] : memref<1x2x128xf32, #tpu.memory_space<vmem>>, vector<1x2x128xf32>
      %27 = vector.shape_cast %26 : vector<1x2x128xf32> to vector<2x128xf32>
      %28 = vector.shape_cast %25 : vector<2x128xf32> to vector<1x2x128xf32>
      tpu.vector_store %arg6[%c0_19, %c0_20, %c0_21], %28 {strides = array<i32>} : memref<1x2x128xf32, #tpu.memory_space<vmem>>, vector<1x2x128xf32>,
    } else {
    }
    %cst_10 = arith.constant dense<0.000000e+00> : vector<128xf32>
    %13 = vector.multi_reduction <add>, %6, %cst_10 [0] : vector<64x128xf32> to vector<128xf32>
    %14 = vector.shape_cast %13 : vector<128xf32> to vector<1x128xf32>
    %15 = arith.mulf %6, %6 : vector<64x128xf32>
    %cst_11 = arith.constant dense<0.000000e+00> : vector<128xf32>
    %16 = vector.multi_reduction <add>, %15, %cst_11 [0] : vector<64x128xf32> to vector<128xf32>
    %17 = vector.shape_cast %16 : vector<128xf32> to vector<1x128xf32>
    %18 = tpu.concatenate %14, %17 in 0 : vector<1x128xf32>, vector<1x128xf32> -> vector<2x128xf32>
    %c0_12 = arith.constant 0 : index
    %c0_13 = arith.constant 0 : index
    %c0_14 = arith.constant 0 : index
    %19 = vector.load %arg6[%c0_12, %c0_13, %c0_14] : memref<1x2x128xf32, #tpu.memory_space<vmem>>, vector<1x2x128xf32>
    %20 = vector.shape_cast %19 : vector<1x2x128xf32> to vector<2x128xf32>
    %21 = arith.addf %20, %18 : vector<2x128xf32>
    %c0_15 = arith.constant 0 : index
    %c0_16 = arith.constant 0 : index
    %c0_17 = arith.constant 0 : index
    %22 = vector.load %arg6[%c0_15, %c0_16, %c0_17] : memref<1x2x128xf32, #tpu.memory_space<vmem>>, vector<1x2x128xf32>
    %23 = vector.shape_cast %22 : vector<1x2x128xf32> to vector<2x128xf32>
    %24 = vector.shape_cast %21 : vector<2x128xf32> to vector<1x2x128xf32>
    tpu.vector_store %arg6[%c0_15, %c0_16, %c0_17], %24 {strides = array<i32>} : memref<1x2x128xf32, #tpu.memory_space<vmem>>, vector<1x2x128xf32>,
    return
  }
  func.func @transform_0(%arg0: i32, %arg1: i32) -> (i32, i32, i32) {
    %c0_i32 = arith.constant 0 : i32
    %c0_i32_0 = arith.constant 0 : i32
    return %arg0, %arg1, %c0_i32 : i32, i32, i32
  }
  func.func @transform_1(%arg0: i32, %arg1: i32) -> (i32, i32) {
    %c0_i32 = arith.constant 0 : i32
    %c0_i32_0 = arith.constant 0 : i32
    %c0_i32_1 = arith.constant 0 : i32
    return %c0_i32, %c0_i32_0 : i32, i32
  }
  func.func @transform_2(%arg0: i32, %arg1: i32) -> (i32, i32) {
    %c0_i32 = arith.constant 0 : i32
    %c0_i32_0 = arith.constant 0 : i32
    %c0_i32_1 = arith.constant 0 : i32
    return %c0_i32, %c0_i32_0 : i32, i32
  }
  func.func @transform_3(%arg0: i32, %arg1: i32) -> (i32, i32, i32) {
    %c0_i32 = arith.constant 0 : i32
    %c0_i32_0 = arith.constant 0 : i32
    return %arg0, %arg1, %c0_i32 : i32, i32, i32
  }
  func.func @transform_4(%arg0: i32, %arg1: i32) -> (i32, i32, i32) {
    %c0_i32 = arith.constant 0 : i32
    %c0_i32_0 = arith.constant 0 : i32
    %c0_i32_1 = arith.constant 0 : i32
    return %arg0, %c0_i32, %c0_i32_0 : i32, i32, i32
  }
}

module attributes {stable_mosaic.version = 11 : i64} {
  func.func @_scale_shift_relu_kernel(%arg0: i32, %arg1: i32, %arg2: memref<1x64x128xf32, #tpu.memory_space<vmem>>, %arg3: memref<1x1x128xf32, #tpu.memory_space<vmem>>, %arg4: memref<1x1x128xf32, #tpu.memory_space<vmem>>, %arg5: memref<1x64x128xf32, #tpu.memory_space<vmem>>) attributes {dimension_semantics = [#tpu.dimension_semantics<parallel>, #tpu.dimension_semantics<parallel>], iteration_bounds = array<i64: 2, 1>, scalar_prefetch = 0 : i64, scratch_operands = 0 : i64, tpu.core_type = #tpu.core_type<tc>, window_params = [{transform_indices = @transform_0, window_bounds = array<i64: 1, 64, 128>}, {transform_indices = @transform_1, window_bounds = array<i64: 1, 1, 128>}, {transform_indices = @transform_2, window_bounds = array<i64: 1, 1, 128>}, {transform_indices = @transform_3, window_bounds = array<i64: 1, 64, 128>}]} {
    %c0 = arith.constant 0 : index
    %c0_0 = arith.constant 0 : index
    %c0_1 = arith.constant 0 : index
    %0 = vector.load %arg2[%c0, %c0_0, %c0_1] : memref<1x64x128xf32, #tpu.memory_space<vmem>>, vector<1x64x128xf32>
    %1 = vector.shape_cast %0 : vector<1x64x128xf32> to vector<64x128xf32>
    %c0_2 = arith.constant 0 : index
    %c0_3 = arith.constant 0 : index
    %c0_4 = arith.constant 0 : index
    %2 = vector.load %arg3[%c0_2, %c0_3, %c0_4] : memref<1x1x128xf32, #tpu.memory_space<vmem>>, vector<1x1x128xf32>
    %3 = vector.shape_cast %2 : vector<1x1x128xf32> to vector<1x128xf32>
    %4 = vector.broadcast %3 : vector<1x128xf32> to vector<64x128xf32>
    %5 = arith.mulf %1, %4 : vector<64x128xf32>
    %c0_5 = arith.constant 0 : index
    %c0_6 = arith.constant 0 : index
    %c0_7 = arith.constant 0 : index
    %6 = vector.load %arg4[%c0_5, %c0_6, %c0_7] : memref<1x1x128xf32, #tpu.memory_space<vmem>>, vector<1x1x128xf32>
    %7 = vector.shape_cast %6 : vector<1x1x128xf32> to vector<1x128xf32>
    %8 = vector.broadcast %7 : vector<1x128xf32> to vector<64x128xf32>
    %9 = arith.addf %5, %8 : vector<64x128xf32>
    %cst = arith.constant 0.000000e+00 : f32
    %10 = vector.broadcast %cst : f32 to vector<64x128xf32>
    %11 = arith.maximumf %9, %10 : vector<64x128xf32>
    %c0_8 = arith.constant 0 : index
    %c0_9 = arith.constant 0 : index
    %c0_10 = arith.constant 0 : index
    %12 = vector.load %arg5[%c0_8, %c0_9, %c0_10] : memref<1x64x128xf32, #tpu.memory_space<vmem>>, vector<1x64x128xf32>
    %13 = vector.shape_cast %12 : vector<1x64x128xf32> to vector<64x128xf32>
    %14 = vector.shape_cast %11 : vector<64x128xf32> to vector<1x64x128xf32>
    tpu.vector_store %arg5[%c0_8, %c0_9, %c0_10], %14 {strides = array<i32>} : memref<1x64x128xf32, #tpu.memory_space<vmem>>, vector<1x64x128xf32>,
    return
  }
  func.func @transform_0(%arg0: i32, %arg1: i32) -> (i32, i32, i32) {
    %c0_i32 = arith.constant 0 : i32
    %c0_i32_0 = arith.constant 0 : i32
    return %arg0, %arg1, %c0_i32 : i32, i32, i32
  }
  func.func @transform_1(%arg0: i32, %arg1: i32) -> (i32, i32, i32) {
    %c0_i32 = arith.constant 0 : i32
    %c0_i32_0 = arith.constant 0 : i32
    %c0_i32_1 = arith.constant 0 : i32
    return %arg0, %c0_i32, %c0_i32_0 : i32, i32, i32
  }
  func.func @transform_2(%arg0: i32, %arg1: i32) -> (i32, i32, i32) {
    %c0_i32 = arith.constant 0 : i32
    %c0_i32_0 = arith.constant 0 : i32
    %c0_i32_1 = arith.constant 0 : i32
    return %arg0, %c0_i32, %c0_i32_0 : i32, i32, i32
  }
  func.func @transform_3(%arg0: i32, %arg1: i32) -> (i32, i32, i32) {
    %c0_i32 = arith.constant 0 : i32
    %c0_i32_0 = arith.constant 0 : i32
    return %arg0, %arg1, %c0_i32 : i32, i32, i32
  }
}

module attributes {stable_mosaic.version = 11 : i64} {
  func.func @_conv_sigmoid_kernel(%arg0: i32, %arg1: i32, %arg2: memref<1x16x144xbf16, #tpu.memory_space<vmem>>, %arg3: memref<144x128xbf16, #tpu.memory_space<vmem>>, %arg4: memref<1x128xf32, #tpu.memory_space<vmem>>, %arg5: memref<1x16x128xf32, #tpu.memory_space<vmem>>) attributes {dimension_semantics = [#tpu.dimension_semantics<parallel>, #tpu.dimension_semantics<parallel>], iteration_bounds = array<i64: 2, 1>, scalar_prefetch = 0 : i64, scratch_operands = 0 : i64, tpu.core_type = #tpu.core_type<tc>, window_params = [{transform_indices = @transform_0, window_bounds = array<i64: 1, 16, 144>}, {pipeline_mode = #tpu.pipeline_mode<synchronous>, transform_indices = @transform_1, window_bounds = array<i64: 144, 128>}, {pipeline_mode = #tpu.pipeline_mode<synchronous>, transform_indices = @transform_2, window_bounds = array<i64: 1, 128>}, {transform_indices = @transform_3, window_bounds = array<i64: 1, 16, 128>}]} {
    %c0 = arith.constant 0 : index
    %c0_0 = arith.constant 0 : index
    %c0_1 = arith.constant 0 : index
    %0 = vector.load %arg2[%c0, %c0_0, %c0_1] : memref<1x16x144xbf16, #tpu.memory_space<vmem>>, vector<1x16x144xbf16>
    %1 = vector.shape_cast %0 : vector<1x16x144xbf16> to vector<16x144xbf16>
    %c0_2 = arith.constant 0 : index
    %c0_3 = arith.constant 0 : index
    %2 = vector.load %arg3[%c0_2, %c0_3] : memref<144x128xbf16, #tpu.memory_space<vmem>>, vector<144x128xbf16>
    %cst = arith.constant dense<0.000000e+00> : vector<16x128xf32>
    %3 = tpu.matmul %1, %2, %cst {dimension_numbers = #tpu.dot_dimension_numbers<[1], [0], [0], [1], [0, 0, 1, 1], [], []>} : vector<16x144xbf16>, vector<144x128xbf16>, vector<16x128xf32> -> vector<16x128xf32>
    %c0_4 = arith.constant 0 : index
    %c0_5 = arith.constant 0 : index
    %4 = vector.load %arg4[%c0_4, %c0_5] : memref<1x128xf32, #tpu.memory_space<vmem>>, vector<1x128xf32>
    %5 = vector.broadcast %4 : vector<1x128xf32> to vector<16x128xf32>
    %6 = arith.addf %3, %5 : vector<16x128xf32>
    %7 = arith.negf %6 : vector<16x128xf32>
    %8 = math.exp %7 : vector<16x128xf32>
    %cst_6 = arith.constant 1.000000e+00 : f32
    %9 = vector.broadcast %cst_6 : f32 to vector<16x128xf32>
    %10 = arith.addf %9, %8 : vector<16x128xf32>
    %11 = arith.divf %9, %10 : vector<16x128xf32>
    %c0_7 = arith.constant 0 : index
    %c0_8 = arith.constant 0 : index
    %c0_9 = arith.constant 0 : index
    %12 = vector.load %arg5[%c0_7, %c0_8, %c0_9] : memref<1x16x128xf32, #tpu.memory_space<vmem>>, vector<1x16x128xf32>
    %13 = vector.shape_cast %12 : vector<1x16x128xf32> to vector<16x128xf32>
    %14 = vector.shape_cast %11 : vector<16x128xf32> to vector<1x16x128xf32>
    tpu.vector_store %arg5[%c0_7, %c0_8, %c0_9], %14 {strides = array<i32>} : memref<1x16x128xf32, #tpu.memory_space<vmem>>, vector<1x16x128xf32>,
    return
  }
  func.func @transform_0(%arg0: i32, %arg1: i32) -> (i32, i32, i32) {
    %c0_i32 = arith.constant 0 : i32
    %c0_i32_0 = arith.constant 0 : i32
    return %arg0, %arg1, %c0_i32 : i32, i32, i32
  }
  func.func @transform_1(%arg0: i32, %arg1: i32) -> (i32, i32) {
    %c0_i32 = arith.constant 0 : i32
    %c0_i32_0 = arith.constant 0 : i32
    %c0_i32_1 = arith.constant 0 : i32
    return %c0_i32, %c0_i32_0 : i32, i32
  }
  func.func @transform_2(%arg0: i32, %arg1: i32) -> (i32, i32) {
    %c0_i32 = arith.constant 0 : i32
    %c0_i32_0 = arith.constant 0 : i32
    %c0_i32_1 = arith.constant 0 : i32
    return %c0_i32, %c0_i32_0 : i32, i32
  }
  func.func @transform_3(%arg0: i32, %arg1: i32) -> (i32, i32, i32) {
    %c0_i32 = arith.constant 0 : i32
    %c0_i32_0 = arith.constant 0 : i32
    return %arg0, %arg1, %c0_i32 : i32, i32, i32
  }
}

</mosaic_0001>

<llo_original>
// kernel: lr_branch_forward.11
$region0: #{lr_branch_forward.11}
  #allocation0 [shape = 'u32[]', space=smem, size = 0x4, offset = 0x4, fixed_abs, tag = 'smem constant byte address 0x4 - core index']
  #allocation1 [shape = 'u32[72,128]{1,0:T(1,128)}', space=vmem, size = 0x9000, scoped, tag = 'internal scratch']
  %s0 = inlined_call_operand.vmem [shape: bf16[4,2], index: 0, kind: input, shape index: {}]
  %s1 = inlined_call_operand.vmem [shape: bf16[2,2,64], index: 1, kind: input, shape index: {}]
  %s2 = inlined_call_operand.vmem [shape: f32[2,4,64], index: 2, kind: output, shape index: {}]
  %s3 = sld [smem:[#allocation0]]
  $region41: #{lr_branch_forward.11} parent=0
    _
  %s5 = ssub.s32 1, %s3
  %s6 = scalar_select 0, %s5, %s3
  loop: start=0, step=1, limit=4
  $region2: #{lr_branch_forward.11} parent=0 // loop_pre_header
    _
  $region3: #{lr_branch_forward.11} parent=0 // loop_header
    %s8 = sphi 0, %s12
    %p9 = scmp.ge.s32.totalorder %s8, 4
    %s16 = sphi 0, %s16
    %s18 = sphi 0, %s16
    %s19 = sphi 0, %s18
    %s33 = sphi 0, %s19
    %s39 = sphi 0, %s41
    %s42 = sphi 0, %s39
    %s43 = sphi 0, %s42
    %s59 = sphi 0, %s43
    %s65 = sphi 0, %s67
    %s68 = sphi 0, %s65
    %s69 = sphi 0, %s68
    %s85 = sphi 0, %s69
  $region4: #{lr_branch_forward.11} parent=0 // loop_header_branch
    %11 = sbr.rel (%p9) target = $region8
  $region5: #{lr_branch_forward.11} parent=0 // loop_body
    %s13 = ssub.s32 %s8, 1
    %s14 = ssub.s32 %s8, 2
    %s15 = sadd.s32 %s8, 1
    %s17 = sadd.s32 %s16, 1
    %p20 = scmp.eq.s32.totalorder %s8, 1
    %p21 = scmp.ne.s32.totalorder %s16, %s18
    %p22 = scmp.eq.s32.totalorder %s8, 0
    %p23 = por %p21, %p22
    %p24 = scmp.ne.s32.totalorder %s16, %s18
    %p25 = scmp.eq.s32.totalorder %s13, 1
    %p26 = por %p24, %p25
    %p27 = scmp.ne.s32.totalorder %s18, %s19
    %p28 = scmp.eq.s32.totalorder %s13, 0
    %p29 = por %p27, %p28
    %p30 = scmp.ne.s32.totalorder %s18, %s19
    %p31 = scmp.eq.s32.totalorder %s14, 1
    %p32 = por %p30, %p31
    %p34 = scmp.ne.s32.totalorder %s19, %s33
    %p35 = scmp.eq.s32.totalorder %s14, 0
    %p36 = por %p34, %p35
    %s37 = ssub.s32 %s8, %s15
    %p38 = scmp.eq.s32.totalorder %s37, 0
    %s40 = sadd.s32 %s39, 1
    %s41 = scalar_select %p38, %s39, %s40
    %p44 = pneg %p38
    %p45 = scmp.eq.s32.totalorder %s8, 1
    %p46 = por %p44, %p45
    %p47 = scmp.ne.s32.totalorder %s39, %s42
    %p48 = scmp.eq.s32.totalorder %s8, 0
    %p49 = por %p47, %p48
    %p50 = scmp.ne.s32.totalorder %s39, %s42
    %p51 = scmp.eq.s32.totalorder %s13, 1
    %p52 = por %p50, %p51
    %p53 = scmp.ne.s32.totalorder %s42, %s43
    %p54 = scmp.eq.s32.totalorder %s13, 0
    %p55 = por %p53, %p54
    %p56 = scmp.ne.s32.totalorder %s42, %s43
    %p57 = scmp.eq.s32.totalorder %s14, 1
    %p58 = por %p56, %p57
    %p60 = scmp.ne.s32.totalorder %s43, %s59
    %p61 = scmp.eq.s32.totalorder %s14, 0
    %p62 = por %p60, %p61
    %s63 = ssub.s32 %s8, %s15
    %p64 = scmp.eq.s32.totalorder %s63, 0
    %s66 = sadd.s32 %s65, 1
    %s67 = scalar_select %p64, %s65, %s66
    %p70 = pneg %p64
    %p71 = scmp.eq.s32.totalorder %s8, 1
    %p72 = por %p70, %p71
    %p73 = scmp.ne.s32.totalorder %s65, %s68
    %p74 = scmp.eq.s32.totalorder %s8, 0
    %p75 = por %p73, %p74
    %p76 = scmp.ne.s32.totalorder %s65, %s68
    %p77 = scmp.eq.s32.totalorder %s13, 1
    %p78 = por %p76, %p77
    %p79 = scmp.ne.s32.totalorder %s68, %s69
    %p80 = scmp.eq.s32.totalorder %s13, 0
    %p81 = por %p79, %p80
    %p82 = scmp.ne.s32.totalorder %s68, %s69
    %p83 = scmp.eq.s32.totalorder %s14, 1
    %p84 = por %p82, %p83
    %p86 = scmp.ne.s32.totalorder %s69, %s85
    %p87 = scmp.eq.s32.totalorder %s14, 0
    %p88 = por %p86, %p87
    %p89 = scmp.le.s32.totalorder 1, %s8
    %p90 = scmp.lt.s32.totalorder %s8, 3
    %p91 = pnand %p89, %p90
    %p92 = pneg %p91
    // Predicated region
    $region9: #{lr_branch_forward.11} parent=5 // pred_check
      _
    $region10: #{lr_branch_forward.11} parent=5 // pred_check_branch
      %94 = sbr.rel (%p91) target = $region12
    $region11: #{lr_branch_forward.11} parent=5 // pred_region
      %s95 = ssub.s32 %s8, 1
      // Predicated region
      $region13: #{lr_branch_forward.11} parent=11 // pred_check
        %p96 = pneg %p29
      $region14: #{lr_branch_forward.11} parent=11 // pred_check_branch
        %98 = sbr.rel (%p96) target = $region16
      $region15: #{lr_branch_forward.11} parent=11 // pred_region
        _
      $region16: #{lr_branch_forward.11} parent=11 // pred_fallthru
        _
    $region12: #{lr_branch_forward.11} parent=5 // pred_fallthru
      _
    %p99 = scmp.lt.s32.totalorder %s8, 2
    // Predicated region
    $region17: #{lr_branch_forward.11} parent=5 // pred_check
      %p100 = pneg %p99
    $region18: #{lr_branch_forward.11} parent=5 // pred_check_branch
      %102 = sbr.rel (%p100) target = $region20
    $region19: #{lr_branch_forward.11} parent=5 // pred_region
      // Predicated region
      $region21: #{lr_branch_forward.11} parent=19 // pred_check
        %p103 = pneg %p49
      $region22: #{lr_branch_forward.11} parent=19 // pred_check_branch
        %105 = sbr.rel (%p103) target = $region24
      $region23: #{lr_branch_forward.11} parent=19 // pred_region
        %p106 = scmp.lt.s32.totalorder %s8, 1
        %s107 = scalar_select %p106, %s8, 1
        %s108 = scalar_lea.vmem %s1, %s107
      $region24: #{lr_branch_forward.11} parent=19 // pred_fallthru
        _
    $region20: #{lr_branch_forward.11} parent=5 // pred_fallthru
      _
    %p109 = scmp.le.s32.totalorder 1, %s8
    %p110 = scmp.lt.s32.totalorder %s8, 3
    %p111 = pnand %p109, %p110
    %p112 = pneg %p111
    // Predicated region
    $region25: #{lr_branch_forward.11} parent=5 // pred_check
      _
    $region26: #{lr_branch_forward.11} parent=5 // pred_check_branch
      %114 = sbr.rel (%p111) target = $region28
    $region27: #{lr_branch_forward.11} parent=5 // pred_region
      %s115 = ssub.s32 %s8, 1
      %p116 = pneg %p29
      %p117 = pneg %p26
      %p118 = scmp.lt.s32.totalorder %s13, 1
      %s119 = scalar_select %p118, %s13, 1
      %s120 = scalar_lea.vmem %s1, %s119
      %p121 = pneg %p55
      %p122 = pneg %p52
      %p123 = pneg %p81
      %p124 = pneg %p78
      %p125 = scmp.lt.s32.totalorder %s13, 1
      %s126 = scalar_select %p125, %s13, 1
      %s127 = smul.addr %s126, 4
      %s128 = scalar_lea.vmem %s2, %s127
      %p129 = scmp.lt.s32.totalorder %s13, 1
      %s130 = scalar_select %p129, %s13, 1
      %s131 = scalar_lea.vmem %s1, %s130
      %p132 = scmp.lt.s32.totalorder %s13, 1
      %s133 = scalar_select %p132, %s13, 1
      %s134 = smul.addr %s133, 4
      %s135 = scalar_lea.vmem %s2, %s134
      %v137 = vld [vmem:[%s0] sm:$0x3]
      %v138 = vld [vmem:[%s131] sm:$0x1]
      %vm139 = vcmask 15360
      %v141 = vsel %vm139, %v137, 0
      %vm143 = vcmask 1040384
      %v145 = vsel %vm143, %v138, 0
      %147 = vmatpush.bf16.msra.mxu0 0
      %148 = vmatpush.bf16.msra.mxu0 0
      %149 = vmatpush.bf16.msra.mxu0 0
      %150 = vmatpush.bf16.msra.mxu0 0
      %151 = vmatpush.bf16.msra.mxu0 0
      %152 = vmatpush.bf16.msra.mxu0 0
      %153 = vmatpush.bf16.msra.mxu0 0
      %154 = vmatpush.bf16.msra.mxu0 %v145
      %155 = vmatmul.bf16.gmra.mxu0 %v141
      %v156 = vpop.f32.mrf.mxu0
      %v157 = vadd.f32 0.0, %v156
      %v158 = vpop.f32.mrf.mxu0
      %159 = vdwg.mxu0
      %vm160 = vcmask 519168
      %161 = vst.msk [vmem:[%s135] sm:$0xf] %vm160, %v157
      %p162 = scmp.lt.s32.totalorder %s13, 1
      %s163 = scalar_select %p162, %s13, 1
      %s164 = smul.addr %s163, 4
      %s165 = scalar_lea.vmem %s2, %s164
      // Predicated region
      $region29: #{lr_branch_forward.11} parent=27 // pred_check
        %p166 = pneg %p78
      $region30: #{lr_branch_forward.11} parent=27 // pred_check_branch
        %168 = sbr.rel (%p166) target = $region32
      $region31: #{lr_branch_forward.11} parent=27 // pred_region
        _
      $region32: #{lr_branch_forward.11} parent=27 // pred_fallthru
        _
    $region28: #{lr_branch_forward.11} parent=5 // pred_fallthru
      _
    %p169 = scmp.le.s32.totalorder 2, %s8
    // Predicated region
    $region33: #{lr_branch_forward.11} parent=5 // pred_check
      %p170 = pneg %p169
    $region34: #{lr_branch_forward.11} parent=5 // pred_check_branch
      %172 = sbr.rel (%p170) target = $region36
    $region35: #{lr_branch_forward.11} parent=5 // pred_region
      %s173 = ssub.s32 %s8, 2
      // Predicated region
      $region37: #{lr_branch_forward.11} parent=35 // pred_check
        %p174 = pneg %p84
      $region38: #{lr_branch_forward.11} parent=35 // pred_check_branch
        %176 = sbr.rel (%p174) target = $region40
      $region39: #{lr_branch_forward.11} parent=35 // pred_region
        %p177 = scmp.lt.s32.totalorder %s14, 1
        %s178 = scalar_select %p177, %s14, 1
        %s179 = smul.addr %s178, 4
        %s180 = scalar_lea.vmem %s2, %s179
      $region40: #{lr_branch_forward.11} parent=35 // pred_fallthru
        _
    $region36: #{lr_branch_forward.11} parent=5 // pred_fallthru
      _
  $region6: #{lr_branch_forward.11} parent=0 // loop_footer
    %s12 = sadd.s32 1, %s8
  $region7: #{lr_branch_forward.11} parent=0 // loop_footer_branch
    %7 = sbr.rel target = $region3
  $region8: #{lr_branch_forward.11} parent=0 // loop_exit
    _

// kernel: lr_branch_forward.10
$region0: #{lr_branch_forward.10}
  #allocation0 [shape = 'u32[]', space=smem, size = 0x4, offset = 0x4, fixed_abs, tag = 'smem constant byte address 0x4 - core index']
  #allocation1 [shape = 'u32[72,128]{1,0:T(1,128)}', space=vmem, size = 0x9000, scoped, tag = 'internal scratch']
  %s0 = inlined_call_operand.vmem [shape: f32[2,4,32], index: 0, kind: input, shape index: {}]
  %s1 = inlined_call_operand.vmem [shape: bf16[32,8], index: 1, kind: input, shape index: {}]
  %s2 = inlined_call_operand.vmem [shape: bf16[8,32], index: 2, kind: input, shape index: {}]
  %s3 = inlined_call_operand.vmem [shape: f32[2,4,32], index: 3, kind: output, shape index: {}]
  %s4 = sld [smem:[#allocation0]]
  $region22: #{lr_branch_forward.10} parent=0
    _
  %s6 = ssub.s32 1, %s4
  %s7 = scalar_select 0, %s6, %s4
  // Predicated region
  $region2: #{lr_branch_forward.10} parent=0 // pred_check
    _
  $region3: #{lr_branch_forward.10} parent=0 // pred_check_branch
    %9 = sbr.rel (0) target = $region5
  $region4: #{lr_branch_forward.10} parent=0 // pred_region
    _
  $region5: #{lr_branch_forward.10} parent=0 // pred_fallthru
    _
  // Predicated region
  $region6: #{lr_branch_forward.10} parent=0 // pred_check
    _
  $region7: #{lr_branch_forward.10} parent=0 // pred_check_branch
    %11 = sbr.rel (0) target = $region9
  $region8: #{lr_branch_forward.10} parent=0 // pred_region
    _
  $region9: #{lr_branch_forward.10} parent=0 // pred_fallthru
    _
  // Predicated region
  $region10: #{lr_branch_forward.10} parent=0 // pred_check
    _
  $region11: #{lr_branch_forward.10} parent=0 // pred_check_branch
    %13 = sbr.rel (0) target = $region13
  $region12: #{lr_branch_forward.10} parent=0 // pred_region
    _
  $region13: #{lr_branch_forward.10} parent=0 // pred_fallthru
    _
  %v15 = vld [vmem:[%s0] sm:$0xf]
  %v16 = vld [vmem:[%s0 + $0x4] sm:$0xf]
  %vm17 = vcmask 257024
  %v18 = vsel %vm17, %v15, 0.0
  %v19 = vrot.slane %v18, 4
  %v20 = vadd.f32 %v18, %v19
  %v21 = vrot.slane %v20, 2
  %v22 = vadd.f32 %v20, %v21
  %v23 = vrot.slane %v22, 1
  %v24 = vadd.f32 %v22, %v23
  %v25 = vsel %vm17, %v16, 0.0
  %v26 = vrot.slane %v25, 4
  %v27 = vadd.f32 %v25, %v26
  %v28 = vrot.slane %v27, 2
  %v29 = vadd.f32 %v27, %v28
  %v30 = vrot.slane %v29, 1
  %v31 = vadd.f32 %v29, %v30
  %v32 = vrcp.pop 4.0
  %v33 = vmul.f32 4.0, %v32
  %v34 = vsub.f32 1.0, %v33
  %v35 = vmul.f32 %v32, %v34
  %v36 = vadd.f32 %v32, %v35
  %vm37 = vweird.f32 %v32
  %v38 = vsel %vm37, %v32, %v36
  %v39 = vmul.f32 %v24, %v38
  %v40 = vmul.f32 %v31, %v38
  %v41 = vpack.c.bf16 %v39, %v39
  %v42 = vpack.c.bf16 %v40, %v40
  %v43 = vld [vmem:[%s1] sm:$0xf]
  %v44 = vld [vmem:[%s1 + $0x4] sm:$0xf]
  %v45 = vld [vmem:[%s1 + $0x8] sm:$0xf]
  %v46 = vld [vmem:[%s1 + $0xc] sm:$0xf]
  %v49 = vunpack.c.l.b16 %v41
  %v50 = vunpack.c.l.b16 %v42
  %vm51 = vcmask 1041409
  %v52 = vsel %vm51, %v50, %v49
  %v53 = vpack.c.b16 %v52, %v52
  %v58 = vunpack.c.l.b16 %v43
  %v59 = vunpack.c.l.b16 %v44
  %v60 = vunpack.c.l.b16 %v45
  %v61 = vunpack.c.l.b16 %v46
  %v62 = vpack.c.b16 %v59, %v58
  %v63 = vpack.c.b16 %v61, %v60
  %vm66 = vcmask 261120
  %v68 = vsel %vm66, %v53, 0
  %70 = vmatpush.bf16.msra.mxu0 0
  %71 = vmatpush.bf16.msra.mxu0 0
  %72 = vmatpush.bf16.msra.mxu0 0
  %73 = vmatpush.bf16.msra.mxu0 0
  %74 = vmatpush.bf16.msra.mxu0 0
  %75 = vmatpush.bf16.msra.mxu0 0
  %76 = vmatpush.bf16.msra.mxu0 %v63
  %77 = vmatpush.bf16.msra.mxu0 %v62
  %78 = vmatmul.bf16.gmra.mxu0 %v68
  %v79 = vpop.f32.mrf.mxu0
  %v80 = vadd.f32 0.0, %v79
  %v81 = vpop.f32.mrf.mxu0
  %82 = vdwg.mxu0
  %v83 = vmax.f32 %v80, 0.0
  %v84 = vpack.c.bf16 %v83, %v83
  %v85 = vld [vmem:[%s2] sm:$0xf]
  %vm86 = vcmask 64512
  %v88 = vsel %vm86, %v84, 0
  %vm90 = vcmask 1043456
  %v92 = vsel %vm90, %v85, 0
  %94 = vmatpush.bf16.msra.mxu0 0
  %95 = vmatpush.bf16.msra.mxu0 0
  %96 = vmatpush.bf16.msra.mxu0 0
  %97 = vmatpush.bf16.msra.mxu0 0
  %98 = vmatpush.bf16.msra.mxu0 0
  %99 = vmatpush.bf16.msra.mxu0 0
  %100 = vmatpush.bf16.msra.mxu0 0
  %101 = vmatpush.bf16.msra.mxu0 %v92
  %102 = vmatmul.bf16.gmra.mxu0 %v88
  %v103 = vpop.f32.mrf.mxu0
  %v104 = vadd.f32 0.0, %v103
  %v105 = vpop.f32.mrf.mxu0
  %106 = vdwg.mxu0
  %v107 = vxor.u32 %v104, 2147483648
  %v108 = vmul.f32 %v107, 1.442695
  %v109 = vpow.pop %v108
  %v110 = vadd.f32 %v109, 1.0
  %v111 = vrcp.pop %v110
  %v112 = vmul.f32 %v110, %v111
  %v113 = vsub.f32 1.0, %v112
  %v114 = vmul.f32 %v111, %v113
  %v115 = vadd.f32 %v111, %v114
  %vm116 = vweird.f32 %v110
  %vm117 = vweird.f32 %v111
  %vm118 = vmor %vm116, %vm117
  %v119 = vsel %vm118, %v111, %v115
  %v120 = vand.u32 2147483647, %v110
  %vm121 = vcmp.eq.f32.partialorder %v120, 8.507059e+37
  %v122 = vand.u32 %v110, 2147483648
  %v123 = vor.u32 1.1754944e-38, %v122
  %v124 = vsel %vm121, %v123, %v119
  %v125 = vmul.f32 1.0, %v124
  %v127 = vrot.slane %v125, 1
  %v128 = vperm.slane %v125, 0
  %v129 = vperm.slane %v127, 0
  %v132 = vmul.f32 %v15, %v128
  %v133 = vmul.f32 %v16, %v129
  %134 = vst.msk [vmem:[%s3] sm:$0xf] %vm17, %v132
  %135 = vst.msk [vmem:[%s3 + $0x4] sm:$0xf] %vm17, %v133
  // Predicated region
  $region14: #{lr_branch_forward.10} parent=0 // pred_check
    _
  $region15: #{lr_branch_forward.10} parent=0 // pred_check_branch
    %137 = sbr.rel (0) target = $region17
  $region16: #{lr_branch_forward.10} parent=0 // pred_region
    _
  $region17: #{lr_branch_forward.10} parent=0 // pred_fallthru
    _
  // Predicated region
  $region18: #{lr_branch_forward.10} parent=0 // pred_check
    _
  $region19: #{lr_branch_forward.10} parent=0 // pred_check_branch
    %139 = sbr.rel (0) target = $region21
  $region20: #{lr_branch_forward.10} parent=0 // pred_region
    _
  $region21: #{lr_branch_forward.10} parent=0 // pred_fallthru
    _

// kernel: lr_branch_forward.12
$region0: #{lr_branch_forward.12}
  #allocation0 [shape = 'u32[]', space=smem, size = 0x4, offset = 0x4, fixed_abs, tag = 'smem constant byte address 0x4 - core index']
  #allocation1 [shape = 'u32[72,128]{1,0:T(1,128)}', space=vmem, size = 0x9000, scoped, tag = 'internal scratch']
  %s0 = inlined_call_operand.vmem [shape: bf16[4,2], index: 0, kind: input, shape index: {}]
  %s1 = inlined_call_operand.vmem [shape: bf16[2,4,2,32], index: 1, kind: input, shape index: {}]
  %s2 = inlined_call_operand.vmem [shape: f32[2,4,4,32], index: 2, kind: output, shape index: {}]
  %s3 = sld [smem:[#allocation0]]
  $region41: #{lr_branch_forward.12} parent=0
    _
  %s5 = ssub.s32 1, %s3
  %s6 = scalar_select 0, %s5, %s3
  loop: start=0, step=1, limit=4
  $region2: #{lr_branch_forward.12} parent=0 // loop_pre_header
    _
  $region3: #{lr_branch_forward.12} parent=0 // loop_header
    %s8 = sphi 0, %s12
    %p9 = scmp.ge.s32.totalorder %s8, 4
    %s16 = sphi 0, %s16
    %s18 = sphi 0, %s16
    %s19 = sphi 0, %s18
    %s33 = sphi 0, %s19
    %s39 = sphi 0, %s41
    %s42 = sphi 0, %s39
    %s43 = sphi 0, %s42
    %s59 = sphi 0, %s43
    %s65 = sphi 0, %s67
    %s68 = sphi 0, %s65
    %s69 = sphi 0, %s68
    %s85 = sphi 0, %s69
  $region4: #{lr_branch_forward.12} parent=0 // loop_header_branch
    %11 = sbr.rel (%p9) target = $region8
  $region5: #{lr_branch_forward.12} parent=0 // loop_body
    %s13 = ssub.s32 %s8, 1
    %s14 = ssub.s32 %s8, 2
    %s15 = sadd.s32 %s8, 1
    %s17 = sadd.s32 %s16, 1
    %p20 = scmp.eq.s32.totalorder %s8, 1
    %p21 = scmp.ne.s32.totalorder %s16, %s18
    %p22 = scmp.eq.s32.totalorder %s8, 0
    %p23 = por %p21, %p22
    %p24 = scmp.ne.s32.totalorder %s16, %s18
    %p25 = scmp.eq.s32.totalorder %s13, 1
    %p26 = por %p24, %p25
    %p27 = scmp.ne.s32.totalorder %s18, %s19
    %p28 = scmp.eq.s32.totalorder %s13, 0
    %p29 = por %p27, %p28
    %p30 = scmp.ne.s32.totalorder %s18, %s19
    %p31 = scmp.eq.s32.totalorder %s14, 1
    %p32 = por %p30, %p31
    %p34 = scmp.ne.s32.totalorder %s19, %s33
    %p35 = scmp.eq.s32.totalorder %s14, 0
    %p36 = por %p34, %p35
    %s37 = ssub.s32 %s8, %s15
    %p38 = scmp.eq.s32.totalorder %s37, 0
    %s40 = sadd.s32 %s39, 1
    %s41 = scalar_select %p38, %s39, %s40
    %p44 = pneg %p38
    %p45 = scmp.eq.s32.totalorder %s8, 1
    %p46 = por %p44, %p45
    %p47 = scmp.ne.s32.totalorder %s39, %s42
    %p48 = scmp.eq.s32.totalorder %s8, 0
    %p49 = por %p47, %p48
    %p50 = scmp.ne.s32.totalorder %s39, %s42
    %p51 = scmp.eq.s32.totalorder %s13, 1
    %p52 = por %p50, %p51
    %p53 = scmp.ne.s32.totalorder %s42, %s43
    %p54 = scmp.eq.s32.totalorder %s13, 0
    %p55 = por %p53, %p54
    %p56 = scmp.ne.s32.totalorder %s42, %s43
    %p57 = scmp.eq.s32.totalorder %s14, 1
    %p58 = por %p56, %p57
    %p60 = scmp.ne.s32.totalorder %s43, %s59
    %p61 = scmp.eq.s32.totalorder %s14, 0
    %p62 = por %p60, %p61
    %s63 = ssub.s32 %s8, %s15
    %p64 = scmp.eq.s32.totalorder %s63, 0
    %s66 = sadd.s32 %s65, 1
    %s67 = scalar_select %p64, %s65, %s66
    %p70 = pneg %p64
    %p71 = scmp.eq.s32.totalorder %s8, 1
    %p72 = por %p70, %p71
    %p73 = scmp.ne.s32.totalorder %s65, %s68
    %p74 = scmp.eq.s32.totalorder %s8, 0
    %p75 = por %p73, %p74
    %p76 = scmp.ne.s32.totalorder %s65, %s68
    %p77 = scmp.eq.s32.totalorder %s13, 1
    %p78 = por %p76, %p77
    %p79 = scmp.ne.s32.totalorder %s68, %s69
    %p80 = scmp.eq.s32.totalorder %s13, 0
    %p81 = por %p79, %p80
    %p82 = scmp.ne.s32.totalorder %s68, %s69
    %p83 = scmp.eq.s32.totalorder %s14, 1
    %p84 = por %p82, %p83
    %p86 = scmp.ne.s32.totalorder %s69, %s85
    %p87 = scmp.eq.s32.totalorder %s14, 0
    %p88 = por %p86, %p87
    %p89 = scmp.le.s32.totalorder 1, %s8
    %p90 = scmp.lt.s32.totalorder %s8, 3
    %p91 = pnand %p89, %p90
    %p92 = pneg %p91
    // Predicated region
    $region9: #{lr_branch_forward.12} parent=5 // pred_check
      _
    $region10: #{lr_branch_forward.12} parent=5 // pred_check_branch
      %94 = sbr.rel (%p91) target = $region12
    $region11: #{lr_branch_forward.12} parent=5 // pred_region
      %s95 = ssub.s32 %s8, 1
      // Predicated region
      $region13: #{lr_branch_forward.12} parent=11 // pred_check
        %p96 = pneg %p29
      $region14: #{lr_branch_forward.12} parent=11 // pred_check_branch
        %98 = sbr.rel (%p96) target = $region16
      $region15: #{lr_branch_forward.12} parent=11 // pred_region
        _
      $region16: #{lr_branch_forward.12} parent=11 // pred_fallthru
        _
    $region12: #{lr_branch_forward.12} parent=5 // pred_fallthru
      _
    %p99 = scmp.lt.s32.totalorder %s8, 2
    // Predicated region
    $region17: #{lr_branch_forward.12} parent=5 // pred_check
      %p100 = pneg %p99
    $region18: #{lr_branch_forward.12} parent=5 // pred_check_branch
      %102 = sbr.rel (%p100) target = $region20
    $region19: #{lr_branch_forward.12} parent=5 // pred_region
      // Predicated region
      $region21: #{lr_branch_forward.12} parent=19 // pred_check
        %p103 = pneg %p49
      $region22: #{lr_branch_forward.12} parent=19 // pred_check_branch
        %105 = sbr.rel (%p103) target = $region24
      $region23: #{lr_branch_forward.12} parent=19 // pred_region
        %p106 = scmp.lt.s32.totalorder %s8, 1
        %s107 = scalar_select %p106, %s8, 1
        %s108 = smul.addr %s107, 4
        %s109 = scalar_lea.vmem %s1, %s108
      $region24: #{lr_branch_forward.12} parent=19 // pred_fallthru
        _
    $region20: #{lr_branch_forward.12} parent=5 // pred_fallthru
      _
    %p110 = scmp.le.s32.totalorder 1, %s8
    %p111 = scmp.lt.s32.totalorder %s8, 3
    %p112 = pnand %p110, %p111
    %p113 = pneg %p112
    // Predicated region
    $region25: #{lr_branch_forward.12} parent=5 // pred_check
      _
    $region26: #{lr_branch_forward.12} parent=5 // pred_check_branch
      %115 = sbr.rel (%p112) target = $region28
    $region27: #{lr_branch_forward.12} parent=5 // pred_region
      %s116 = ssub.s32 %s8, 1
      %p117 = pneg %p29
      %p118 = pneg %p26
      %p119 = scmp.lt.s32.totalorder %s13, 1
      %s120 = scalar_select %p119, %s13, 1
      %s121 = smul.addr %s120, 4
      %s122 = scalar_lea.vmem %s1, %s121
      %p123 = pneg %p55
      %p124 = pneg %p52
      %p125 = pneg %p81
      %p126 = pneg %p78
      %p127 = scmp.lt.s32.totalorder %s13, 1
      %s128 = scalar_select %p127, %s13, 1
      %s129 = smul.addr %s128, 4
      %s130 = smul.addr %s129, 4
      %s131 = scalar_lea.vmem %s2, %s130
      %p132 = scmp.lt.s32.totalorder %s13, 1
      %s133 = scalar_select %p132, %s13, 1
      %s134 = smul.addr %s133, 4
      %s135 = scalar_lea.vmem %s1, %s134
      %p136 = scmp.lt.s32.totalorder %s13, 1
      %s137 = scalar_select %p136, %s13, 1
      %s138 = smul.addr %s137, 4
      %s139 = smul.addr %s138, 4
      %s140 = scalar_lea.vmem %s2, %s139
      %v142 = vld [vmem:[%s0] sm:$0x3]
      %v143 = vld [vmem:[%s135] sm:$0x1]
      %v144 = vld [vmem:[%s135 + $0x1] sm:$0x1]
      %v145 = vld [vmem:[%s135 + $0x2] sm:$0x1]
      %v146 = vld [vmem:[%s135 + $0x3] sm:$0x1]
      %vm147 = vcmask 15360
      %v149 = vsel %vm147, %v142, 0
      %vm151 = vcmask 1040384
      %v153 = vsel %vm151, %v143, 0
      %155 = vmatpush.bf16.msra.mxu0 0
      %156 = vmatpush.bf16.msra.mxu0 0
      %157 = vmatpush.bf16.msra.mxu0 0
      %158 = vmatpush.bf16.msra.mxu0 0
      %159 = vmatpush.bf16.msra.mxu0 0
      %160 = vmatpush.bf16.msra.mxu0 0
      %161 = vmatpush.bf16.msra.mxu0 0
      %162 = vmatpush.bf16.msra.mxu0 %v153
      %163 = vmatmul.bf16.gmra.mxu0 %v149
      %v164 = vpop.f32.mrf.mxu0
      %v165 = vadd.f32 0.0, %v164
      %v166 = vpop.f32.mrf.mxu0
      %167 = vdwg.mxu0
      %v169 = vsel %vm151, %v144, 0
      %171 = vmatpush.bf16.msra.mxu0 0
      %172 = vmatpush.bf16.msra.mxu0 0
      %173 = vmatpush.bf16.msra.mxu0 0
      %174 = vmatpush.bf16.msra.mxu0 0
      %175 = vmatpush.bf16.msra.mxu0 0
      %176 = vmatpush.bf16.msra.mxu0 0
      %177 = vmatpush.bf16.msra.mxu0 0
      %178 = vmatpush.bf16.msra.mxu0 %v169
      %179 = vmatmul.bf16.gmra.mxu0 %v149
      %v180 = vpop.f32.mrf.mxu0
      %v181 = vadd.f32 0.0, %v180
      %v182 = vpop.f32.mrf.mxu0
      %183 = vdwg.mxu0
      %v185 = vsel %vm151, %v145, 0
      %187 = vmatpush.bf16.msra.mxu0 0
      %188 = vmatpush.bf16.msra.mxu0 0
      %189 = vmatpush.bf16.msra.mxu0 0
      %190 = vmatpush.bf16.msra.mxu0 0
      %191 = vmatpush.bf16.msra.mxu0 0
      %192 = vmatpush.bf16.msra.mxu0 0
      %193 = vmatpush.bf16.msra.mxu0 0
      %194 = vmatpush.bf16.msra.mxu0 %v185
      %195 = vmatmul.bf16.gmra.mxu0 %v149
      %v196 = vpop.f32.mrf.mxu0
      %v197 = vadd.f32 0.0, %v196
      %v198 = vpop.f32.mrf.mxu0
      %199 = vdwg.mxu0
      %v201 = vsel %vm151, %v146, 0
      %203 = vmatpush.bf16.msra.mxu0 0
      %204 = vmatpush.bf16.msra.mxu0 0
      %205 = vmatpush.bf16.msra.mxu0 0
      %206 = vmatpush.bf16.msra.mxu0 0
      %207 = vmatpush.bf16.msra.mxu0 0
      %208 = vmatpush.bf16.msra.mxu0 0
      %209 = vmatpush.bf16.msra.mxu0 0
      %210 = vmatpush.bf16.msra.mxu0 %v201
      %211 = vmatmul.bf16.gmra.mxu0 %v149
      %v212 = vpop.f32.mrf.mxu0
      %v213 = vadd.f32 0.0, %v212
      %v214 = vpop.f32.mrf.mxu0
      %215 = vdwg.mxu0
      %vm216 = vcmask 257024
      %217 = vst.msk [vmem:[%s140] sm:$0xf] %vm216, %v165
      %218 = vst.msk [vmem:[%s140 + $0x4] sm:$0xf] %vm216, %v181
      %219 = vst.msk [vmem:[%s140 + $0x8] sm:$0xf] %vm216, %v197
      %220 = vst.msk [vmem:[%s140 + $0xc] sm:$0xf] %vm216, %v213
      %p221 = scmp.lt.s32.totalorder %s13, 1
      %s222 = scalar_select %p221, %s13, 1
      %s223 = smul.addr %s222, 4
      %s224 = smul.addr %s223, 4
      %s225 = scalar_lea.vmem %s2, %s224
      // Predicated region
      $region29: #{lr_branch_forward.12} parent=27 // pred_check
        %p226 = pneg %p78
      $region30: #{lr_branch_forward.12} parent=27 // pred_check_branch
        %228 = sbr.rel (%p226) target = $region32
      $region31: #{lr_branch_forward.12} parent=27 // pred_region
        _
      $region32: #{lr_branch_forward.12} parent=27 // pred_fallthru
        _
    $region28: #{lr_branch_forward.12} parent=5 // pred_fallthru
      _
    %p229 = scmp.le.s32.totalorder 2, %s8
    // Predicated region
    $region33: #{lr_branch_forward.12} parent=5 // pred_check
      %p230 = pneg %p229
    $region34: #{lr_branch_forward.12} parent=5 // pred_check_branch
      %232 = sbr.rel (%p230) target = $region36
    $region35: #{lr_branch_forward.12} parent=5 // pred_region
      %s233 = ssub.s32 %s8, 2
      // Predicated region
      $region37: #{lr_branch_forward.12} parent=35 // pred_check
        %p234 = pneg %p84
      $region38: #{lr_branch_forward.12} parent=35 // pred_check_branch
        %236 = sbr.rel (%p234) target = $region40
      $region39: #{lr_branch_forward.12} parent=35 // pred_region
        %p237 = scmp.lt.s32.totalorder %s14, 1
        %s238 = scalar_select %p237, %s14, 1
        %s239 = smul.addr %s238, 4
        %s240 = smul.addr %s239, 4
        %s241 = scalar_lea.vmem %s2, %s240
      $region40: #{lr_branch_forward.12} parent=35 // pred_fallthru
        _
    $region36: #{lr_branch_forward.12} parent=5 // pred_fallthru
      _
  $region6: #{lr_branch_forward.12} parent=0 // loop_footer
    %s12 = sadd.s32 1, %s8
  $region7: #{lr_branch_forward.12} parent=0 // loop_footer_branch
    %7 = sbr.rel target = $region3
  $region8: #{lr_branch_forward.12} parent=0 // loop_exit
    _

// kernel: lr_branch_forward.14
$region0: #{lr_branch_forward.14}
  #allocation0 [shape = 'u32[]', space=smem, size = 0x4, offset = 0x4, fixed_abs, tag = 'smem constant byte address 0x4 - core index']
  #allocation1 [shape = 'u32[72,128]{1,0:T(1,128)}', space=vmem, size = 0x9000, scoped, tag = 'internal scratch']
  %s0 = inlined_call_operand.vmem [shape: f32[2,16,128], index: 0, kind: input, shape index: {}]
  %s1 = inlined_call_operand.vmem [shape: f32[2,1,128], index: 1, kind: input, shape index: {}]
  %s2 = inlined_call_operand.vmem [shape: f32[2,1,128], index: 2, kind: input, shape index: {}]
  %s3 = inlined_call_operand.vmem [shape: f32[2,16,128], index: 3, kind: output, shape index: {}]
  %s4 = sld [smem:[#allocation0]]
  $region45: #{lr_branch_forward.14} parent=0
    _
  %s6 = ssub.s32 1, %s4
  %s7 = scalar_select 0, %s6, %s4
  loop: start=0, step=1, limit=4
  $region2: #{lr_branch_forward.14} parent=0 // loop_pre_header
    _
  $region3: #{lr_branch_forward.14} parent=0 // loop_header
    %s9 = sphi 0, %s13
    %p10 = scmp.ge.s32.totalorder %s9, 4
    %s16 = sphi 0, %s28
    %s17 = sphi 0, %s24
    %s18 = sphi 0, %s16
    %s19 = sphi 0, %s17
    %s20 = sphi 0, %s18
    %s21 = sphi 0, %s19
    %s33 = sphi 0, %s35
    %s36 = sphi 0, %s33
    %s37 = sphi 0, %s36
    %s53 = sphi 0, %s37
    %s59 = sphi 0, %s61
    %s62 = sphi 0, %s59
    %s63 = sphi 0, %s62
    %s79 = sphi 0, %s63
    %s85 = sphi 0, %s87
    %s88 = sphi 0, %s85
    %s89 = sphi 0, %s88
    %s105 = sphi 0, %s89
    %s113 = sphi 0, %s115
    %s116 = sphi 0, %s113
    %s117 = sphi 0, %s116
    %s133 = sphi 0, %s117
  $region4: #{lr_branch_forward.14} parent=0 // loop_header_branch
    %12 = sbr.rel (%p10) target = $region8
  $region5: #{lr_branch_forward.14} parent=0 // loop_body
    %s14 = ssub.s32 %s9, 1
    %s15 = ssub.s32 %s9, 2
    %s22 = sadd.s32 1, %s17
    %p23 = scmp.ge.s32.totalorder %s22, 1
    %s24 = scalar_select %p23, 0, %s22
    %s25 = sadd.s32 1, %s16
    %s26 = scalar_select %p23, %s25, %s16
    %p27 = scmp.ge.s32.totalorder %s26, 2
    %s28 = scalar_select %p27, 0, %s26
    %s29 = ssub.s32 %s16, %s28
    %s30 = ssub.s32 %s17, %s24
    %s31 = sor.u32 %s29, %s30
    %p32 = scmp.eq.s32.totalorder %s31, 0
    %s34 = sadd.s32 %s33, 1
    %s35 = scalar_select %p32, %s33, %s34
    %p38 = pneg %p32
    %p39 = scmp.eq.s32.totalorder %s9, 1
    %p40 = por %p38, %p39
    %p41 = scmp.ne.s32.totalorder %s33, %s36
    %p42 = scmp.eq.s32.totalorder %s9, 0
    %p43 = por %p41, %p42
    %p44 = scmp.ne.s32.totalorder %s33, %s36
    %p45 = scmp.eq.s32.totalorder %s14, 1
    %p46 = por %p44, %p45
    %p47 = scmp.ne.s32.totalorder %s36, %s37
    %p48 = scmp.eq.s32.totalorder %s14, 0
    %p49 = por %p47, %p48
    %p50 = scmp.ne.s32.totalorder %s36, %s37
    %p51 = scmp.eq.s32.totalorder %s15, 1
    %p52 = por %p50, %p51
    %p54 = scmp.ne.s32.totalorder %s37, %s53
    %p55 = scmp.eq.s32.totalorder %s15, 0
    %p56 = por %p54, %p55
    %s57 = ssub.s32 %s16, %s28
    %p58 = scmp.eq.s32.totalorder %s57, 0
    %s60 = sadd.s32 %s59, 1
    %s61 = scalar_select %p58, %s59, %s60
    %p64 = pneg %p58
    %p65 = scmp.eq.s32.totalorder %s9, 1
    %p66 = por %p64, %p65
    %p67 = scmp.ne.s32.totalorder %s59, %s62
    %p68 = scmp.eq.s32.totalorder %s9, 0
    %p69 = por %p67, %p68
    %p70 = scmp.ne.s32.totalorder %s59, %s62
    %p71 = scmp.eq.s32.totalorder %s14, 1
    %p72 = por %p70, %p71
    %p73 = scmp.ne.s32.totalorder %s62, %s63
    %p74 = scmp.eq.s32.totalorder %s14, 0
    %p75 = por %p73, %p74
    %p76 = scmp.ne.s32.totalorder %s62, %s63
    %p77 = scmp.eq.s32.totalorder %s15, 1
    %p78 = por %p76, %p77
    %p80 = scmp.ne.s32.totalorder %s63, %s79
    %p81 = scmp.eq.s32.totalorder %s15, 0
    %p82 = por %p80, %p81
    %s83 = ssub.s32 %s16, %s28
    %p84 = scmp.eq.s32.totalorder %s83, 0
    %s86 = sadd.s32 %s85, 1
    %s87 = scalar_select %p84, %s85, %s86
    %p90 = pneg %p84
    %p91 = scmp.eq.s32.totalorder %s9, 1
    %p92 = por %p90, %p91
    %p93 = scmp.ne.s32.totalorder %s85, %s88
    %p94 = scmp.eq.s32.totalorder %s9, 0
    %p95 = por %p93, %p94
    %p96 = scmp.ne.s32.totalorder %s85, %s88
    %p97 = scmp.eq.s32.totalorder %s14, 1
    %p98 = por %p96, %p97
    %p99 = scmp.ne.s32.totalorder %s88, %s89
    %p100 = scmp.eq.s32.totalorder %s14, 0
    %p101 = por %p99, %p100
    %p102 = scmp.ne.s32.totalorder %s88, %s89
    %p103 = scmp.eq.s32.totalorder %s15, 1
    %p104 = por %p102, %p103
    %p106 = scmp.ne.s32.totalorder %s89, %s105
    %p107 = scmp.eq.s32.totalorder %s15, 0
    %p108 = por %p106, %p107
    %s109 = ssub.s32 %s16, %s28
    %s110 = ssub.s32 %s17, %s24
    %s111 = sor.u32 %s109, %s110
    %p112 = scmp.eq.s32.totalorder %s111, 0
    %s114 = sadd.s32 %s113, 1
    %s115 = scalar_select %p112, %s113, %s114
    %p118 = pneg %p112
    %p119 = scmp.eq.s32.totalorder %s9, 1
    %p120 = por %p118, %p119
    %p121 = scmp.ne.s32.totalorder %s113, %s116
    %p122 = scmp.eq.s32.totalorder %s9, 0
    %p123 = por %p121, %p122
    %p124 = scmp.ne.s32.totalorder %s113, %s116
    %p125 = scmp.eq.s32.totalorder %s14, 1
    %p126 = por %p124, %p125
    %p127 = scmp.ne.s32.totalorder %s116, %s117
    %p128 = scmp.eq.s32.totalorder %s14, 0
    %p129 = por %p127, %p128
    %p130 = scmp.ne.s32.totalorder %s116, %s117
    %p131 = scmp.eq.s32.totalorder %s15, 1
    %p132 = por %p130, %p131
    %p134 = scmp.ne.s32.totalorder %s117, %s133
    %p135 = scmp.eq.s32.totalorder %s15, 0
    %p136 = por %p134, %p135
    %p137 = scmp.le.s32.totalorder 1, %s9
    %p138 = scmp.lt.s32.totalorder %s9, 3
    %p139 = pnand %p137, %p138
    %p140 = pneg %p139
    // Predicated region
    $region9: #{lr_branch_forward.14} parent=5 // pred_check
      _
    $region10: #{lr_branch_forward.14} parent=5 // pred_check_branch
      %142 = sbr.rel (%p139) target = $region12
    $region11: #{lr_branch_forward.14} parent=5 // pred_region
      %s143 = ssub.s32 %s9, 1
    $region12: #{lr_branch_forward.14} parent=5 // pred_fallthru
      _
    %p144 = scmp.lt.s32.totalorder %s9, 2
    // Predicated region
    $region13: #{lr_branch_forward.14} parent=5 // pred_check
      %p145 = pneg %p144
    $region14: #{lr_branch_forward.14} parent=5 // pred_check_branch
      %147 = sbr.rel (%p145) target = $region16
    $region15: #{lr_branch_forward.14} parent=5 // pred_region
      // Predicated region
      $region17: #{lr_branch_forward.14} parent=15 // pred_check
        %p148 = pneg %p43
      $region18: #{lr_branch_forward.14} parent=15 // pred_check_branch
        %150 = sbr.rel (%p148) target = $region20
      $region19: #{lr_branch_forward.14} parent=15 // pred_region
        %s151 = smul.u32 2, %s17
        %p152 = scmp.lt.s32.totalorder %s16, 1
        %s153 = scalar_select %p152, %s16, 1
        %p154 = scmp.lt.s32.totalorder %s151, 1
        %s155 = scalar_select %p154, %s151, 1
        %s156 = smul.addr %s153, 2
        %s157 = sadd.s32 %s155, %s156
        %s158 = smul.addr %s157, 8
        %s159 = scalar_lea.vmem %s0, %s158
        %s160 = smul.u32 2, %s17
      $region20: #{lr_branch_forward.14} parent=15 // pred_fallthru
        _
      // Predicated region
      $region21: #{lr_branch_forward.14} parent=15 // pred_check
        %p161 = pneg %p69
      $region22: #{lr_branch_forward.14} parent=15 // pred_check_branch
        %163 = sbr.rel (%p161) target = $region24
      $region23: #{lr_branch_forward.14} parent=15 // pred_region
        %p164 = scmp.lt.s32.totalorder %s16, 1
        %s165 = scalar_select %p164, %s16, 1
        %s166 = scalar_lea.vmem %s1, %s165
      $region24: #{lr_branch_forward.14} parent=15 // pred_fallthru
        _
      // Predicated region
      $region25: #{lr_branch_forward.14} parent=15 // pred_check
        %p167 = pneg %p95
      $region26: #{lr_branch_forward.14} parent=15 // pred_check_branch
        %169 = sbr.rel (%p167) target = $region28
      $region27: #{lr_branch_forward.14} parent=15 // pred_region
        %p170 = scmp.lt.s32.totalorder %s16, 1
        %s171 = scalar_select %p170, %s16, 1
        %s172 = scalar_lea.vmem %s2, %s171
      $region28: #{lr_branch_forward.14} parent=15 // pred_fallthru
        _
    $region16: #{lr_branch_forward.14} parent=5 // pred_fallthru
      _
    %p173 = scmp.le.s32.totalorder 1, %s9
    %p174 = scmp.lt.s32.totalorder %s9, 3
    %p175 = pnand %p173, %p174
    %p176 = pneg %p175
    // Predicated region
    $region29: #{lr_branch_forward.14} parent=5 // pred_check
      _
    $region30: #{lr_branch_forward.14} parent=5 // pred_check_branch
      %178 = sbr.rel (%p175) target = $region32
    $region31: #{lr_branch_forward.14} parent=5 // pred_region
      %s179 = ssub.s32 %s9, 1
      %s180 = smul.u32 2, %s19
      %p181 = scmp.lt.s32.totalorder %s18, 1
      %s182 = scalar_select %p181, %s18, 1
      %p183 = scmp.lt.s32.totalorder %s180, 1
      %s184 = scalar_select %p183, %s180, 1
      %s185 = smul.addr %s182, 2
      %s186 = sadd.s32 %s184, %s185
      %s187 = smul.addr %s186, 8
      %s188 = scalar_lea.vmem %s0, %s187
      %p189 = pneg %p49
      %p190 = pneg %p46
      %p191 = scmp.lt.s32.totalorder %s18, 1
      %s192 = scalar_select %p191, %s18, 1
      %s193 = scalar_lea.vmem %s1, %s192
      %p194 = pneg %p75
      %p195 = pneg %p72
      %p196 = scmp.lt.s32.totalorder %s18, 1
      %s197 = scalar_select %p196, %s18, 1
      %s198 = scalar_lea.vmem %s2, %s197
      %p199 = pneg %p101
      %p200 = pneg %p98
      %p201 = pneg %p129
      %p202 = pneg %p126
      %s203 = smul.u32 2, %s19
      %p204 = scmp.lt.s32.totalorder %s18, 1
      %s205 = scalar_select %p204, %s18, 1
      %p206 = scmp.lt.s32.totalorder %s203, 1
      %s207 = scalar_select %p206, %s203, 1
      %s208 = smul.addr %s205, 2
      %s209 = sadd.s32 %s207, %s208
      %s210 = smul.addr %s209, 8
      %s211 = scalar_lea.vmem %s3, %s210
      %s212 = smul.u32 2, %s19
      %p213 = scmp.lt.s32.totalorder %s18, 1
      %s214 = scalar_select %p213, %s18, 1
      %p215 = scmp.lt.s32.totalorder %s212, 1
      %s216 = scalar_select %p215, %s212, 1
      %s217 = smul.addr %s214, 2
      %s218 = sadd.s32 %s216, %s217
      %s219 = smul.addr %s218, 8
      %s220 = scalar_lea.vmem %s0, %s219
      %s221 = smul.u32 2, %s19
      %p222 = scmp.lt.s32.totalorder %s18, 1
      %s223 = scalar_select %p222, %s18, 1
      %s224 = scalar_lea.vmem %s1, %s223
      %p225 = scmp.lt.s32.totalorder %s18, 1
      %s226 = scalar_select %p225, %s18, 1
      %s227 = scalar_lea.vmem %s2, %s226
      %s228 = smul.u32 2, %s19
      %p229 = scmp.lt.s32.totalorder %s18, 1
      %s230 = scalar_select %p229, %s18, 1
      %p231 = scmp.lt.s32.totalorder %s228, 1
      %s232 = scalar_select %p231, %s228, 1
      %s233 = smul.addr %s230, 2
      %s234 = sadd.s32 %s232, %s233
      %s235 = smul.addr %s234, 8
      %s236 = scalar_lea.vmem %s3, %s235
      %s237 = smul.u32 2, %s19
      %v238 = vld [vmem:[%s220] sm:$0xff]
      %v239 = vld [vmem:[%s220 + $0x8] sm:$0xff]
      %v240 = vld [vmem:[%s224] sm:$0x1]
      %v242 = vperm.slane %v240, 0
      %v244 = vmul.f32 %v238, %v242
      %v245 = vmul.f32 %v239, %v242
      %v246 = vld [vmem:[%s227] sm:$0x1]
      %v248 = vperm.slane %v246, 0
      %v250 = vadd.f32 %v244, %v248
      %v251 = vadd.f32 %v245, %v248
      %v252 = vmax.f32 %v250, 0.0
      %v253 = vmax.f32 %v251, 0.0
      %254 = vst [vmem:[%s236] sm:$0xff] %v252
      %255 = vst [vmem:[%s236 + $0x8] sm:$0xff] %v253
      %s256 = smul.u32 2, %s19
      %p257 = scmp.lt.s32.totalorder %s18, 1
      %s258 = scalar_select %p257, %s18, 1
      %p259 = scmp.lt.s32.totalorder %s256, 1
      %s260 = scalar_select %p259, %s256, 1
      %s261 = smul.addr %s258, 2
      %s262 = sadd.s32 %s260, %s261
      %s263 = smul.addr %s262, 8
      %s264 = scalar_lea.vmem %s3, %s263
      // Predicated region
      $region33: #{lr_branch_forward.14} parent=31 // pred_check
        %p265 = pneg %p126
      $region34: #{lr_branch_forward.14} parent=31 // pred_check_branch
        %267 = sbr.rel (%p265) target = $region36
      $region35: #{lr_branch_forward.14} parent=31 // pred_region
        %s268 = smul.u32 2, %s19
      $region36: #{lr_branch_forward.14} parent=31 // pred_fallthru
        _
    $region32: #{lr_branch_forward.14} parent=5 // pred_fallthru
      _
    %p269 = scmp.le.s32.totalorder 2, %s9
    // Predicated region
    $region37: #{lr_branch_forward.14} parent=5 // pred_check
      %p270 = pneg %p269
    $region38: #{lr_branch_forward.14} parent=5 // pred_check_branch
      %272 = sbr.rel (%p270) target = $region40
    $region39: #{lr_branch_forward.14} parent=5 // pred_region
      %s273 = ssub.s32 %s9, 2
      // Predicated region
      $region41: #{lr_branch_forward.14} parent=39 // pred_check
        %p274 = pneg %p132
      $region42: #{lr_branch_forward.14} parent=39 // pred_check_branch
        %276 = sbr.rel (%p274) target = $region44
      $region43: #{lr_branch_forward.14} parent=39 // pred_region
        %s277 = smul.u32 2, %s21
        %p278 = scmp.lt.s32.totalorder %s20, 1
        %s279 = scalar_select %p278, %s20, 1
        %p280 = scmp.lt.s32.totalorder %s277, 1
        %s281 = scalar_select %p280, %s277, 1
        %s282 = smul.addr %s279, 2
        %s283 = sadd.s32 %s281, %s282
        %s284 = smul.addr %s283, 8
        %s285 = scalar_lea.vmem %s3, %s284
      $region44: #{lr_branch_forward.14} parent=39 // pred_fallthru
        _
    $region40: #{lr_branch_forward.14} parent=5 // pred_fallthru
      _
  $region6: #{lr_branch_forward.14} parent=0 // loop_footer
    %s13 = sadd.s32 1, %s9
  $region7: #{lr_branch_forward.14} parent=0 // loop_footer_branch
    %8 = sbr.rel target = $region3
  $region8: #{lr_branch_forward.14} parent=0 // loop_exit
    _

// kernel: lr_branch_forward.13
$region0: #{lr_branch_forward.13}
  #allocation0 [shape = 'u32[]', space=smem, size = 0x4, offset = 0x4, fixed_abs, tag = 'smem constant byte address 0x4 - core index']
  #allocation1 [shape = 'u32[72,128]{1,0:T(1,128)}', space=vmem, size = 0x9000, scoped, tag = 'internal scratch']
  %s0 = inlined_call_operand.vmem [shape: bf16[2,16,800], index: 0, kind: input, shape index: {}]
  %s1 = inlined_call_operand.vmem [shape: bf16[800,128], index: 1, kind: input, shape index: {}]
  %s2 = inlined_call_operand.vmem [shape: f32[1,128], index: 2, kind: input, shape index: {}]
  %s3 = inlined_call_operand.vmem [shape: f32[2,16,128], index: 3, kind: output, shape index: {0}]
  %s4 = inlined_call_operand.vmem [shape: f32[2,2,128], index: 4, kind: output, shape index: {1}]
  %5 = xla_tuple %s3, %s4
  %s6 = sld [smem:[#allocation0]]
  $region57: #{lr_branch_forward.13} parent=0
    _
  %s8 = ssub.s32 1, %s6
  %s9 = scalar_select 0, %s8, %s6
  loop: start=0, step=1, limit=4
  $region2: #{lr_branch_forward.13} parent=0 // loop_pre_header
    _
  $region3: #{lr_branch_forward.13} parent=0 // loop_header
    %s11 = sphi 0, %s15
    %p12 = scmp.ge.s32.totalorder %s11, 4
    %s18 = sphi 0, %s30
    %s19 = sphi 0, %s26
    %s20 = sphi 0, %s18
    %s21 = sphi 0, %s19
    %s22 = sphi 0, %s20
    %s23 = sphi 0, %s21
    %s35 = sphi 0, %s37
    %s38 = sphi 0, %s35
    %s39 = sphi 0, %s38
    %s55 = sphi 0, %s39
    %s59 = sphi 0, %s59
    %s61 = sphi 0, %s59
    %s62 = sphi 0, %s61
    %s76 = sphi 0, %s62
    %s80 = sphi 0, %s80
    %s82 = sphi 0, %s80
    %s83 = sphi 0, %s82
    %s97 = sphi 0, %s83
    %s105 = sphi 0, %s107
    %s108 = sphi 0, %s105
    %s109 = sphi 0, %s108
    %s125 = sphi 0, %s109
    %s131 = sphi 0, %s133
    %s134 = sphi 0, %s131
    %s135 = sphi 0, %s134
    %s151 = sphi 0, %s135
  $region4: #{lr_branch_forward.13} parent=0 // loop_header_branch
    %14 = sbr.rel (%p12) target = $region8
  $region5: #{lr_branch_forward.13} parent=0 // loop_body
    %s16 = ssub.s32 %s11, 1
    %s17 = ssub.s32 %s11, 2
    %s24 = sadd.s32 1, %s19
    %p25 = scmp.ge.s32.totalorder %s24, 1
    %s26 = scalar_select %p25, 0, %s24
    %s27 = sadd.s32 1, %s18
    %s28 = scalar_select %p25, %s27, %s18
    %p29 = scmp.ge.s32.totalorder %s28, 2
    %s30 = scalar_select %p29, 0, %s28
    %s31 = ssub.s32 %s18, %s30
    %s32 = ssub.s32 %s19, %s26
    %s33 = sor.u32 %s31, %s32
    %p34 = scmp.eq.s32.totalorder %s33, 0
    %s36 = sadd.s32 %s35, 1
    %s37 = scalar_select %p34, %s35, %s36
    %p40 = pneg %p34
    %p41 = scmp.eq.s32.totalorder %s11, 1
    %p42 = por %p40, %p41
    %p43 = scmp.ne.s32.totalorder %s35, %s38
    %p44 = scmp.eq.s32.totalorder %s11, 0
    %p45 = por %p43, %p44
    %p46 = scmp.ne.s32.totalorder %s35, %s38
    %p47 = scmp.eq.s32.totalorder %s16, 1
    %p48 = por %p46, %p47
    %p49 = scmp.ne.s32.totalorder %s38, %s39
    %p50 = scmp.eq.s32.totalorder %s16, 0
    %p51 = por %p49, %p50
    %p52 = scmp.ne.s32.totalorder %s38, %s39
    %p53 = scmp.eq.s32.totalorder %s17, 1
    %p54 = por %p52, %p53
    %p56 = scmp.ne.s32.totalorder %s39, %s55
    %p57 = scmp.eq.s32.totalorder %s17, 0
    %p58 = por %p56, %p57
    %s60 = sadd.s32 %s59, 1
    %p63 = scmp.eq.s32.totalorder %s11, 1
    %p64 = scmp.ne.s32.totalorder %s59, %s61
    %p65 = scmp.eq.s32.totalorder %s11, 0
    %p66 = por %p64, %p65
    %p67 = scmp.ne.s32.totalorder %s59, %s61
    %p68 = scmp.eq.s32.totalorder %s16, 1
    %p69 = por %p67, %p68
    %p70 = scmp.ne.s32.totalorder %s61, %s62
    %p71 = scmp.eq.s32.totalorder %s16, 0
    %p72 = por %p70, %p71
    %p73 = scmp.ne.s32.totalorder %s61, %s62
    %p74 = scmp.eq.s32.totalorder %s17, 1
    %p75 = por %p73, %p74
    %p77 = scmp.ne.s32.totalorder %s62, %s76
    %p78 = scmp.eq.s32.totalorder %s17, 0
    %p79 = por %p77, %p78
    %s81 = sadd.s32 %s80, 1
    %p84 = scmp.eq.s32.totalorder %s11, 1
    %p85 = scmp.ne.s32.totalorder %s80, %s82
    %p86 = scmp.eq.s32.totalorder %s11, 0
    %p87 = por %p85, %p86
    %p88 = scmp.ne.s32.totalorder %s80, %s82
    %p89 = scmp.eq.s32.totalorder %s16, 1
    %p90 = por %p88, %p89
    %p91 = scmp.ne.s32.totalorder %s82, %s83
    %p92 = scmp.eq.s32.totalorder %s16, 0
    %p93 = por %p91, %p92
    %p94 = scmp.ne.s32.totalorder %s82, %s83
    %p95 = scmp.eq.s32.totalorder %s17, 1
    %p96 = por %p94, %p95
    %p98 = scmp.ne.s32.totalorder %s83, %s97
    %p99 = scmp.eq.s32.totalorder %s17, 0
    %p100 = por %p98, %p99
    %s101 = ssub.s32 %s18, %s30
    %s102 = ssub.s32 %s19, %s26
    %s103 = sor.u32 %s101, %s102
    %p104 = scmp.eq.s32.totalorder %s103, 0
    %s106 = sadd.s32 %s105, 1
    %s107 = scalar_select %p104, %s105, %s106
    %p110 = pneg %p104
    %p111 = scmp.eq.s32.totalorder %s11, 1
    %p112 = por %p110, %p111
    %p113 = scmp.ne.s32.totalorder %s105, %s108
    %p114 = scmp.eq.s32.totalorder %s11, 0
    %p115 = por %p113, %p114
    %p116 = scmp.ne.s32.totalorder %s105, %s108
    %p117 = scmp.eq.s32.totalorder %s16, 1
    %p118 = por %p116, %p117
    %p119 = scmp.ne.s32.totalorder %s108, %s109
    %p120 = scmp.eq.s32.totalorder %s16, 0
    %p121 = por %p119, %p120
    %p122 = scmp.ne.s32.totalorder %s108, %s109
    %p123 = scmp.eq.s32.totalorder %s17, 1
    %p124 = por %p122, %p123
    %p126 = scmp.ne.s32.totalorder %s109, %s125
    %p127 = scmp.eq.s32.totalorder %s17, 0
    %p128 = por %p126, %p127
    %s129 = ssub.s32 %s18, %s30
    %p130 = scmp.eq.s32.totalorder %s129, 0
    %s132 = sadd.s32 %s131, 1
    %s133 = scalar_select %p130, %s131, %s132
    %p136 = pneg %p130
    %p137 = scmp.eq.s32.totalorder %s11, 1
    %p138 = por %p136, %p137
    %p139 = scmp.ne.s32.totalorder %s131, %s134
    %p140 = scmp.eq.s32.totalorder %s11, 0
    %p141 = por %p139, %p140
    %p142 = scmp.ne.s32.totalorder %s131, %s134
    %p143 = scmp.eq.s32.totalorder %s16, 1
    %p144 = por %p142, %p143
    %p145 = scmp.ne.s32.totalorder %s134, %s135
    %p146 = scmp.eq.s32.totalorder %s16, 0
    %p147 = por %p145, %p146
    %p148 = scmp.ne.s32.totalorder %s134, %s135
    %p149 = scmp.eq.s32.totalorder %s17, 1
    %p150 = por %p148, %p149
    %p152 = scmp.ne.s32.totalorder %s135, %s151
    %p153 = scmp.eq.s32.totalorder %s17, 0
    %p154 = por %p152, %p153
    %p155 = scmp.le.s32.totalorder 1, %s11
    %p156 = scmp.lt.s32.totalorder %s11, 3
    %p157 = pnand %p155, %p156
    %p158 = pneg %p157
    // Predicated region
    $region9: #{lr_branch_forward.13} parent=5 // pred_check
      _
    $region10: #{lr_branch_forward.13} parent=5 // pred_check_branch
      %160 = sbr.rel (%p157) target = $region12
    $region11: #{lr_branch_forward.13} parent=5 // pred_region
      %s161 = ssub.s32 %s11, 1
      // Predicated region
      $region13: #{lr_branch_forward.13} parent=11 // pred_check
        %p162 = pneg %p72
      $region14: #{lr_branch_forward.13} parent=11 // pred_check_branch
        %164 = sbr.rel (%p162) target = $region16
      $region15: #{lr_branch_forward.13} parent=11 // pred_region
        _
      $region16: #{lr_branch_forward.13} parent=11 // pred_fallthru
        _
      // Predicated region
      $region17: #{lr_branch_forward.13} parent=11 // pred_check
        %p165 = pneg %p93
      $region18: #{lr_branch_forward.13} parent=11 // pred_check_branch
        %167 = sbr.rel (%p165) target = $region20
      $region19: #{lr_branch_forward.13} parent=11 // pred_region
        _
      $region20: #{lr_branch_forward.13} parent=11 // pred_fallthru
        _
    $region12: #{lr_branch_forward.13} parent=5 // pred_fallthru
      _
    %p168 = scmp.lt.s32.totalorder %s11, 2
    // Predicated region
    $region21: #{lr_branch_forward.13} parent=5 // pred_check
      %p169 = pneg %p168
    $region22: #{lr_branch_forward.13} parent=5 // pred_check_branch
      %171 = sbr.rel (%p169) target = $region24
    $region23: #{lr_branch_forward.13} parent=5 // pred_region
      // Predicated region
      $region25: #{lr_branch_forward.13} parent=23 // pred_check
        %p172 = pneg %p45
      $region26: #{lr_branch_forward.13} parent=23 // pred_check_branch
        %174 = sbr.rel (%p172) target = $region28
      $region27: #{lr_branch_forward.13} parent=23 // pred_region
        %s175 = smul.u32 2, %s19
        %p176 = scmp.lt.s32.totalorder %s18, 1
        %s177 = scalar_select %p176, %s18, 1
        %p178 = scmp.lt.s32.totalorder %s175, 1
        %s179 = scalar_select %p178, %s175, 1
        %s180 = smul.addr %s179, 7
        %s181 = smul.addr %s177, 14
        %s182 = sadd.s32 %s180, %s181
        %s183 = smul.addr %s182, 4
        %s184 = scalar_lea.vmem %s0, %s183
        %s185 = smul.u32 2, %s19
      $region28: #{lr_branch_forward.13} parent=23 // pred_fallthru
        _
    $region24: #{lr_branch_forward.13} parent=5 // pred_fallthru
      _
    %p186 = scmp.le.s32.totalorder 1, %s11
    %p187 = scmp.lt.s32.totalorder %s11, 3
    %p188 = pnand %p186, %p187
    %p189 = pneg %p188
    // Predicated region
    $region29: #{lr_branch_forward.13} parent=5 // pred_check
      _
    $region30: #{lr_branch_forward.13} parent=5 // pred_check_branch
      %191 = sbr.rel (%p188) target = $region32
    $region31: #{lr_branch_forward.13} parent=5 // pred_region
      %s192 = ssub.s32 %s11, 1
      %s193 = smul.u32 2, %s21
      %p194 = scmp.lt.s32.totalorder %s20, 1
      %s195 = scalar_select %p194, %s20, 1
      %p196 = scmp.lt.s32.totalorder %s193, 1
      %s197 = scalar_select %p196, %s193, 1
      %s198 = smul.addr %s197, 7
      %s199 = smul.addr %s195, 14
      %s200 = sadd.s32 %s198, %s199
      %s201 = smul.addr %s200, 4
      %s202 = scalar_lea.vmem %s0, %s201
      %p203 = pneg %p51
      %p204 = pneg %p48
      %p205 = pneg %p72
      %p206 = pneg %p69
      %p207 = pneg %p93
      %p208 = pneg %p90
      %p209 = pneg %p121
      %p210 = pneg %p118
      %s211 = smul.u32 2, %s21
      %p212 = scmp.lt.s32.totalorder %s20, 1
      %s213 = scalar_select %p212, %s20, 1
      %p214 = scmp.lt.s32.totalorder %s211, 1
      %s215 = scalar_select %p214, %s211, 1
      %s216 = smul.addr %s213, 2
      %s217 = sadd.s32 %s215, %s216
      %s218 = smul.addr %s217, 8
      %s219 = scalar_lea.vmem %s3, %s218
      %p220 = pneg %p147
      %p221 = pneg %p144
      %p222 = scmp.lt.s32.totalorder %s20, 1
      %s223 = scalar_select %p222, %s20, 1
      %s224 = smul.addr %s223, 2
      %s225 = scalar_lea.vmem %s4, %s224
      %s226 = smul.u32 2, %s21
      %p227 = scmp.lt.s32.totalorder %s20, 1
      %s228 = scalar_select %p227, %s20, 1
      %p229 = scmp.lt.s32.totalorder %s226, 1
      %s230 = scalar_select %p229, %s226, 1
      %s231 = smul.addr %s230, 7
      %s232 = smul.addr %s228, 14
      %s233 = sadd.s32 %s231, %s232
      %s234 = smul.addr %s233, 4
      %s235 = scalar_lea.vmem %s0, %s234
      %s236 = smul.u32 2, %s21
      %s237 = smul.u32 2, %s21
      %p238 = scmp.lt.s32.totalorder %s20, 1
      %s239 = scalar_select %p238, %s20, 1
      %p240 = scmp.lt.s32.totalorder %s237, 1
      %s241 = scalar_select %p240, %s237, 1
      %s242 = smul.addr %s239, 2
      %s243 = sadd.s32 %s241, %s242
      %s244 = smul.addr %s243, 8
      %s245 = scalar_lea.vmem %s3, %s244
      %s246 = smul.u32 2, %s21
      %p247 = scmp.lt.s32.totalorder %s20, 1
      %s248 = scalar_select %p247, %s20, 1
      %s249 = smul.addr %s248, 2
      %s250 = scalar_lea.vmem %s4, %s249
      %v252 = vld [vmem:[%s235] sm:$0xff]
      %v253 = vld [vmem:[%s235 + $0x8] sm:$0xff]
      %v254 = vld [vmem:[%s235 + $0x10] sm:$0xff]
      %v255 = vld [vmem:[%s235 + $0x18] sm:$0xf]
      %v256 = vld [vmem:[%s235 + $0x1c] sm:$0xff]
      %v257 = vld [vmem:[%s235 + $0x24] sm:$0xff]
      %v258 = vld [vmem:[%s235 + $0x2c] sm:$0xff]
      %v259 = vld [vmem:[%s235 + $0x34] sm:$0xf]
      %v260 = vld [vmem:[%s1] sm:$0xf]
      %v261 = vld [vmem:[%s1 + $0x4] sm:$0xf]
      %v262 = vld [vmem:[%s1 + $0x8] sm:$0xf]
      %v263 = vld [vmem:[%s1 + $0xc] sm:$0xf]
      %v264 = vld [vmem:[%s1 + $0x10] sm:$0xf]
      %v265 = vld [vmem:[%s1 + $0x14] sm:$0xf]
      %v266 = vld [vmem:[%s1 + $0x18] sm:$0xf]
      %v267 = vld [vmem:[%s1 + $0x1c] sm:$0xf]
      %v268 = vld [vmem:[%s1 + $0x20] sm:$0xf]
      %v269 = vld [vmem:[%s1 + $0x24] sm:$0xf]
      %v270 = vld [vmem:[%s1 + $0x28] sm:$0xf]
      %v271 = vld [vmem:[%s1 + $0x2c] sm:$0xf]
      %v272 = vld [vmem:[%s1 + $0x30] sm:$0xf]
      %v273 = vld [vmem:[%s1 + $0x34] sm:$0xf]
      %v274 = vld [vmem:[%s1 + $0x38] sm:$0xf]
      %v275 = vld [vmem:[%s1 + $0x3c] sm:$0xf]
      %v276 = vld [vmem:[%s1 + $0x40] sm:$0xf]
      %v277 = vld [vmem:[%s1 + $0x44] sm:$0xf]
      %v278 = vld [vmem:[%s1 + $0x48] sm:$0xf]
      %v279 = vld [vmem:[%s1 + $0x4c] sm:$0xf]
      %v280 = vld [vmem:[%s1 + $0x50] sm:$0xf]
      %v281 = vld [vmem:[%s1 + $0x54] sm:$0xf]
      %v282 = vld [vmem:[%s1 + $0x58] sm:$0xf]
      %v283 = vld [vmem:[%s1 + $0x5c] sm:$0xf]
      %v284 = vld [vmem:[%s1 + $0x60] sm:$0xf]
      %v285 = vld [vmem:[%s1 + $0x64] sm:$0xf]
      %v286 = vld [vmem:[%s1 + $0x68] sm:$0xf]
      %v287 = vld [vmem:[%s1 + $0x6c] sm:$0xf]
      %v288 = vld [vmem:[%s1 + $0x70] sm:$0xf]
      %v289 = vld [vmem:[%s1 + $0x74] sm:$0xf]
      %v290 = vld [vmem:[%s1 + $0x78] sm:$0xf]
      %v291 = vld [vmem:[%s1 + $0x7c] sm:$0xf]
      %v292 = vld [vmem:[%s1 + $0x80] sm:$0xf]
      %v293 = vld [vmem:[%s1 + $0x84] sm:$0xf]
      %v294 = vld [vmem:[%s1 + $0x88] sm:$0xf]
      %v295 = vld [vmem:[%s1 + $0x8c] sm:$0xf]
      %v296 = vld [vmem:[%s1 + $0x90] sm:$0xf]
      %v297 = vld [vmem:[%s1 + $0x94] sm:$0xf]
      %v298 = vld [vmem:[%s1 + $0x98] sm:$0xf]
      %v299 = vld [vmem:[%s1 + $0x9c] sm:$0xf]
      %v300 = vld [vmem:[%s1 + $0xa0] sm:$0xf]
      %v301 = vld [vmem:[%s1 + $0xa4] sm:$0xf]
      %v302 = vld [vmem:[%s1 + $0xa8] sm:$0xf]
      %v303 = vld [vmem:[%s1 + $0xac] sm:$0xf]
      %v304 = vld [vmem:[%s1 + $0xb0] sm:$0xf]
      %v305 = vld [vmem:[%s1 + $0xb4] sm:$0xf]
      %v306 = vld [vmem:[%s1 + $0xb8] sm:$0xf]
      %v307 = vld [vmem:[%s1 + $0xbc] sm:$0xf]
      %v308 = vld [vmem:[%s1 + $0xc0] sm:$0xf]
      %v309 = vld [vmem:[%s1 + $0xc4] sm:$0xf]
      %v310 = vld [vmem:[%s1 + $0xc8] sm:$0xf]
      %v311 = vld [vmem:[%s1 + $0xcc] sm:$0xf]
      %v312 = vld [vmem:[%s1 + $0xd0] sm:$0xf]
      %v313 = vld [vmem:[%s1 + $0xd4] sm:$0xf]
      %v314 = vld [vmem:[%s1 + $0xd8] sm:$0xf]
      %v315 = vld [vmem:[%s1 + $0xdc] sm:$0xf]
      %v316 = vld [vmem:[%s1 + $0xe0] sm:$0xf]
      %v317 = vld [vmem:[%s1 + $0xe4] sm:$0xf]
      %v318 = vld [vmem:[%s1 + $0xe8] sm:$0xf]
      %v319 = vld [vmem:[%s1 + $0xec] sm:$0xf]
      %v320 = vld [vmem:[%s1 + $0xf0] sm:$0xf]
      %v321 = vld [vmem:[%s1 + $0xf4] sm:$0xf]
      %v322 = vld [vmem:[%s1 + $0xf8] sm:$0xf]
      %v323 = vld [vmem:[%s1 + $0xfc] sm:$0xf]
      %v324 = vld [vmem:[%s1 + $0x100] sm:$0xf]
      %v325 = vld [vmem:[%s1 + $0x104] sm:$0xf]
      %v326 = vld [vmem:[%s1 + $0x108] sm:$0xf]
      %v327 = vld [vmem:[%s1 + $0x10c] sm:$0xf]
      %v328 = vld [vmem:[%s1 + $0x110] sm:$0xf]
      %v329 = vld [vmem:[%s1 + $0x114] sm:$0xf]
      %v330 = vld [vmem:[%s1 + $0x118] sm:$0xf]
      %v331 = vld [vmem:[%s1 + $0x11c] sm:$0xf]
      %v332 = vld [vmem:[%s1 + $0x120] sm:$0xf]
      %v333 = vld [vmem:[%s1 + $0x124] sm:$0xf]
      %v334 = vld [vmem:[%s1 + $0x128] sm:$0xf]
      %v335 = vld [vmem:[%s1 + $0x12c] sm:$0xf]
      %v336 = vld [vmem:[%s1 + $0x130] sm:$0xf]
      %v337 = vld [vmem:[%s1 + $0x134] sm:$0xf]
      %v338 = vld [vmem:[%s1 + $0x138] sm:$0xf]
      %v339 = vld [vmem:[%s1 + $0x13c] sm:$0xf]
      %v340 = vld [vmem:[%s1 + $0x140] sm:$0xf]
      %v341 = vld [vmem:[%s1 + $0x144] sm:$0xf]
      %v342 = vld [vmem:[%s1 + $0x148] sm:$0xf]
      %v343 = vld [vmem:[%s1 + $0x14c] sm:$0xf]
      %v344 = vld [vmem:[%s1 + $0x150] sm:$0xf]
      %v345 = vld [vmem:[%s1 + $0x154] sm:$0xf]
      %v346 = vld [vmem:[%s1 + $0x158] sm:$0xf]
      %v347 = vld [vmem:[%s1 + $0x15c] sm:$0xf]
      %v348 = vld [vmem:[%s1 + $0x160] sm:$0xf]
      %v349 = vld [vmem:[%s1 + $0x164] sm:$0xf]
      %v350 = vld [vmem:[%s1 + $0x168] sm:$0xf]
      %v351 = vld [vmem:[%s1 + $0x16c] sm:$0xf]
      %v352 = vld [vmem:[%s1 + $0x170] sm:$0xf]
      %v353 = vld [vmem:[%s1 + $0x174] sm:$0xf]
      %v354 = vld [vmem:[%s1 + $0x178] sm:$0xf]
      %v355 = vld [vmem:[%s1 + $0x17c] sm:$0xf]
      %v356 = vld [vmem:[%s1 + $0x180] sm:$0xf]
      %v357 = vld [vmem:[%s1 + $0x184] sm:$0xf]
      %v358 = vld [vmem:[%s1 + $0x188] sm:$0xf]
      %v359 = vld [vmem:[%s1 + $0x18c] sm:$0xf]
      %v360 = vld [vmem:[%s2] sm:$0x1]
      %v362 = vperm.slane %v360, 0
      %v372 = vunpack.c.l.b16 %v252
      %v373 = vunpack.c.h.b16 %v252
      %v374 = vunpack.c.l.b16 %v253
      %v375 = vunpack.c.h.b16 %v253
      %v376 = vunpack.c.l.b16 %v254
      %v377 = vunpack.c.h.b16 %v254
      %v378 = vunpack.c.l.b16 %v255
      %v379 = vunpack.c.l.b16 %v256
      %v380 = vunpack.c.h.b16 %v256
      %v381 = vunpack.c.l.b16 %v257
      %v382 = vunpack.c.h.b16 %v257
      %v383 = vunpack.c.l.b16 %v258
      %v384 = vunpack.c.h.b16 %v258
      %v385 = vunpack.c.l.b16 %v259
      %v386 = vpack.c.b16 %v379, %v372
      %v387 = vpack.c.b16 %v380, %v373
      %v388 = vpack.c.b16 %v381, %v374
      %v389 = vpack.c.b16 %v382, %v375
      %v390 = vpack.c.b16 %v383, %v376
      %v391 = vpack.c.b16 %v384, %v377
      %v392 = vpack.c.b16 %v385, %v378
      %v499 = vunpack.c.l.b16 %v260
      %v500 = vunpack.c.l.b16 %v261
      %v501 = vunpack.c.l.b16 %v262
      %v502 = vunpack.c.l.b16 %v263
      %v503 = vunpack.c.l.b16 %v264
      %v504 = vunpack.c.l.b16 %v265
      %v505 = vunpack.c.l.b16 %v266
      %v506 = vunpack.c.l.b16 %v267
      %v507 = vunpack.c.l.b16 %v268
      %v508 = vunpack.c.l.b16 %v269
      %v509 = vunpack.c.l.b16 %v270
      %v510 = vunpack.c.l.b16 %v271
      %v511 = vunpack.c.l.b16 %v272
      %v512 = vunpack.c.l.b16 %v273
      %v513 = vunpack.c.l.b16 %v274
      %v514 = vunpack.c.l.b16 %v275
      %v515 = vunpack.c.l.b16 %v276
      %v516 = vunpack.c.l.b16 %v277
      %v517 = vunpack.c.l.b16 %v278
      %v518 = vunpack.c.l.b16 %v279
      %v519 = vunpack.c.l.b16 %v280
      %v520 = vunpack.c.l.b16 %v281
      %v521 = vunpack.c.l.b16 %v282
      %v522 = vunpack.c.l.b16 %v283
      %v523 = vunpack.c.l.b16 %v284
      %v524 = vunpack.c.l.b16 %v285
      %v525 = vunpack.c.l.b16 %v286
      %v526 = vunpack.c.l.b16 %v287
      %v527 = vunpack.c.l.b16 %v288
      %v528 = vunpack.c.l.b16 %v289
      %v529 = vunpack.c.l.b16 %v290
      %v530 = vunpack.c.l.b16 %v291
      %v531 = vunpack.c.l.b16 %v292
      %v532 = vunpack.c.l.b16 %v293
      %v533 = vunpack.c.l.b16 %v294
      %v534 = vunpack.c.l.b16 %v295
      %v535 = vunpack.c.l.b16 %v296
      %v536 = vunpack.c.l.b16 %v297
      %v537 = vunpack.c.l.b16 %v298
      %v538 = vunpack.c.l.b16 %v299
      %v539 = vunpack.c.l.b16 %v300
      %v540 = vunpack.c.l.b16 %v301
      %v541 = vunpack.c.l.b16 %v302
      %v542 = vunpack.c.l.b16 %v303
      %v543 = vunpack.c.l.b16 %v304
      %v544 = vunpack.c.l.b16 %v305
      %v545 = vunpack.c.l.b16 %v306
      %v546 = vunpack.c.l.b16 %v307
      %v547 = vunpack.c.l.b16 %v308
      %v548 = vunpack.c.l.b16 %v309
      %v549 = vunpack.c.l.b16 %v310
      %v550 = vunpack.c.l.b16 %v311
      %v551 = vunpack.c.l.b16 %v312
      %v552 = vunpack.c.l.b16 %v313
      %v553 = vunpack.c.l.b16 %v314
      %v554 = vunpack.c.l.b16 %v315
      %v555 = vunpack.c.l.b16 %v316
      %v556 = vunpack.c.l.b16 %v317
      %v557 = vunpack.c.l.b16 %v318
      %v558 = vunpack.c.l.b16 %v319
      %v559 = vunpack.c.l.b16 %v320
      %v560 = vunpack.c.l.b16 %v321
      %v561 = vunpack.c.l.b16 %v322
      %v562 = vunpack.c.l.b16 %v323
      %v563 = vunpack.c.l.b16 %v324
      %v564 = vunpack.c.l.b16 %v325
      %v565 = vunpack.c.l.b16 %v326
      %v566 = vunpack.c.l.b16 %v327
      %v567 = vunpack.c.l.b16 %v328
      %v568 = vunpack.c.l.b16 %v329
      %v569 = vunpack.c.l.b16 %v330
      %v570 = vunpack.c.l.b16 %v331
      %v571 = vunpack.c.l.b16 %v332
      %v572 = vunpack.c.l.b16 %v333
      %v573 = vunpack.c.l.b16 %v334
      %v574 = vunpack.c.l.b16 %v335
      %v575 = vunpack.c.l.b16 %v336
      %v576 = vunpack.c.l.b16 %v337
      %v577 = vunpack.c.l.b16 %v338
      %v578 = vunpack.c.l.b16 %v339
      %v579 = vunpack.c.l.b16 %v340
      %v580 = vunpack.c.l.b16 %v341
      %v581 = vunpack.c.l.b16 %v342
      %v582 = vunpack.c.l.b16 %v343
      %v583 = vunpack.c.l.b16 %v344
      %v584 = vunpack.c.l.b16 %v345
      %v585 = vunpack.c.l.b16 %v346
      %v586 = vunpack.c.l.b16 %v347
      %v587 = vunpack.c.l.b16 %v348
      %v588 = vunpack.c.l.b16 %v349
      %v589 = vunpack.c.l.b16 %v350
      %v590 = vunpack.c.l.b16 %v351
      %v591 = vunpack.c.l.b16 %v352
      %v592 = vunpack.c.l.b16 %v353
      %v593 = vunpack.c.l.b16 %v354
      %v594 = vunpack.c.l.b16 %v355
      %v595 = vunpack.c.l.b16 %v356
      %v596 = vunpack.c.l.b16 %v357
      %v597 = vunpack.c.l.b16 %v358
      %v598 = vunpack.c.l.b16 %v359
      %v599 = vpack.c.b16 %v500, %v499
      %v600 = vpack.c.b16 %v502, %v501
      %v601 = vpack.c.b16 %v504, %v503
      %v602 = vpack.c.b16 %v506, %v505
      %v603 = vpack.c.b16 %v508, %v507
      %v604 = vpack.c.b16 %v510, %v509
      %v605 = vpack.c.b16 %v512, %v511
      %v606 = vpack.c.b16 %v514, %v513
      %v607 = vpack.c.b16 %v516, %v515
      %v608 = vpack.c.b16 %v518, %v517
      %v609 = vpack.c.b16 %v520, %v519
      %v610 = vpack.c.b16 %v522, %v521
      %v611 = vpack.c.b16 %v524, %v523
      %v612 = vpack.c.b16 %v526, %v525
      %v613 = vpack.c.b16 %v528, %v527
      %v614 = vpack.c.b16 %v530, %v529
      %v615 = vpack.c.b16 %v532, %v531
      %v616 = vpack.c.b16 %v534, %v533
      %v617 = vpack.c.b16 %v536, %v535
      %v618 = vpack.c.b16 %v538, %v537
      %v619 = vpack.c.b16 %v540, %v539
      %v620 = vpack.c.b16 %v542, %v541
      %v621 = vpack.c.b16 %v544, %v543
      %v622 = vpack.c.b16 %v546, %v545
      %v623 = vpack.c.b16 %v548, %v547
      %v624 = vpack.c.b16 %v550, %v549
      %v625 = vpack.c.b16 %v552, %v551
      %v626 = vpack.c.b16 %v554, %v553
      %v627 = vpack.c.b16 %v556, %v555
      %v628 = vpack.c.b16 %v558, %v557
      %v629 = vpack.c.b16 %v560, %v559
      %v630 = vpack.c.b16 %v562, %v561
      %v631 = vpack.c.b16 %v564, %v563
      %v632 = vpack.c.b16 %v566, %v565
      %v633 = vpack.c.b16 %v568, %v567
      %v634 = vpack.c.b16 %v570, %v569
      %v635 = vpack.c.b16 %v572, %v571
      %v636 = vpack.c.b16 %v574, %v573
      %v637 = vpack.c.b16 %v576, %v575
      %v638 = vpack.c.b16 %v578, %v577
      %v639 = vpack.c.b16 %v580, %v579
      %v640 = vpack.c.b16 %v582, %v581
      %v641 = vpack.c.b16 %v584, %v583
      %v642 = vpack.c.b16 %v586, %v585
      %v643 = vpack.c.b16 %v588, %v587
      %v644 = vpack.c.b16 %v590, %v589
      %v645 = vpack.c.b16 %v592, %v591
      %v646 = vpack.c.b16 %v594, %v593
      %v647 = vpack.c.b16 %v596, %v595
      %v648 = vpack.c.b16 %v598, %v597
      %vm699 = vcmask 261120
      %v701 = vsel %vm699, %v392, 0
      %703 = vmatpush.bf16.msra.mxu0 %v606
      %704 = vmatpush.bf16.msra.mxu0 %v605
      %705 = vmatpush.bf16.msra.mxu0 %v604
      %706 = vmatpush.bf16.msra.mxu0 %v603
      %707 = vmatpush.bf16.msra.mxu0 %v602
      %708 = vmatpush.bf16.msra.mxu0 %v601
      %709 = vmatpush.bf16.msra.mxu0 %v600
      %710 = vmatpush.bf16.msra.mxu0 %v599
      %711 = vmatmul.bf16.gmra.mxu0 %v386
      %v712 = vpop.f32.mrf.mxu0
      %v713 = vadd.f32 %v362, %v712
      %v714 = vpop.f32.mrf.mxu0
      %v715 = vadd.f32 %v362, %v714
      %716 = vdwg.mxu0
      %717 = vmatpush.bf16.msra.mxu0 %v614
      %718 = vmatpush.bf16.msra.mxu0 %v613
      %719 = vmatpush.bf16.msra.mxu0 %v612
      %720 = vmatpush.bf16.msra.mxu0 %v611
      %721 = vmatpush.bf16.msra.mxu0 %v610
      %722 = vmatpush.bf16.msra.mxu0 %v609
      %723 = vmatpush.bf16.msra.mxu0 %v608
      %724 = vmatpush.bf16.msra.mxu0 %v607
      %725 = vmatmul.bf16.gmra.mxu0 %v387
      %v726 = vpop.f32.mrf.mxu0
      %v727 = vadd.f32 %v713, %v726
      %v728 = vpop.f32.mrf.mxu0
      %v729 = vadd.f32 %v715, %v728
      %730 = vdwg.mxu0
      %731 = vmatpush.bf16.msra.mxu0 %v622
      %732 = vmatpush.bf16.msra.mxu0 %v621
      %733 = vmatpush.bf16.msra.mxu0 %v620
      %734 = vmatpush.bf16.msra.mxu0 %v619
      %735 = vmatpush.bf16.msra.mxu0 %v618
      %736 = vmatpush.bf16.msra.mxu0 %v617
      %737 = vmatpush.bf16.msra.mxu0 %v616
      %738 = vmatpush.bf16.msra.mxu0 %v615
      %739 = vmatmul.bf16.gmra.mxu0 %v388
      %v740 = vpop.f32.mrf.mxu0
      %v741 = vadd.f32 %v727, %v740
      %v742 = vpop.f32.mrf.mxu0
      %v743 = vadd.f32 %v729, %v742
      %744 = vdwg.mxu0
      %745 = vmatpush.bf16.msra.mxu0 %v630
      %746 = vmatpush.bf16.msra.mxu0 %v629
      %747 = vmatpush.bf16.msra.mxu0 %v628
      %748 = vmatpush.bf16.msra.mxu0 %v627
      %749 = vmatpush.bf16.msra.mxu0 %v626
      %750 = vmatpush.bf16.msra.mxu0 %v625
      %751 = vmatpush.bf16.msra.mxu0 %v624
      %752 = vmatpush.bf16.msra.mxu0 %v623
      %753 = vmatmul.bf16.gmra.mxu0 %v389
      %v754 = vpop.f32.mrf.mxu0
      %v755 = vadd.f32 %v741, %v754
      %v756 = vpop.f32.mrf.mxu0
      %v757 = vadd.f32 %v743, %v756
      %758 = vdwg.mxu0
      %759 = vmatpush.bf16.msra.mxu0 %v638
      %760 = vmatpush.bf16.msra.mxu0 %v637
      %761 = vmatpush.bf16.msra.mxu0 %v636
      %762 = vmatpush.bf16.msra.mxu0 %v635
      %763 = vmatpush.bf16.msra.mxu0 %v634
      %764 = vmatpush.bf16.msra.mxu0 %v633
      %765 = vmatpush.bf16.msra.mxu0 %v632
      %766 = vmatpush.bf16.msra.mxu0 %v631
      %767 = vmatmul.bf16.gmra.mxu0 %v390
      %v768 = vpop.f32.mrf.mxu0
      %v769 = vadd.f32 %v755, %v768
      %v770 = vpop.f32.mrf.mxu0
      %v771 = vadd.f32 %v757, %v770
      %772 = vdwg.mxu0
      %773 = vmatpush.bf16.msra.mxu0 %v646
      %774 = vmatpush.bf16.msra.mxu0 %v645
      %775 = vmatpush.bf16.msra.mxu0 %v644
      %776 = vmatpush.bf16.msra.mxu0 %v643
      %777 = vmatpush.bf16.msra.mxu0 %v642
      %778 = vmatpush.bf16.msra.mxu0 %v641
      %779 = vmatpush.bf16.msra.mxu0 %v640
      %780 = vmatpush.bf16.msra.mxu0 %v639
      %781 = vmatmul.bf16.gmra.mxu0 %v391
      %v782 = vpop.f32.mrf.mxu0
      %v783 = vadd.f32 %v769, %v782
      %v784 = vpop.f32.mrf.mxu0
      %v785 = vadd.f32 %v771, %v784
      %786 = vdwg.mxu0
      %787 = vmatpush.bf16.msra.mxu0 0
      %788 = vmatpush.bf16.msra.mxu0 0
      %789 = vmatpush.bf16.msra.mxu0 0
      %790 = vmatpush.bf16.msra.mxu0 0
      %791 = vmatpush.bf16.msra.mxu0 0
      %792 = vmatpush.bf16.msra.mxu0 0
      %793 = vmatpush.bf16.msra.mxu0 %v648
      %794 = vmatpush.bf16.msra.mxu0 %v647
      %795 = vmatmul.bf16.gmra.mxu0 %v701
      %v796 = vpop.f32.mrf.mxu0
      %v797 = vadd.f32 %v783, %v796
      %v798 = vpop.f32.mrf.mxu0
      %v799 = vadd.f32 %v785, %v798
      %800 = vdwg.mxu0
      %801 = vst [vmem:[%s245] sm:$0xff] %v797
      %802 = vst [vmem:[%s245 + $0x8] sm:$0xff] %v799
      %p803 = scmp.eq.s32.totalorder %s21, 0
      // Predicated region
      $region33: #{lr_branch_forward.13} parent=31 // pred_check
        %p804 = pneg %p803
      $region34: #{lr_branch_forward.13} parent=31 // pred_check_branch
        %806 = sbr.rel (%p804) target = $region36
      $region35: #{lr_branch_forward.13} parent=31 // pred_region
        %807 = vst [vmem:[%s250] sm:$0x3] 0.0
      $region36: #{lr_branch_forward.13} parent=31 // pred_fallthru
        _
      %v808 = vadd.f32 %v797, %v799
      %v809 = vrot.slane %v808, 4
      %v810 = vadd.f32 %v808, %v809
      %v811 = vrot.slane %v810, 2
      %v812 = vadd.f32 %v810, %v811
      %v813 = vrot.slane %v812, 1
      %v814 = vadd.f32 %v812, %v813
      %v815 = vmul.f32 %v797, %v797
      %v816 = vmul.f32 %v799, %v799
      %v817 = vadd.f32 %v815, %v816
      %v818 = vrot.slane %v817, 4
      %v819 = vadd.f32 %v817, %v818
      %v820 = vrot.slane %v819, 2
      %v821 = vadd.f32 %v819, %v820
      %v822 = vrot.slane %v821, 1
      %v823 = vadd.f32 %v821, %v822
      %vm824 = vcmask 1040384
      %v825 = vsel %vm824, %v814, %v823
      %v826 = vld [vmem:[%s250] sm:$0x3]
      %v827 = vadd.f32 %v826, %v825
      %828 = vst [vmem:[%s250] sm:$0x3] %v827
      %s829 = smul.u32 2, %s21
      %p830 = scmp.lt.s32.totalorder %s20, 1
      %s831 = scalar_select %p830, %s20, 1
      %p832 = scmp.lt.s32.totalorder %s829, 1
      %s833 = scalar_select %p832, %s829, 1
      %s834 = smul.addr %s831, 2
      %s835 = sadd.s32 %s833, %s834
      %s836 = smul.addr %s835, 8
      %s837 = scalar_lea.vmem %s3, %s836
      %p838 = scmp.lt.s32.totalorder %s20, 1
      %s839 = scalar_select %p838, %s20, 1
      %s840 = smul.addr %s839, 2
      %s841 = scalar_lea.vmem %s4, %s840
      // Predicated region
      $region37: #{lr_branch_forward.13} parent=31 // pred_check
        %p842 = pneg %p118
      $region38: #{lr_branch_forward.13} parent=31 // pred_check_branch
        %844 = sbr.rel (%p842) target = $region40
      $region39: #{lr_branch_forward.13} parent=31 // pred_region
        %s845 = smul.u32 2, %s21
      $region40: #{lr_branch_forward.13} parent=31 // pred_fallthru
        _
      // Predicated region
      $region41: #{lr_branch_forward.13} parent=31 // pred_check
        %p846 = pneg %p144
      $region42: #{lr_branch_forward.13} parent=31 // pred_check_branch
        %848 = sbr.rel (%p846) target = $region44
      $region43: #{lr_branch_forward.13} parent=31 // pred_region
        _
      $region44: #{lr_branch_forward.13} parent=31 // pred_fallthru
        _
    $region32: #{lr_branch_forward.13} parent=5 // pred_fallthru
      _
    %p849 = scmp.le.s32.totalorder 2, %s11
    // Predicated region
    $region45: #{lr_branch_forward.13} parent=5 // pred_check
      %p850 = pneg %p849
    $region46: #{lr_branch_forward.13} parent=5 // pred_check_branch
      %852 = sbr.rel (%p850) target = $region48
    $region47: #{lr_branch_forward.13} parent=5 // pred_region
      %s853 = ssub.s32 %s11, 2
      // Predicated region
      $region49: #{lr_branch_forward.13} parent=47 // pred_check
        %p854 = pneg %p124
      $region50: #{lr_branch_forward.13} parent=47 // pred_check_branch
        %856 = sbr.rel (%p854) target = $region52
      $region51: #{lr_branch_forward.13} parent=47 // pred_region
        %s857 = smul.u32 2, %s23
        %p858 = scmp.lt.s32.totalorder %s22, 1
        %s859 = scalar_select %p858, %s22, 1
        %p860 = scmp.lt.s32.totalorder %s857, 1
        %s861 = scalar_select %p860, %s857, 1
        %s862 = smul.addr %s859, 2
        %s863 = sadd.s32 %s861, %s862
        %s864 = smul.addr %s863, 8
        %s865 = scalar_lea.vmem %s3, %s864
      $region52: #{lr_branch_forward.13} parent=47 // pred_fallthru
        _
      // Predicated region
      $region53: #{lr_branch_forward.13} parent=47 // pred_check
        %p866 = pneg %p150
      $region54: #{lr_branch_forward.13} parent=47 // pred_check_branch
        %868 = sbr.rel (%p866) target = $region56
      $region55: #{lr_branch_forward.13} parent=47 // pred_region
        %p869 = scmp.lt.s32.totalorder %s22, 1
        %s870 = scalar_select %p869, %s22, 1
        %s871 = smul.addr %s870, 2
        %s872 = scalar_lea.vmem %s4, %s871
      $region56: #{lr_branch_forward.13} parent=47 // pred_fallthru
        _
    $region48: #{lr_branch_forward.13} parent=5 // pred_fallthru
      _
  $region6: #{lr_branch_forward.13} parent=0 // loop_footer
    %s15 = sadd.s32 1, %s11
  $region7: #{lr_branch_forward.13} parent=0 // loop_footer_branch
    %10 = sbr.rel target = $region3
  $region8: #{lr_branch_forward.13} parent=0 // loop_exit
    _

// kernel: lr_branch_forward.15
$region0: #{lr_branch_forward.15}
  #allocation0 [shape = 'u32[]', space=smem, size = 0x4, offset = 0x4, fixed_abs, tag = 'smem constant byte address 0x4 - core index']
  #allocation1 [shape = 'u32[72,128]{1,0:T(1,128)}', space=vmem, size = 0x9000, scoped, tag = 'internal scratch']
  %s0 = inlined_call_operand.vmem [shape: bf16[8,4], index: 0, kind: input, shape index: {}]
  %s1 = inlined_call_operand.vmem [shape: bf16[2,4,64], index: 1, kind: input, shape index: {}]
  %s2 = inlined_call_operand.vmem [shape: f32[2,8,64], index: 2, kind: output, shape index: {}]
  %s3 = sld [smem:[#allocation0]]
  $region41: #{lr_branch_forward.15} parent=0
    _
  %s5 = ssub.s32 1, %s3
  %s6 = scalar_select 0, %s5, %s3
  loop: start=0, step=1, limit=4
  $region2: #{lr_branch_forward.15} parent=0 // loop_pre_header
    _
  $region3: #{lr_branch_forward.15} parent=0 // loop_header
    %s8 = sphi 0, %s12
    %p9 = scmp.ge.s32.totalorder %s8, 4
    %s16 = sphi 0, %s16
    %s18 = sphi 0, %s16
    %s19 = sphi 0, %s18
    %s33 = sphi 0, %s19
    %s39 = sphi 0, %s41
    %s42 = sphi 0, %s39
    %s43 = sphi 0, %s42
    %s59 = sphi 0, %s43
    %s65 = sphi 0, %s67
    %s68 = sphi 0, %s65
    %s69 = sphi 0, %s68
    %s85 = sphi 0, %s69
  $region4: #{lr_branch_forward.15} parent=0 // loop_header_branch
    %11 = sbr.rel (%p9) target = $region8
  $region5: #{lr_branch_forward.15} parent=0 // loop_body
    %s13 = ssub.s32 %s8, 1
    %s14 = ssub.s32 %s8, 2
    %s15 = sadd.s32 %s8, 1
    %s17 = sadd.s32 %s16, 1
    %p20 = scmp.eq.s32.totalorder %s8, 1
    %p21 = scmp.ne.s32.totalorder %s16, %s18
    %p22 = scmp.eq.s32.totalorder %s8, 0
    %p23 = por %p21, %p22
    %p24 = scmp.ne.s32.totalorder %s16, %s18
    %p25 = scmp.eq.s32.totalorder %s13, 1
    %p26 = por %p24, %p25
    %p27 = scmp.ne.s32.totalorder %s18, %s19
    %p28 = scmp.eq.s32.totalorder %s13, 0
    %p29 = por %p27, %p28
    %p30 = scmp.ne.s32.totalorder %s18, %s19
    %p31 = scmp.eq.s32.totalorder %s14, 1
    %p32 = por %p30, %p31
    %p34 = scmp.ne.s32.totalorder %s19, %s33
    %p35 = scmp.eq.s32.totalorder %s14, 0
    %p36 = por %p34, %p35
    %s37 = ssub.s32 %s8, %s15
    %p38 = scmp.eq.s32.totalorder %s37, 0
    %s40 = sadd.s32 %s39, 1
    %s41 = scalar_select %p38, %s39, %s40
    %p44 = pneg %p38
    %p45 = scmp.eq.s32.totalorder %s8, 1
    %p46 = por %p44, %p45
    %p47 = scmp.ne.s32.totalorder %s39, %s42
    %p48 = scmp.eq.s32.totalorder %s8, 0
    %p49 = por %p47, %p48
    %p50 = scmp.ne.s32.totalorder %s39, %s42
    %p51 = scmp.eq.s32.totalorder %s13, 1
    %p52 = por %p50, %p51
    %p53 = scmp.ne.s32.totalorder %s42, %s43
    %p54 = scmp.eq.s32.totalorder %s13, 0
    %p55 = por %p53, %p54
    %p56 = scmp.ne.s32.totalorder %s42, %s43
    %p57 = scmp.eq.s32.totalorder %s14, 1
    %p58 = por %p56, %p57
    %p60 = scmp.ne.s32.totalorder %s43, %s59
    %p61 = scmp.eq.s32.totalorder %s14, 0
    %p62 = por %p60, %p61
    %s63 = ssub.s32 %s8, %s15
    %p64 = scmp.eq.s32.totalorder %s63, 0
    %s66 = sadd.s32 %s65, 1
    %s67 = scalar_select %p64, %s65, %s66
    %p70 = pneg %p64
    %p71 = scmp.eq.s32.totalorder %s8, 1
    %p72 = por %p70, %p71
    %p73 = scmp.ne.s32.totalorder %s65, %s68
    %p74 = scmp.eq.s32.totalorder %s8, 0
    %p75 = por %p73, %p74
    %p76 = scmp.ne.s32.totalorder %s65, %s68
    %p77 = scmp.eq.s32.totalorder %s13, 1
    %p78 = por %p76, %p77
    %p79 = scmp.ne.s32.totalorder %s68, %s69
    %p80 = scmp.eq.s32.totalorder %s13, 0
    %p81 = por %p79, %p80
    %p82 = scmp.ne.s32.totalorder %s68, %s69
    %p83 = scmp.eq.s32.totalorder %s14, 1
    %p84 = por %p82, %p83
    %p86 = scmp.ne.s32.totalorder %s69, %s85
    %p87 = scmp.eq.s32.totalorder %s14, 0
    %p88 = por %p86, %p87
    %p89 = scmp.le.s32.totalorder 1, %s8
    %p90 = scmp.lt.s32.totalorder %s8, 3
    %p91 = pnand %p89, %p90
    %p92 = pneg %p91
    // Predicated region
    $region9: #{lr_branch_forward.15} parent=5 // pred_check
      _
    $region10: #{lr_branch_forward.15} parent=5 // pred_check_branch
      %94 = sbr.rel (%p91) target = $region12
    $region11: #{lr_branch_forward.15} parent=5 // pred_region
      %s95 = ssub.s32 %s8, 1
      // Predicated region
      $region13: #{lr_branch_forward.15} parent=11 // pred_check
        %p96 = pneg %p29
      $region14: #{lr_branch_forward.15} parent=11 // pred_check_branch
        %98 = sbr.rel (%p96) target = $region16
      $region15: #{lr_branch_forward.15} parent=11 // pred_region
        _
      $region16: #{lr_branch_forward.15} parent=11 // pred_fallthru
        _
    $region12: #{lr_branch_forward.15} parent=5 // pred_fallthru
      _
    %p99 = scmp.lt.s32.totalorder %s8, 2
    // Predicated region
    $region17: #{lr_branch_forward.15} parent=5 // pred_check
      %p100 = pneg %p99
    $region18: #{lr_branch_forward.15} parent=5 // pred_check_branch
      %102 = sbr.rel (%p100) target = $region20
    $region19: #{lr_branch_forward.15} parent=5 // pred_region
      // Predicated region
      $region21: #{lr_branch_forward.15} parent=19 // pred_check
        %p103 = pneg %p49
      $region22: #{lr_branch_forward.15} parent=19 // pred_check_branch
        %105 = sbr.rel (%p103) target = $region24
      $region23: #{lr_branch_forward.15} parent=19 // pred_region
        %p106 = scmp.lt.s32.totalorder %s8, 1
        %s107 = scalar_select %p106, %s8, 1
        %s108 = smul.addr %s107, 2
        %s109 = scalar_lea.vmem %s1, %s108
      $region24: #{lr_branch_forward.15} parent=19 // pred_fallthru
        _
    $region20: #{lr_branch_forward.15} parent=5 // pred_fallthru
      _
    %p110 = scmp.le.s32.totalorder 1, %s8
    %p111 = scmp.lt.s32.totalorder %s8, 3
    %p112 = pnand %p110, %p111
    %p113 = pneg %p112
    // Predicated region
    $region25: #{lr_branch_forward.15} parent=5 // pred_check
      _
    $region26: #{lr_branch_forward.15} parent=5 // pred_check_branch
      %115 = sbr.rel (%p112) target = $region28
    $region27: #{lr_branch_forward.15} parent=5 // pred_region
      %s116 = ssub.s32 %s8, 1
      %p117 = pneg %p29
      %p118 = pneg %p26
      %p119 = scmp.lt.s32.totalorder %s13, 1
      %s120 = scalar_select %p119, %s13, 1
      %s121 = smul.addr %s120, 2
      %s122 = scalar_lea.vmem %s1, %s121
      %p123 = pneg %p55
      %p124 = pneg %p52
      %p125 = pneg %p81
      %p126 = pneg %p78
      %p127 = scmp.lt.s32.totalorder %s13, 1
      %s128 = scalar_select %p127, %s13, 1
      %s129 = smul.addr %s128, 8
      %s130 = scalar_lea.vmem %s2, %s129
      %p131 = scmp.lt.s32.totalorder %s13, 1
      %s132 = scalar_select %p131, %s13, 1
      %s133 = smul.addr %s132, 2
      %s134 = scalar_lea.vmem %s1, %s133
      %p135 = scmp.lt.s32.totalorder %s13, 1
      %s136 = scalar_select %p135, %s13, 1
      %s137 = smul.addr %s136, 8
      %s138 = scalar_lea.vmem %s2, %s137
      %v140 = vld [vmem:[%s0] sm:$0xf]
      %v141 = vld [vmem:[%s134] sm:$0x3]
      %vm142 = vcmask 31744
      %v144 = vsel %vm142, %v140, 0
      %vm146 = vcmask 1041408
      %v148 = vsel %vm146, %v141, 0
      %150 = vmatpush.bf16.msra.mxu0 0
      %151 = vmatpush.bf16.msra.mxu0 0
      %152 = vmatpush.bf16.msra.mxu0 0
      %153 = vmatpush.bf16.msra.mxu0 0
      %154 = vmatpush.bf16.msra.mxu0 0
      %155 = vmatpush.bf16.msra.mxu0 0
      %156 = vmatpush.bf16.msra.mxu0 0
      %157 = vmatpush.bf16.msra.mxu0 %v148
      %158 = vmatmul.bf16.gmra.mxu0 %v144
      %v159 = vpop.f32.mrf.mxu0
      %v160 = vadd.f32 0.0, %v159
      %v161 = vpop.f32.mrf.mxu0
      %162 = vdwg.mxu0
      %vm163 = vcmask 523264
      %164 = vst.msk [vmem:[%s138] sm:$0xff] %vm163, %v160
      %p165 = scmp.lt.s32.totalorder %s13, 1
      %s166 = scalar_select %p165, %s13, 1
      %s167 = smul.addr %s166, 8
      %s168 = scalar_lea.vmem %s2, %s167
      // Predicated region
      $region29: #{lr_branch_forward.15} parent=27 // pred_check
        %p169 = pneg %p78
      $region30: #{lr_branch_forward.15} parent=27 // pred_check_branch
        %171 = sbr.rel (%p169) target = $region32
      $region31: #{lr_branch_forward.15} parent=27 // pred_region
        _
      $region32: #{lr_branch_forward.15} parent=27 // pred_fallthru
        _
    $region28: #{lr_branch_forward.15} parent=5 // pred_fallthru
      _
    %p172 = scmp.le.s32.totalorder 2, %s8
    // Predicated region
    $region33: #{lr_branch_forward.15} parent=5 // pred_check
      %p173 = pneg %p172
    $region34: #{lr_branch_forward.15} parent=5 // pred_check_branch
      %175 = sbr.rel (%p173) target = $region36
    $region35: #{lr_branch_forward.15} parent=5 // pred_region
      %s176 = ssub.s32 %s8, 2
      // Predicated region
      $region37: #{lr_branch_forward.15} parent=35 // pred_check
        %p177 = pneg %p84
      $region38: #{lr_branch_forward.15} parent=35 // pred_check_branch
        %179 = sbr.rel (%p177) target = $region40
      $region39: #{lr_branch_forward.15} parent=35 // pred_region
        %p180 = scmp.lt.s32.totalorder %s14, 1
        %s181 = scalar_select %p180, %s14, 1
        %s182 = smul.addr %s181, 8
        %s183 = scalar_lea.vmem %s2, %s182
      $region40: #{lr_branch_forward.15} parent=35 // pred_fallthru
        _
    $region36: #{lr_branch_forward.15} parent=5 // pred_fallthru
      _
  $region6: #{lr_branch_forward.15} parent=0 // loop_footer
    %s12 = sadd.s32 1, %s8
  $region7: #{lr_branch_forward.15} parent=0 // loop_footer_branch
    %7 = sbr.rel target = $region3
  $region8: #{lr_branch_forward.15} parent=0 // loop_exit
    _

// kernel: lr_branch_forward.16
$region0: #{lr_branch_forward.16}
  #allocation0 [shape = 'u32[]', space=smem, size = 0x4, offset = 0x4, fixed_abs, tag = 'smem constant byte address 0x4 - core index']
  #allocation1 [shape = 'u32[72,128]{1,0:T(1,128)}', space=vmem, size = 0x9000, scoped, tag = 'internal scratch']
  %s0 = inlined_call_operand.vmem [shape: bf16[8,4], index: 0, kind: input, shape index: {}]
  %s1 = inlined_call_operand.vmem [shape: bf16[2,8,4,16], index: 1, kind: input, shape index: {}]
  %s2 = inlined_call_operand.vmem [shape: f32[2,8,8,16], index: 2, kind: output, shape index: {}]
  %s3 = sld [smem:[#allocation0]]
  $region41: #{lr_branch_forward.16} parent=0
    _
  %s5 = ssub.s32 1, %s3
  %s6 = scalar_select 0, %s5, %s3
  loop: start=0, step=1, limit=4
  $region2: #{lr_branch_forward.16} parent=0 // loop_pre_header
    _
  $region3: #{lr_branch_forward.16} parent=0 // loop_header
    %s8 = sphi 0, %s12
    %p9 = scmp.ge.s32.totalorder %s8, 4
    %s16 = sphi 0, %s16
    %s18 = sphi 0, %s16
    %s19 = sphi 0, %s18
    %s33 = sphi 0, %s19
    %s39 = sphi 0, %s41
    %s42 = sphi 0, %s39
    %s43 = sphi 0, %s42
    %s59 = sphi 0, %s43
    %s65 = sphi 0, %s67
    %s68 = sphi 0, %s65
    %s69 = sphi 0, %s68
    %s85 = sphi 0, %s69
  $region4: #{lr_branch_forward.16} parent=0 // loop_header_branch
    %11 = sbr.rel (%p9) target = $region8
  $region5: #{lr_branch_forward.16} parent=0 // loop_body
    %s13 = ssub.s32 %s8, 1
    %s14 = ssub.s32 %s8, 2
    %s15 = sadd.s32 %s8, 1
    %s17 = sadd.s32 %s16, 1
    %p20 = scmp.eq.s32.totalorder %s8, 1
    %p21 = scmp.ne.s32.totalorder %s16, %s18
    %p22 = scmp.eq.s32.totalorder %s8, 0
    %p23 = por %p21, %p22
    %p24 = scmp.ne.s32.totalorder %s16, %s18
    %p25 = scmp.eq.s32.totalorder %s13, 1
    %p26 = por %p24, %p25
    %p27 = scmp.ne.s32.totalorder %s18, %s19
    %p28 = scmp.eq.s32.totalorder %s13, 0
    %p29 = por %p27, %p28
    %p30 = scmp.ne.s32.totalorder %s18, %s19
    %p31 = scmp.eq.s32.totalorder %s14, 1
    %p32 = por %p30, %p31
    %p34 = scmp.ne.s32.totalorder %s19, %s33
    %p35 = scmp.eq.s32.totalorder %s14, 0
    %p36 = por %p34, %p35
    %s37 = ssub.s32 %s8, %s15
    %p38 = scmp.eq.s32.totalorder %s37, 0
    %s40 = sadd.s32 %s39, 1
    %s41 = scalar_select %p38, %s39, %s40
    %p44 = pneg %p38
    %p45 = scmp.eq.s32.totalorder %s8, 1
    %p46 = por %p44, %p45
    %p47 = scmp.ne.s32.totalorder %s39, %s42
    %p48 = scmp.eq.s32.totalorder %s8, 0
    %p49 = por %p47, %p48
    %p50 = scmp.ne.s32.totalorder %s39, %s42
    %p51 = scmp.eq.s32.totalorder %s13, 1
    %p52 = por %p50, %p51
    %p53 = scmp.ne.s32.totalorder %s42, %s43
    %p54 = scmp.eq.s32.totalorder %s13, 0
    %p55 = por %p53, %p54
    %p56 = scmp.ne.s32.totalorder %s42, %s43
    %p57 = scmp.eq.s32.totalorder %s14, 1
    %p58 = por %p56, %p57
    %p60 = scmp.ne.s32.totalorder %s43, %s59
    %p61 = scmp.eq.s32.totalorder %s14, 0
    %p62 = por %p60, %p61
    %s63 = ssub.s32 %s8, %s15
    %p64 = scmp.eq.s32.totalorder %s63, 0
    %s66 = sadd.s32 %s65, 1
    %s67 = scalar_select %p64, %s65, %s66
    %p70 = pneg %p64
    %p71 = scmp.eq.s32.totalorder %s8, 1
    %p72 = por %p70, %p71
    %p73 = scmp.ne.s32.totalorder %s65, %s68
    %p74 = scmp.eq.s32.totalorder %s8, 0
    %p75 = por %p73, %p74
    %p76 = scmp.ne.s32.totalorder %s65, %s68
    %p77 = scmp.eq.s32.totalorder %s13, 1
    %p78 = por %p76, %p77
    %p79 = scmp.ne.s32.totalorder %s68, %s69
    %p80 = scmp.eq.s32.totalorder %s13, 0
    %p81 = por %p79, %p80
    %p82 = scmp.ne.s32.totalorder %s68, %s69
    %p83 = scmp.eq.s32.totalorder %s14, 1
    %p84 = por %p82, %p83
    %p86 = scmp.ne.s32.totalorder %s69, %s85
    %p87 = scmp.eq.s32.totalorder %s14, 0
    %p88 = por %p86, %p87
    %p89 = scmp.le.s32.totalorder 1, %s8
    %p90 = scmp.lt.s32.totalorder %s8, 3
    %p91 = pnand %p89, %p90
    %p92 = pneg %p91
    // Predicated region
    $region9: #{lr_branch_forward.16} parent=5 // pred_check
      _
    $region10: #{lr_branch_forward.16} parent=5 // pred_check_branch
      %94 = sbr.rel (%p91) target = $region12
    $region11: #{lr_branch_forward.16} parent=5 // pred_region
      %s95 = ssub.s32 %s8, 1
      // Predicated region
      $region13: #{lr_branch_forward.16} parent=11 // pred_check
        %p96 = pneg %p29
      $region14: #{lr_branch_forward.16} parent=11 // pred_check_branch
        %98 = sbr.rel (%p96) target = $region16
      $region15: #{lr_branch_forward.16} parent=11 // pred_region
        _
      $region16: #{lr_branch_forward.16} parent=11 // pred_fallthru
        _
    $region12: #{lr_branch_forward.16} parent=5 // pred_fallthru
      _
    %p99 = scmp.lt.s32.totalorder %s8, 2
    // Predicated region
    $region17: #{lr_branch_forward.16} parent=5 // pred_check
      %p100 = pneg %p99
    $region18: #{lr_branch_forward.16} parent=5 // pred_check_branch
      %102 = sbr.rel (%p100) target = $region20
    $region19: #{lr_branch_forward.16} parent=5 // pred_region
      // Predicated region
      $region21: #{lr_branch_forward.16} parent=19 // pred_check
        %p103 = pneg %p49
      $region22: #{lr_branch_forward.16} parent=19 // pred_check_branch
        %105 = sbr.rel (%p103) target = $region24
      $region23: #{lr_branch_forward.16} parent=19 // pred_region
        %p106 = scmp.lt.s32.totalorder %s8, 1
        %s107 = scalar_select %p106, %s8, 1
        %s108 = smul.addr %s107, 8
        %s109 = smul.addr %s108, 2
        %s110 = scalar_lea.vmem %s1, %s109
      $region24: #{lr_branch_forward.16} parent=19 // pred_fallthru
        _
    $region20: #{lr_branch_forward.16} parent=5 // pred_fallthru
      _
    %p111 = scmp.le.s32.totalorder 1, %s8
    %p112 = scmp.lt.s32.totalorder %s8, 3
    %p113 = pnand %p111, %p112
    %p114 = pneg %p113
    // Predicated region
    $region25: #{lr_branch_forward.16} parent=5 // pred_check
      _
    $region26: #{lr_branch_forward.16} parent=5 // pred_check_branch
      %116 = sbr.rel (%p113) target = $region28
    $region27: #{lr_branch_forward.16} parent=5 // pred_region
      %s117 = ssub.s32 %s8, 1
      %p118 = pneg %p29
      %p119 = pneg %p26
      %p120 = scmp.lt.s32.totalorder %s13, 1
      %s121 = scalar_select %p120, %s13, 1
      %s122 = smul.addr %s121, 8
      %s123 = smul.addr %s122, 2
      %s124 = scalar_lea.vmem %s1, %s123
      %p125 = pneg %p55
      %p126 = pneg %p52
      %p127 = pneg %p81
      %p128 = pneg %p78
      %p129 = scmp.lt.s32.totalorder %s13, 1
      %s130 = scalar_select %p129, %s13, 1
      %s131 = smul.addr %s130, 8
      %s132 = smul.addr %s131, 8
      %s133 = scalar_lea.vmem %s2, %s132
      %p134 = scmp.lt.s32.totalorder %s13, 1
      %s135 = scalar_select %p134, %s13, 1
      %s136 = smul.addr %s135, 8
      %s137 = smul.addr %s136, 2
      %s138 = scalar_lea.vmem %s1, %s137
      %p139 = scmp.lt.s32.totalorder %s13, 1
      %s140 = scalar_select %p139, %s13, 1
      %s141 = smul.addr %s140, 8
      %s142 = smul.addr %s141, 8
      %s143 = scalar_lea.vmem %s2, %s142
      %v145 = vld [vmem:[%s0] sm:$0xf]
      %v146 = vld [vmem:[%s138] sm:$0x3]
      %v147 = vld [vmem:[%s138 + $0x2] sm:$0x3]
      %v148 = vld [vmem:[%s138 + $0x4] sm:$0x3]
      %v149 = vld [vmem:[%s138 + $0x6] sm:$0x3]
      %v150 = vld [vmem:[%s138 + $0x8] sm:$0x3]
      %v151 = vld [vmem:[%s138 + $0xa] sm:$0x3]
      %v152 = vld [vmem:[%s138 + $0xc] sm:$0x3]
      %v153 = vld [vmem:[%s138 + $0xe] sm:$0x3]
      %vm154 = vcmask 31744
      %v156 = vsel %vm154, %v145, 0
      %vm158 = vcmask 1041408
      %v160 = vsel %vm158, %v146, 0
      %162 = vmatpush.bf16.msra.mxu0 0
      %163 = vmatpush.bf16.msra.mxu0 0
      %164 = vmatpush.bf16.msra.mxu0 0
      %165 = vmatpush.bf16.msra.mxu0 0
      %166 = vmatpush.bf16.msra.mxu0 0
      %167 = vmatpush.bf16.msra.mxu0 0
      %168 = vmatpush.bf16.msra.mxu0 0
      %169 = vmatpush.bf16.msra.mxu0 %v160
      %170 = vmatmul.bf16.gmra.mxu0 %v156
      %v171 = vpop.f32.mrf.mxu0
      %v172 = vadd.f32 0.0, %v171
      %v173 = vpop.f32.mrf.mxu0
      %174 = vdwg.mxu0
      %v176 = vsel %vm158, %v147, 0
      %178 = vmatpush.bf16.msra.mxu0 0
      %179 = vmatpush.bf16.msra.mxu0 0
      %180 = vmatpush.bf16.msra.mxu0 0
      %181 = vmatpush.bf16.msra.mxu0 0
      %182 = vmatpush.bf16.msra.mxu0 0
      %183 = vmatpush.bf16.msra.mxu0 0
      %184 = vmatpush.bf16.msra.mxu0 0
      %185 = vmatpush.bf16.msra.mxu0 %v176
      %186 = vmatmul.bf16.gmra.mxu0 %v156
      %v187 = vpop.f32.mrf.mxu0
      %v188 = vadd.f32 0.0, %v187
      %v189 = vpop.f32.mrf.mxu0
      %190 = vdwg.mxu0
      %v192 = vsel %vm158, %v148, 0
      %194 = vmatpush.bf16.msra.mxu0 0
      %195 = vmatpush.bf16.msra.mxu0 0
      %196 = vmatpush.bf16.msra.mxu0 0
      %197 = vmatpush.bf16.msra.mxu0 0
      %198 = vmatpush.bf16.msra.mxu0 0
      %199 = vmatpush.bf16.msra.mxu0 0
      %200 = vmatpush.bf16.msra.mxu0 0
      %201 = vmatpush.bf16.msra.mxu0 %v192
      %202 = vmatmul.bf16.gmra.mxu0 %v156
      %v203 = vpop.f32.mrf.mxu0
      %v204 = vadd.f32 0.0, %v203
      %v205 = vpop.f32.mrf.mxu0
      %206 = vdwg.mxu0
      %v208 = vsel %vm158, %v149, 0
      %210 = vmatpush.bf16.msra.mxu0 0
      %211 = vmatpush.bf16.msra.mxu0 0
      %212 = vmatpush.bf16.msra.mxu0 0
      %213 = vmatpush.bf16.msra.mxu0 0
      %214 = vmatpush.bf16.msra.mxu0 0
      %215 = vmatpush.bf16.msra.mxu0 0
      %216 = vmatpush.bf16.msra.mxu0 0
      %217 = vmatpush.bf16.msra.mxu0 %v208
      %218 = vmatmul.bf16.gmra.mxu0 %v156
      %v219 = vpop.f32.mrf.mxu0
      %v220 = vadd.f32 0.0, %v219
      %v221 = vpop.f32.mrf.mxu0
      %222 = vdwg.mxu0
      %v224 = vsel %vm158, %v150, 0
      %226 = vmatpush.bf16.msra.mxu0 0
      %227 = vmatpush.bf16.msra.mxu0 0
      %228 = vmatpush.bf16.msra.mxu0 0
      %229 = vmatpush.bf16.msra.mxu0 0
      %230 = vmatpush.bf16.msra.mxu0 0
      %231 = vmatpush.bf16.msra.mxu0 0
      %232 = vmatpush.bf16.msra.mxu0 0
      %233 = vmatpush.bf16.msra.mxu0 %v224
      %234 = vmatmul.bf16.gmra.mxu0 %v156
      %v235 = vpop.f32.mrf.mxu0
      %v236 = vadd.f32 0.0, %v235
      %v237 = vpop.f32.mrf.mxu0
      %238 = vdwg.mxu0
      %v240 = vsel %vm158, %v151, 0
      %242 = vmatpush.bf16.msra.mxu0 0
      %243 = vmatpush.bf16.msra.mxu0 0
      %244 = vmatpush.bf16.msra.mxu0 0
      %245 = vmatpush.bf16.msra.mxu0 0
      %246 = vmatpush.bf16.msra.mxu0 0
      %247 = vmatpush.bf16.msra.mxu0 0
      %248 = vmatpush.bf16.msra.mxu0 0
      %249 = vmatpush.bf16.msra.mxu0 %v240
      %250 = vmatmul.bf16.gmra.mxu0 %v156
      %v251 = vpop.f32.mrf.mxu0
      %v252 = vadd.f32 0.0, %v251
      %v253 = vpop.f32.mrf.mxu0
      %254 = vdwg.mxu0
      %v256 = vsel %vm158, %v152, 0
      %258 = vmatpush.bf16.msra.mxu0 0
      %259 = vmatpush.bf16.msra.mxu0 0
      %260 = vmatpush.bf16.msra.mxu0 0
      %261 = vmatpush.bf16.msra.mxu0 0
      %262 = vmatpush.bf16.msra.mxu0 0
      %263 = vmatpush.bf16.msra.mxu0 0
      %264 = vmatpush.bf16.msra.mxu0 0
      %265 = vmatpush.bf16.msra.mxu0 %v256
      %266 = vmatmul.bf16.gmra.mxu0 %v156
      %v267 = vpop.f32.mrf.mxu0
      %v268 = vadd.f32 0.0, %v267
      %v269 = vpop.f32.mrf.mxu0
      %270 = vdwg.mxu0
      %v272 = vsel %vm158, %v153, 0
      %274 = vmatpush.bf16.msra.mxu0 0
      %275 = vmatpush.bf16.msra.mxu0 0
      %276 = vmatpush.bf16.msra.mxu0 0
      %277 = vmatpush.bf16.msra.mxu0 0
      %278 = vmatpush.bf16.msra.mxu0 0
      %279 = vmatpush.bf16.msra.mxu0 0
      %280 = vmatpush.bf16.msra.mxu0 0
      %281 = vmatpush.bf16.msra.mxu0 %v272
      %282 = vmatmul.bf16.gmra.mxu0 %v156
      %v283 = vpop.f32.mrf.mxu0
      %v284 = vadd.f32 0.0, %v283
      %v285 = vpop.f32.mrf.mxu0
      %286 = vdwg.mxu0
      %vm287 = vcmask 130048
      %288 = vst.msk [vmem:[%s143] sm:$0xff] %vm287, %v172
      %289 = vst.msk [vmem:[%s143 + $0x8] sm:$0xff] %vm287, %v188
      %290 = vst.msk [vmem:[%s143 + $0x10] sm:$0xff] %vm287, %v204
      %291 = vst.msk [vmem:[%s143 + $0x18] sm:$0xff] %vm287, %v220
      %292 = vst.msk [vmem:[%s143 + $0x20] sm:$0xff] %vm287, %v236
      %293 = vst.msk [vmem:[%s143 + $0x28] sm:$0xff] %vm287, %v252
      %294 = vst.msk [vmem:[%s143 + $0x30] sm:$0xff] %vm287, %v268
      %295 = vst.msk [vmem:[%s143 + $0x38] sm:$0xff] %vm287, %v284
      %p296 = scmp.lt.s32.totalorder %s13, 1
      %s297 = scalar_select %p296, %s13, 1
      %s298 = smul.addr %s297, 8
      %s299 = smul.addr %s298, 8
      %s300 = scalar_lea.vmem %s2, %s299
      // Predicated region
      $region29: #{lr_branch_forward.16} parent=27 // pred_check
        %p301 = pneg %p78
      $region30: #{lr_branch_forward.16} parent=27 // pred_check_branch
        %303 = sbr.rel (%p301) target = $region32
      $region31: #{lr_branch_forward.16} parent=27 // pred_region
        _
      $region32: #{lr_branch_forward.16} parent=27 // pred_fallthru
        _
    $region28: #{lr_branch_forward.16} parent=5 // pred_fallthru
      _
    %p304 = scmp.le.s32.totalorder 2, %s8
    // Predicated region
    $region33: #{lr_branch_forward.16} parent=5 // pred_check
      %p305 = pneg %p304
    $region34: #{lr_branch_forward.16} parent=5 // pred_check_branch
      %307 = sbr.rel (%p305) target = $region36
    $region35: #{lr_branch_forward.16} parent=5 // pred_region
      %s308 = ssub.s32 %s8, 2
      // Predicated region
      $region37: #{lr_branch_forward.16} parent=35 // pred_check
        %p309 = pneg %p84
      $region38: #{lr_branch_forward.16} parent=35 // pred_check_branch
        %311 = sbr.rel (%p309) target = $region40
      $region39: #{lr_branch_forward.16} parent=35 // pred_region
        %p312 = scmp.lt.s32.totalorder %s14, 1
        %s313 = scalar_select %p312, %s14, 1
        %s314 = smul.addr %s313, 8
        %s315 = smul.addr %s314, 8
        %s316 = scalar_lea.vmem %s2, %s315
      $region40: #{lr_branch_forward.16} parent=35 // pred_fallthru
        _
    $region36: #{lr_branch_forward.16} parent=5 // pred_fallthru
      _
  $region6: #{lr_branch_forward.16} parent=0 // loop_footer
    %s12 = sadd.s32 1, %s8
  $region7: #{lr_branch_forward.16} parent=0 // loop_footer_branch
    %7 = sbr.rel target = $region3
  $region8: #{lr_branch_forward.16} parent=0 // loop_exit
    _

// kernel: lr_branch_forward.18
$region0: #{lr_branch_forward.18}
  #allocation0 [shape = 'u32[]', space=smem, size = 0x4, offset = 0x4, fixed_abs, tag = 'smem constant byte address 0x4 - core index']
  #allocation1 [shape = 'u32[72,128]{1,0:T(1,128)}', space=vmem, size = 0x9000, scoped, tag = 'internal scratch']
  %s0 = inlined_call_operand.vmem [shape: f32[2,64,128], index: 0, kind: input, shape index: {}]
  %s1 = inlined_call_operand.vmem [shape: f32[2,1,128], index: 1, kind: input, shape index: {}]
  %s2 = inlined_call_operand.vmem [shape: f32[2,1,128], index: 2, kind: input, shape index: {}]
  %s3 = inlined_call_operand.vmem [shape: f32[2,64,128], index: 3, kind: output, shape index: {}]
  %s4 = sld [smem:[#allocation0]]
  $region45: #{lr_branch_forward.18} parent=0
    _
  %s6 = ssub.s32 1, %s4
  %s7 = scalar_select 0, %s6, %s4
  loop: start=0, step=1, limit=4
  $region2: #{lr_branch_forward.18} parent=0 // loop_pre_header
    _
  $region3: #{lr_branch_forward.18} parent=0 // loop_header
    %s9 = sphi 0, %s13
    %p10 = scmp.ge.s32.totalorder %s9, 4
    %s16 = sphi 0, %s28
    %s17 = sphi 0, %s24
    %s18 = sphi 0, %s16
    %s19 = sphi 0, %s17
    %s20 = sphi 0, %s18
    %s21 = sphi 0, %s19
    %s33 = sphi 0, %s35
    %s36 = sphi 0, %s33
    %s37 = sphi 0, %s36
    %s53 = sphi 0, %s37
    %s59 = sphi 0, %s61
    %s62 = sphi 0, %s59
    %s63 = sphi 0, %s62
    %s79 = sphi 0, %s63
    %s85 = sphi 0, %s87
    %s88 = sphi 0, %s85
    %s89 = sphi 0, %s88
    %s105 = sphi 0, %s89
    %s113 = sphi 0, %s115
    %s116 = sphi 0, %s113
    %s117 = sphi 0, %s116
    %s133 = sphi 0, %s117
  $region4: #{lr_branch_forward.18} parent=0 // loop_header_branch
    %12 = sbr.rel (%p10) target = $region8
  $region5: #{lr_branch_forward.18} parent=0 // loop_body
    %s14 = ssub.s32 %s9, 1
    %s15 = ssub.s32 %s9, 2
    %s22 = sadd.s32 1, %s17
    %p23 = scmp.ge.s32.totalorder %s22, 1
    %s24 = scalar_select %p23, 0, %s22
    %s25 = sadd.s32 1, %s16
    %s26 = scalar_select %p23, %s25, %s16
    %p27 = scmp.ge.s32.totalorder %s26, 2
    %s28 = scalar_select %p27, 0, %s26
    %s29 = ssub.s32 %s16, %s28
    %s30 = ssub.s32 %s17, %s24
    %s31 = sor.u32 %s29, %s30
    %p32 = scmp.eq.s32.totalorder %s31, 0
    %s34 = sadd.s32 %s33, 1
    %s35 = scalar_select %p32, %s33, %s34
    %p38 = pneg %p32
    %p39 = scmp.eq.s32.totalorder %s9, 1
    %p40 = por %p38, %p39
    %p41 = scmp.ne.s32.totalorder %s33, %s36
    %p42 = scmp.eq.s32.totalorder %s9, 0
    %p43 = por %p41, %p42
    %p44 = scmp.ne.s32.totalorder %s33, %s36
    %p45 = scmp.eq.s32.totalorder %s14, 1
    %p46 = por %p44, %p45
    %p47 = scmp.ne.s32.totalorder %s36, %s37
    %p48 = scmp.eq.s32.totalorder %s14, 0
    %p49 = por %p47, %p48
    %p50 = scmp.ne.s32.totalorder %s36, %s37
    %p51 = scmp.eq.s32.totalorder %s15, 1
    %p52 = por %p50, %p51
    %p54 = scmp.ne.s32.totalorder %s37, %s53
    %p55 = scmp.eq.s32.totalorder %s15, 0
    %p56 = por %p54, %p55
    %s57 = ssub.s32 %s16, %s28
    %p58 = scmp.eq.s32.totalorder %s57, 0
    %s60 = sadd.s32 %s59, 1
    %s61 = scalar_select %p58, %s59, %s60
    %p64 = pneg %p58
    %p65 = scmp.eq.s32.totalorder %s9, 1
    %p66 = por %p64, %p65
    %p67 = scmp.ne.s32.totalorder %s59, %s62
    %p68 = scmp.eq.s32.totalorder %s9, 0
    %p69 = por %p67, %p68
    %p70 = scmp.ne.s32.totalorder %s59, %s62
    %p71 = scmp.eq.s32.totalorder %s14, 1
    %p72 = por %p70, %p71
    %p73 = scmp.ne.s32.totalorder %s62, %s63
    %p74 = scmp.eq.s32.totalorder %s14, 0
    %p75 = por %p73, %p74
    %p76 = scmp.ne.s32.totalorder %s62, %s63
    %p77 = scmp.eq.s32.totalorder %s15, 1
    %p78 = por %p76, %p77
    %p80 = scmp.ne.s32.totalorder %s63, %s79
    %p81 = scmp.eq.s32.totalorder %s15, 0
    %p82 = por %p80, %p81
    %s83 = ssub.s32 %s16, %s28
    %p84 = scmp.eq.s32.totalorder %s83, 0
    %s86 = sadd.s32 %s85, 1
    %s87 = scalar_select %p84, %s85, %s86
    %p90 = pneg %p84
    %p91 = scmp.eq.s32.totalorder %s9, 1
    %p92 = por %p90, %p91
    %p93 = scmp.ne.s32.totalorder %s85, %s88
    %p94 = scmp.eq.s32.totalorder %s9, 0
    %p95 = por %p93, %p94
    %p96 = scmp.ne.s32.totalorder %s85, %s88
    %p97 = scmp.eq.s32.totalorder %s14, 1
    %p98 = por %p96, %p97
    %p99 = scmp.ne.s32.totalorder %s88, %s89
    %p100 = scmp.eq.s32.totalorder %s14, 0
    %p101 = por %p99, %p100
    %p102 = scmp.ne.s32.totalorder %s88, %s89
    %p103 = scmp.eq.s32.totalorder %s15, 1
    %p104 = por %p102, %p103
    %p106 = scmp.ne.s32.totalorder %s89, %s105
    %p107 = scmp.eq.s32.totalorder %s15, 0
    %p108 = por %p106, %p107
    %s109 = ssub.s32 %s16, %s28
    %s110 = ssub.s32 %s17, %s24
    %s111 = sor.u32 %s109, %s110
    %p112 = scmp.eq.s32.totalorder %s111, 0
    %s114 = sadd.s32 %s113, 1
    %s115 = scalar_select %p112, %s113, %s114
    %p118 = pneg %p112
    %p119 = scmp.eq.s32.totalorder %s9, 1
    %p120 = por %p118, %p119
    %p121 = scmp.ne.s32.totalorder %s113, %s116
    %p122 = scmp.eq.s32.totalorder %s9, 0
    %p123 = por %p121, %p122
    %p124 = scmp.ne.s32.totalorder %s113, %s116
    %p125 = scmp.eq.s32.totalorder %s14, 1
    %p126 = por %p124, %p125
    %p127 = scmp.ne.s32.totalorder %s116, %s117
    %p128 = scmp.eq.s32.totalorder %s14, 0
    %p129 = por %p127, %p128
    %p130 = scmp.ne.s32.totalorder %s116, %s117
    %p131 = scmp.eq.s32.totalorder %s15, 1
    %p132 = por %p130, %p131
    %p134 = scmp.ne.s32.totalorder %s117, %s133
    %p135 = scmp.eq.s32.totalorder %s15, 0
    %p136 = por %p134, %p135
    %p137 = scmp.le.s32.totalorder 1, %s9
    %p138 = scmp.lt.s32.totalorder %s9, 3
    %p139 = pnand %p137, %p138
    %p140 = pneg %p139
    // Predicated region
    $region9: #{lr_branch_forward.18} parent=5 // pred_check
      _
    $region10: #{lr_branch_forward.18} parent=5 // pred_check_branch
      %142 = sbr.rel (%p139) target = $region12
    $region11: #{lr_branch_forward.18} parent=5 // pred_region
      %s143 = ssub.s32 %s9, 1
    $region12: #{lr_branch_forward.18} parent=5 // pred_fallthru
      _
    %p144 = scmp.lt.s32.totalorder %s9, 2
    // Predicated region
    $region13: #{lr_branch_forward.18} parent=5 // pred_check
      %p145 = pneg %p144
    $region14: #{lr_branch_forward.18} parent=5 // pred_check_branch
      %147 = sbr.rel (%p145) target = $region16
    $region15: #{lr_branch_forward.18} parent=5 // pred_region
      // Predicated region
      $region17: #{lr_branch_forward.18} parent=15 // pred_check
        %p148 = pneg %p43
      $region18: #{lr_branch_forward.18} parent=15 // pred_check_branch
        %150 = sbr.rel (%p148) target = $region20
      $region19: #{lr_branch_forward.18} parent=15 // pred_region
        %s151 = smul.u32 8, %s17
        %p152 = scmp.lt.s32.totalorder %s16, 1
        %s153 = scalar_select %p152, %s16, 1
        %p154 = scmp.lt.s32.totalorder %s151, 7
        %s155 = scalar_select %p154, %s151, 7
        %s156 = smul.addr %s153, 8
        %s157 = sadd.s32 %s155, %s156
        %s158 = smul.addr %s157, 8
        %s159 = scalar_lea.vmem %s0, %s158
        %s160 = smul.u32 8, %s17
      $region20: #{lr_branch_forward.18} parent=15 // pred_fallthru
        _
      // Predicated region
      $region21: #{lr_branch_forward.18} parent=15 // pred_check
        %p161 = pneg %p69
      $region22: #{lr_branch_forward.18} parent=15 // pred_check_branch
        %163 = sbr.rel (%p161) target = $region24
      $region23: #{lr_branch_forward.18} parent=15 // pred_region
        %p164 = scmp.lt.s32.totalorder %s16, 1
        %s165 = scalar_select %p164, %s16, 1
        %s166 = scalar_lea.vmem %s1, %s165
      $region24: #{lr_branch_forward.18} parent=15 // pred_fallthru
        _
      // Predicated region
      $region25: #{lr_branch_forward.18} parent=15 // pred_check
        %p167 = pneg %p95
      $region26: #{lr_branch_forward.18} parent=15 // pred_check_branch
        %169 = sbr.rel (%p167) target = $region28
      $region27: #{lr_branch_forward.18} parent=15 // pred_region
        %p170 = scmp.lt.s32.totalorder %s16, 1
        %s171 = scalar_select %p170, %s16, 1
        %s172 = scalar_lea.vmem %s2, %s171
      $region28: #{lr_branch_forward.18} parent=15 // pred_fallthru
        _
    $region16: #{lr_branch_forward.18} parent=5 // pred_fallthru
      _
    %p173 = scmp.le.s32.totalorder 1, %s9
    %p174 = scmp.lt.s32.totalorder %s9, 3
    %p175 = pnand %p173, %p174
    %p176 = pneg %p175
    // Predicated region
    $region29: #{lr_branch_forward.18} parent=5 // pred_check
      _
    $region30: #{lr_branch_forward.18} parent=5 // pred_check_branch
      %178 = sbr.rel (%p175) target = $region32
    $region31: #{lr_branch_forward.18} parent=5 // pred_region
      %s179 = ssub.s32 %s9, 1
      %s180 = smul.u32 8, %s19
      %p181 = scmp.lt.s32.totalorder %s18, 1
      %s182 = scalar_select %p181, %s18, 1
      %p183 = scmp.lt.s32.totalorder %s180, 7
      %s184 = scalar_select %p183, %s180, 7
      %s185 = smul.addr %s182, 8
      %s186 = sadd.s32 %s184, %s185
      %s187 = smul.addr %s186, 8
      %s188 = scalar_lea.vmem %s0, %s187
      %p189 = pneg %p49
      %p190 = pneg %p46
      %p191 = scmp.lt.s32.totalorder %s18, 1
      %s192 = scalar_select %p191, %s18, 1
      %s193 = scalar_lea.vmem %s1, %s192
      %p194 = pneg %p75
      %p195 = pneg %p72
      %p196 = scmp.lt.s32.totalorder %s18, 1
      %s197 = scalar_select %p196, %s18, 1
      %s198 = scalar_lea.vmem %s2, %s197
      %p199 = pneg %p101
      %p200 = pneg %p98
      %p201 = pneg %p129
      %p202 = pneg %p126
      %s203 = smul.u32 8, %s19
      %p204 = scmp.lt.s32.totalorder %s18, 1
      %s205 = scalar_select %p204, %s18, 1
      %p206 = scmp.lt.s32.totalorder %s203, 7
      %s207 = scalar_select %p206, %s203, 7
      %s208 = smul.addr %s205, 8
      %s209 = sadd.s32 %s207, %s208
      %s210 = smul.addr %s209, 8
      %s211 = scalar_lea.vmem %s3, %s210
      %s212 = smul.u32 8, %s19
      %p213 = scmp.lt.s32.totalorder %s18, 1
      %s214 = scalar_select %p213, %s18, 1
      %p215 = scmp.lt.s32.totalorder %s212, 7
      %s216 = scalar_select %p215, %s212, 7
      %s217 = smul.addr %s214, 8
      %s218 = sadd.s32 %s216, %s217
      %s219 = smul.addr %s218, 8
      %s220 = scalar_lea.vmem %s0, %s219
      %s221 = smul.u32 8, %s19
      %p222 = scmp.lt.s32.totalorder %s18, 1
      %s223 = scalar_select %p222, %s18, 1
      %s224 = scalar_lea.vmem %s1, %s223
      %p225 = scmp.lt.s32.totalorder %s18, 1
      %s226 = scalar_select %p225, %s18, 1
      %s227 = scalar_lea.vmem %s2, %s226
      %s228 = smul.u32 8, %s19
      %p229 = scmp.lt.s32.totalorder %s18, 1
      %s230 = scalar_select %p229, %s18, 1
      %p231 = scmp.lt.s32.totalorder %s228, 7
      %s232 = scalar_select %p231, %s228, 7
      %s233 = smul.addr %s230, 8
      %s234 = sadd.s32 %s232, %s233
      %s235 = smul.addr %s234, 8
      %s236 = scalar_lea.vmem %s3, %s235
      %s237 = smul.u32 8, %s19
      %v238 = vld [vmem:[%s220] sm:$0xff]
      %v239 = vld [vmem:[%s220 + $0x8] sm:$0xff]
      %v240 = vld [vmem:[%s220 + $0x10] sm:$0xff]
      %v241 = vld [vmem:[%s220 + $0x18] sm:$0xff]
      %v242 = vld [vmem:[%s220 + $0x20] sm:$0xff]
      %v243 = vld [vmem:[%s220 + $0x28] sm:$0xff]
      %v244 = vld [vmem:[%s220 + $0x30] sm:$0xff]
      %v245 = vld [vmem:[%s220 + $0x38] sm:$0xff]
      %v246 = vld [vmem:[%s224] sm:$0x1]
      %v248 = vperm.slane %v246, 0
      %v250 = vmul.f32 %v238, %v248
      %v251 = vmul.f32 %v239, %v248
      %v252 = vmul.f32 %v240, %v248
      %v253 = vmul.f32 %v241, %v248
      %v254 = vmul.f32 %v242, %v248
      %v255 = vmul.f32 %v243, %v248
      %v256 = vmul.f32 %v244, %v248
      %v257 = vmul.f32 %v245, %v248
      %v258 = vld [vmem:[%s227] sm:$0x1]
      %v260 = vperm.slane %v258, 0
      %v262 = vadd.f32 %v250, %v260
      %v263 = vadd.f32 %v251, %v260
      %v264 = vadd.f32 %v252, %v260
      %v265 = vadd.f32 %v253, %v260
      %v266 = vadd.f32 %v254, %v260
      %v267 = vadd.f32 %v255, %v260
      %v268 = vadd.f32 %v256, %v260
      %v269 = vadd.f32 %v257, %v260
      %v270 = vmax.f32 %v262, 0.0
      %v271 = vmax.f32 %v263, 0.0
      %v272 = vmax.f32 %v264, 0.0
      %v273 = vmax.f32 %v265, 0.0
      %v274 = vmax.f32 %v266, 0.0
      %v275 = vmax.f32 %v267, 0.0
      %v276 = vmax.f32 %v268, 0.0
      %v277 = vmax.f32 %v269, 0.0
      %278 = vst [vmem:[%s236] sm:$0xff] %v270
      %279 = vst [vmem:[%s236 + $0x8] sm:$0xff] %v271
      %280 = vst [vmem:[%s236 + $0x10] sm:$0xff] %v272
      %281 = vst [vmem:[%s236 + $0x18] sm:$0xff] %v273
      %282 = vst [vmem:[%s236 + $0x20] sm:$0xff] %v274
      %283 = vst [vmem:[%s236 + $0x28] sm:$0xff] %v275
      %284 = vst [vmem:[%s236 + $0x30] sm:$0xff] %v276
      %285 = vst [vmem:[%s236 + $0x38] sm:$0xff] %v277
      %s286 = smul.u32 8, %s19
      %p287 = scmp.lt.s32.totalorder %s18, 1
      %s288 = scalar_select %p287, %s18, 1
      %p289 = scmp.lt.s32.totalorder %s286, 7
      %s290 = scalar_select %p289, %s286, 7
      %s291 = smul.addr %s288, 8
      %s292 = sadd.s32 %s290, %s291
      %s293 = smul.addr %s292, 8
      %s294 = scalar_lea.vmem %s3, %s293
      // Predicated region
      $region33: #{lr_branch_forward.18} parent=31 // pred_check
        %p295 = pneg %p126
      $region34: #{lr_branch_forward.18} parent=31 // pred_check_branch
        %297 = sbr.rel (%p295) target = $region36
      $region35: #{lr_branch_forward.18} parent=31 // pred_region
        %s298 = smul.u32 8, %s19
      $region36: #{lr_branch_forward.18} parent=31 // pred_fallthru
        _
    $region32: #{lr_branch_forward.18} parent=5 // pred_fallthru
      _
    %p299 = scmp.le.s32.totalorder 2, %s9
    // Predicated region
    $region37: #{lr_branch_forward.18} parent=5 // pred_check
      %p300 = pneg %p299
    $region38: #{lr_branch_forward.18} parent=5 // pred_check_branch
      %302 = sbr.rel (%p300) target = $region40
    $region39: #{lr_branch_forward.18} parent=5 // pred_region
      %s303 = ssub.s32 %s9, 2
      // Predicated region
      $region41: #{lr_branch_forward.18} parent=39 // pred_check
        %p304 = pneg %p132
      $region42: #{lr_branch_forward.18} parent=39 // pred_check_branch
        %306 = sbr.rel (%p304) target = $region44
      $region43: #{lr_branch_forward.18} parent=39 // pred_region
        %s307 = smul.u32 8, %s21
        %p308 = scmp.lt.s32.totalorder %s20, 1
        %s309 = scalar_select %p308, %s20, 1
        %p310 = scmp.lt.s32.totalorder %s307, 7
        %s311 = scalar_select %p310, %s307, 7
        %s312 = smul.addr %s309, 8
        %s313 = sadd.s32 %s311, %s312
        %s314 = smul.addr %s313, 8
        %s315 = scalar_lea.vmem %s3, %s314
      $region44: #{lr_branch_forward.18} parent=39 // pred_fallthru
        _
    $region40: #{lr_branch_forward.18} parent=5 // pred_fallthru
      _
  $region6: #{lr_branch_forward.18} parent=0 // loop_footer
    %s13 = sadd.s32 1, %s9
  $region7: #{lr_branch_forward.18} parent=0 // loop_footer_branch
    %8 = sbr.rel target = $region3
  $region8: #{lr_branch_forward.18} parent=0 // loop_exit
    _

// kernel: lr_branch_forward.17
$region0: #{lr_branch_forward.17}
  #allocation0 [shape = 'u32[]', space=smem, size = 0x4, offset = 0x4, fixed_abs, tag = 'smem constant byte address 0x4 - core index']
  #allocation1 [shape = 'u32[72,128]{1,0:T(1,128)}', space=vmem, size = 0x9000, scoped, tag = 'internal scratch']
  %s0 = inlined_call_operand.vmem [shape: bf16[2,64,400], index: 0, kind: input, shape index: {}]
  %s1 = inlined_call_operand.vmem [shape: bf16[400,128], index: 1, kind: input, shape index: {}]
  %s2 = inlined_call_operand.vmem [shape: f32[1,128], index: 2, kind: input, shape index: {}]
  %s3 = inlined_call_operand.vmem [shape: f32[2,64,128], index: 3, kind: output, shape index: {0}]
  %s4 = inlined_call_operand.vmem [shape: f32[2,2,128], index: 4, kind: output, shape index: {1}]
  %5 = xla_tuple %s3, %s4
  %s6 = sld [smem:[#allocation0]]
  $region57: #{lr_branch_forward.17} parent=0
    _
  %s8 = ssub.s32 1, %s6
  %s9 = scalar_select 0, %s8, %s6
  loop: start=0, step=1, limit=4
  $region2: #{lr_branch_forward.17} parent=0 // loop_pre_header
    _
  $region3: #{lr_branch_forward.17} parent=0 // loop_header
    %s11 = sphi 0, %s15
    %p12 = scmp.ge.s32.totalorder %s11, 4
    %s18 = sphi 0, %s30
    %s19 = sphi 0, %s26
    %s20 = sphi 0, %s18
    %s21 = sphi 0, %s19
    %s22 = sphi 0, %s20
    %s23 = sphi 0, %s21
    %s35 = sphi 0, %s37
    %s38 = sphi 0, %s35
    %s39 = sphi 0, %s38
    %s55 = sphi 0, %s39
    %s59 = sphi 0, %s59
    %s61 = sphi 0, %s59
    %s62 = sphi 0, %s61
    %s76 = sphi 0, %s62
    %s80 = sphi 0, %s80
    %s82 = sphi 0, %s80
    %s83 = sphi 0, %s82
    %s97 = sphi 0, %s83
    %s105 = sphi 0, %s107
    %s108 = sphi 0, %s105
    %s109 = sphi 0, %s108
    %s125 = sphi 0, %s109
    %s131 = sphi 0, %s133
    %s134 = sphi 0, %s131
    %s135 = sphi 0, %s134
    %s151 = sphi 0, %s135
  $region4: #{lr_branch_forward.17} parent=0 // loop_header_branch
    %14 = sbr.rel (%p12) target = $region8
  $region5: #{lr_branch_forward.17} parent=0 // loop_body
    %s16 = ssub.s32 %s11, 1
    %s17 = ssub.s32 %s11, 2
    %s24 = sadd.s32 1, %s19
    %p25 = scmp.ge.s32.totalorder %s24, 1
    %s26 = scalar_select %p25, 0, %s24
    %s27 = sadd.s32 1, %s18
    %s28 = scalar_select %p25, %s27, %s18
    %p29 = scmp.ge.s32.totalorder %s28, 2
    %s30 = scalar_select %p29, 0, %s28
    %s31 = ssub.s32 %s18, %s30
    %s32 = ssub.s32 %s19, %s26
    %s33 = sor.u32 %s31, %s32
    %p34 = scmp.eq.s32.totalorder %s33, 0
    %s36 = sadd.s32 %s35, 1
    %s37 = scalar_select %p34, %s35, %s36
    %p40 = pneg %p34
    %p41 = scmp.eq.s32.totalorder %s11, 1
    %p42 = por %p40, %p41
    %p43 = scmp.ne.s32.totalorder %s35, %s38
    %p44 = scmp.eq.s32.totalorder %s11, 0
    %p45 = por %p43, %p44
    %p46 = scmp.ne.s32.totalorder %s35, %s38
    %p47 = scmp.eq.s32.totalorder %s16, 1
    %p48 = por %p46, %p47
    %p49 = scmp.ne.s32.totalorder %s38, %s39
    %p50 = scmp.eq.s32.totalorder %s16, 0
    %p51 = por %p49, %p50
    %p52 = scmp.ne.s32.totalorder %s38, %s39
    %p53 = scmp.eq.s32.totalorder %s17, 1
    %p54 = por %p52, %p53
    %p56 = scmp.ne.s32.totalorder %s39, %s55
    %p57 = scmp.eq.s32.totalorder %s17, 0
    %p58 = por %p56, %p57
    %s60 = sadd.s32 %s59, 1
    %p63 = scmp.eq.s32.totalorder %s11, 1
    %p64 = scmp.ne.s32.totalorder %s59, %s61
    %p65 = scmp.eq.s32.totalorder %s11, 0
    %p66 = por %p64, %p65
    %p67 = scmp.ne.s32.totalorder %s59, %s61
    %p68 = scmp.eq.s32.totalorder %s16, 1
    %p69 = por %p67, %p68
    %p70 = scmp.ne.s32.totalorder %s61, %s62
    %p71 = scmp.eq.s32.totalorder %s16, 0
    %p72 = por %p70, %p71
    %p73 = scmp.ne.s32.totalorder %s61, %s62
    %p74 = scmp.eq.s32.totalorder %s17, 1
    %p75 = por %p73, %p74
    %p77 = scmp.ne.s32.totalorder %s62, %s76
    %p78 = scmp.eq.s32.totalorder %s17, 0
    %p79 = por %p77, %p78
    %s81 = sadd.s32 %s80, 1
    %p84 = scmp.eq.s32.totalorder %s11, 1
    %p85 = scmp.ne.s32.totalorder %s80, %s82
    %p86 = scmp.eq.s32.totalorder %s11, 0
    %p87 = por %p85, %p86
    %p88 = scmp.ne.s32.totalorder %s80, %s82
    %p89 = scmp.eq.s32.totalorder %s16, 1
    %p90 = por %p88, %p89
    %p91 = scmp.ne.s32.totalorder %s82, %s83
    %p92 = scmp.eq.s32.totalorder %s16, 0
    %p93 = por %p91, %p92
    %p94 = scmp.ne.s32.totalorder %s82, %s83
    %p95 = scmp.eq.s32.totalorder %s17, 1
    %p96 = por %p94, %p95
    %p98 = scmp.ne.s32.totalorder %s83, %s97
    %p99 = scmp.eq.s32.totalorder %s17, 0
    %p100 = por %p98, %p99
    %s101 = ssub.s32 %s18, %s30
    %s102 = ssub.s32 %s19, %s26
    %s103 = sor.u32 %s101, %s102
    %p104 = scmp.eq.s32.totalorder %s103, 0
    %s106 = sadd.s32 %s105, 1
    %s107 = scalar_select %p104, %s105, %s106
    %p110 = pneg %p104
    %p111 = scmp.eq.s32.totalorder %s11, 1
    %p112 = por %p110, %p111
    %p113 = scmp.ne.s32.totalorder %s105, %s108
    %p114 = scmp.eq.s32.totalorder %s11, 0
    %p115 = por %p113, %p114
    %p116 = scmp.ne.s32.totalorder %s105, %s108
    %p117 = scmp.eq.s32.totalorder %s16, 1
    %p118 = por %p116, %p117
    %p119 = scmp.ne.s32.totalorder %s108, %s109
    %p120 = scmp.eq.s32.totalorder %s16, 0
    %p121 = por %p119, %p120
    %p122 = scmp.ne.s32.totalorder %s108, %s109
    %p123 = scmp.eq.s32.totalorder %s17, 1
    %p124 = por %p122, %p123
    %p126 = scmp.ne.s32.totalorder %s109, %s125
    %p127 = scmp.eq.s32.totalorder %s17, 0
    %p128 = por %p126, %p127
    %s129 = ssub.s32 %s18, %s30
    %p130 = scmp.eq.s32.totalorder %s129, 0
    %s132 = sadd.s32 %s131, 1
    %s133 = scalar_select %p130, %s131, %s132
    %p136 = pneg %p130
    %p137 = scmp.eq.s32.totalorder %s11, 1
    %p138 = por %p136, %p137
    %p139 = scmp.ne.s32.totalorder %s131, %s134
    %p140 = scmp.eq.s32.totalorder %s11, 0
    %p141 = por %p139, %p140
    %p142 = scmp.ne.s32.totalorder %s131, %s134
    %p143 = scmp.eq.s32.totalorder %s16, 1
    %p144 = por %p142, %p143
    %p145 = scmp.ne.s32.totalorder %s134, %s135
    %p146 = scmp.eq.s32.totalorder %s16, 0
    %p147 = por %p145, %p146
    %p148 = scmp.ne.s32.totalorder %s134, %s135
    %p149 = scmp.eq.s32.totalorder %s17, 1
    %p150 = por %p148, %p149
    %p152 = scmp.ne.s32.totalorder %s135, %s151
    %p153 = scmp.eq.s32.totalorder %s17, 0
    %p154 = por %p152, %p153
    %p155 = scmp.le.s32.totalorder 1, %s11
    %p156 = scmp.lt.s32.totalorder %s11, 3
    %p157 = pnand %p155, %p156
    %p158 = pneg %p157
    // Predicated region
    $region9: #{lr_branch_forward.17} parent=5 // pred_check
      _
    $region10: #{lr_branch_forward.17} parent=5 // pred_check_branch
      %160 = sbr.rel (%p157) target = $region12
    $region11: #{lr_branch_forward.17} parent=5 // pred_region
      %s161 = ssub.s32 %s11, 1
      // Predicated region
      $region13: #{lr_branch_forward.17} parent=11 // pred_check
        %p162 = pneg %p72
      $region14: #{lr_branch_forward.17} parent=11 // pred_check_branch
        %164 = sbr.rel (%p162) target = $region16
      $region15: #{lr_branch_forward.17} parent=11 // pred_region
        _
      $region16: #{lr_branch_forward.17} parent=11 // pred_fallthru
        _
      // Predicated region
      $region17: #{lr_branch_forward.17} parent=11 // pred_check
        %p165 = pneg %p93
      $region18: #{lr_branch_forward.17} parent=11 // pred_check_branch
        %167 = sbr.rel (%p165) target = $region20
      $region19: #{lr_branch_forward.17} parent=11 // pred_region
        _
      $region20: #{lr_branch_forward.17} parent=11 // pred_fallthru
        _
    $region12: #{lr_branch_forward.17} parent=5 // pred_fallthru
      _
    %p168 = scmp.lt.s32.totalorder %s11, 2
    // Predicated region
    $region21: #{lr_branch_forward.17} parent=5 // pred_check
      %p169 = pneg %p168
    $region22: #{lr_branch_forward.17} parent=5 // pred_check_branch
      %171 = sbr.rel (%p169) target = $region24
    $region23: #{lr_branch_forward.17} parent=5 // pred_region
      // Predicated region
      $region25: #{lr_branch_forward.17} parent=23 // pred_check
        %p172 = pneg %p45
      $region26: #{lr_branch_forward.17} parent=23 // pred_check_branch
        %174 = sbr.rel (%p172) target = $region28
      $region27: #{lr_branch_forward.17} parent=23 // pred_region
        %s175 = smul.u32 8, %s19
        %p176 = scmp.lt.s32.totalorder %s18, 1
        %s177 = scalar_select %p176, %s18, 1
        %p178 = scmp.lt.s32.totalorder %s175, 7
        %s179 = scalar_select %p178, %s175, 7
        %s180 = smul.addr %s179, 4
        %s181 = smul.addr %s177, 32
        %s182 = sadd.s32 %s180, %s181
        %s183 = smul.addr %s182, 4
        %s184 = scalar_lea.vmem %s0, %s183
        %s185 = smul.u32 8, %s19
      $region28: #{lr_branch_forward.17} parent=23 // pred_fallthru
        _
    $region24: #{lr_branch_forward.17} parent=5 // pred_fallthru
      _
    %p186 = scmp.le.s32.totalorder 1, %s11
    %p187 = scmp.lt.s32.totalorder %s11, 3
    %p188 = pnand %p186, %p187
    %p189 = pneg %p188
    // Predicated region
    $region29: #{lr_branch_forward.17} parent=5 // pred_check
      _
    $region30: #{lr_branch_forward.17} parent=5 // pred_check_branch
      %191 = sbr.rel (%p188) target = $region32
    $region31: #{lr_branch_forward.17} parent=5 // pred_region
      %s192 = ssub.s32 %s11, 1
      %s193 = smul.u32 8, %s21
      %p194 = scmp.lt.s32.totalorder %s20, 1
      %s195 = scalar_select %p194, %s20, 1
      %p196 = scmp.lt.s32.totalorder %s193, 7
      %s197 = scalar_select %p196, %s193, 7
      %s198 = smul.addr %s197, 4
      %s199 = smul.addr %s195, 32
      %s200 = sadd.s32 %s198, %s199
      %s201 = smul.addr %s200, 4
      %s202 = scalar_lea.vmem %s0, %s201
      %p203 = pneg %p51
      %p204 = pneg %p48
      %p205 = pneg %p72
      %p206 = pneg %p69
      %p207 = pneg %p93
      %p208 = pneg %p90
      %p209 = pneg %p121
      %p210 = pneg %p118
      %s211 = smul.u32 8, %s21
      %p212 = scmp.lt.s32.totalorder %s20, 1
      %s213 = scalar_select %p212, %s20, 1
      %p214 = scmp.lt.s32.totalorder %s211, 7
      %s215 = scalar_select %p214, %s211, 7
      %s216 = smul.addr %s213, 8
      %s217 = sadd.s32 %s215, %s216
      %s218 = smul.addr %s217, 8
      %s219 = scalar_lea.vmem %s3, %s218
      %p220 = pneg %p147
      %p221 = pneg %p144
      %p222 = scmp.lt.s32.totalorder %s20, 1
      %s223 = scalar_select %p222, %s20, 1
      %s224 = smul.addr %s223, 2
      %s225 = scalar_lea.vmem %s4, %s224
      %s226 = smul.u32 8, %s21
      %p227 = scmp.lt.s32.totalorder %s20, 1
      %s228 = scalar_select %p227, %s20, 1
      %p229 = scmp.lt.s32.totalorder %s226, 7
      %s230 = scalar_select %p229, %s226, 7
      %s231 = smul.addr %s230, 4
      %s232 = smul.addr %s228, 32
      %s233 = sadd.s32 %s231, %s232
      %s234 = smul.addr %s233, 4
      %s235 = scalar_lea.vmem %s0, %s234
      %s236 = smul.u32 8, %s21
      %s237 = smul.u32 8, %s21
      %p238 = scmp.lt.s32.totalorder %s20, 1
      %s239 = scalar_select %p238, %s20, 1
      %p240 = scmp.lt.s32.totalorder %s237, 7
      %s241 = scalar_select %p240, %s237, 7
      %s242 = smul.addr %s239, 8
      %s243 = sadd.s32 %s241, %s242
      %s244 = smul.addr %s243, 8
      %s245 = scalar_lea.vmem %s3, %s244
      %s246 = smul.u32 8, %s21
      %p247 = scmp.lt.s32.totalorder %s20, 1
      %s248 = scalar_select %p247, %s20, 1
      %s249 = smul.addr %s248, 2
      %s250 = scalar_lea.vmem %s4, %s249
      %v252 = vld [vmem:[%s235] sm:$0xff]
      %v253 = vld [vmem:[%s235 + $0x8] sm:$0xff]
      %v254 = vld [vmem:[%s235 + $0x10] sm:$0xff]
      %v255 = vld [vmem:[%s235 + $0x18] sm:$0xff]
      %v256 = vld [vmem:[%s235 + $0x20] sm:$0xff]
      %v257 = vld [vmem:[%s235 + $0x28] sm:$0xff]
      %v258 = vld [vmem:[%s235 + $0x30] sm:$0xff]
      %v259 = vld [vmem:[%s235 + $0x38] sm:$0xff]
      %v260 = vld [vmem:[%s235 + $0x40] sm:$0xff]
      %v261 = vld [vmem:[%s235 + $0x48] sm:$0xff]
      %v262 = vld [vmem:[%s235 + $0x50] sm:$0xff]
      %v263 = vld [vmem:[%s235 + $0x58] sm:$0xff]
      %v264 = vld [vmem:[%s235 + $0x60] sm:$0xff]
      %v265 = vld [vmem:[%s235 + $0x68] sm:$0xff]
      %v266 = vld [vmem:[%s235 + $0x70] sm:$0xff]
      %v267 = vld [vmem:[%s235 + $0x78] sm:$0xff]
      %v268 = vld [vmem:[%s1] sm:$0xf]
      %v269 = vld [vmem:[%s1 + $0x4] sm:$0xf]
      %v270 = vld [vmem:[%s1 + $0x8] sm:$0xf]
      %v271 = vld [vmem:[%s1 + $0xc] sm:$0xf]
      %v272 = vld [vmem:[%s1 + $0x10] sm:$0xf]
      %v273 = vld [vmem:[%s1 + $0x14] sm:$0xf]
      %v274 = vld [vmem:[%s1 + $0x18] sm:$0xf]
      %v275 = vld [vmem:[%s1 + $0x1c] sm:$0xf]
      %v276 = vld [vmem:[%s1 + $0x20] sm:$0xf]
      %v277 = vld [vmem:[%s1 + $0x24] sm:$0xf]
      %v278 = vld [vmem:[%s1 + $0x28] sm:$0xf]
      %v279 = vld [vmem:[%s1 + $0x2c] sm:$0xf]
      %v280 = vld [vmem:[%s1 + $0x30] sm:$0xf]
      %v281 = vld [vmem:[%s1 + $0x34] sm:$0xf]
      %v282 = vld [vmem:[%s1 + $0x38] sm:$0xf]
      %v283 = vld [vmem:[%s1 + $0x3c] sm:$0xf]
      %v284 = vld [vmem:[%s1 + $0x40] sm:$0xf]
      %v285 = vld [vmem:[%s1 + $0x44] sm:$0xf]
      %v286 = vld [vmem:[%s1 + $0x48] sm:$0xf]
      %v287 = vld [vmem:[%s1 + $0x4c] sm:$0xf]
      %v288 = vld [vmem:[%s1 + $0x50] sm:$0xf]
      %v289 = vld [vmem:[%s1 + $0x54] sm:$0xf]
      %v290 = vld [vmem:[%s1 + $0x58] sm:$0xf]
      %v291 = vld [vmem:[%s1 + $0x5c] sm:$0xf]
      %v292 = vld [vmem:[%s1 + $0x60] sm:$0xf]
      %v293 = vld [vmem:[%s1 + $0x64] sm:$0xf]
      %v294 = vld [vmem:[%s1 + $0x68] sm:$0xf]
      %v295 = vld [vmem:[%s1 + $0x6c] sm:$0xf]
      %v296 = vld [vmem:[%s1 + $0x70] sm:$0xf]
      %v297 = vld [vmem:[%s1 + $0x74] sm:$0xf]
      %v298 = vld [vmem:[%s1 + $0x78] sm:$0xf]
      %v299 = vld [vmem:[%s1 + $0x7c] sm:$0xf]
      %v300 = vld [vmem:[%s1 + $0x80] sm:$0xf]
      %v301 = vld [vmem:[%s1 + $0x84] sm:$0xf]
      %v302 = vld [vmem:[%s1 + $0x88] sm:$0xf]
      %v303 = vld [vmem:[%s1 + $0x8c] sm:$0xf]
      %v304 = vld [vmem:[%s1 + $0x90] sm:$0xf]
      %v305 = vld [vmem:[%s1 + $0x94] sm:$0xf]
      %v306 = vld [vmem:[%s1 + $0x98] sm:$0xf]
      %v307 = vld [vmem:[%s1 + $0x9c] sm:$0xf]
      %v308 = vld [vmem:[%s1 + $0xa0] sm:$0xf]
      %v309 = vld [vmem:[%s1 + $0xa4] sm:$0xf]
      %v310 = vld [vmem:[%s1 + $0xa8] sm:$0xf]
      %v311 = vld [vmem:[%s1 + $0xac] sm:$0xf]
      %v312 = vld [vmem:[%s1 + $0xb0] sm:$0xf]
      %v313 = vld [vmem:[%s1 + $0xb4] sm:$0xf]
      %v314 = vld [vmem:[%s1 + $0xb8] sm:$0xf]
      %v315 = vld [vmem:[%s1 + $0xbc] sm:$0xf]
      %v316 = vld [vmem:[%s1 + $0xc0] sm:$0xf]
      %v317 = vld [vmem:[%s1 + $0xc4] sm:$0xf]
      %v318 = vld [vmem:[%s2] sm:$0x1]
      %v320 = vperm.slane %v318, 0
      %v338 = vunpack.c.l.b16 %v252
      %v339 = vunpack.c.h.b16 %v252
      %v340 = vunpack.c.l.b16 %v253
      %v341 = vunpack.c.h.b16 %v253
      %v342 = vunpack.c.l.b16 %v254
      %v343 = vunpack.c.h.b16 %v254
      %v344 = vunpack.c.l.b16 %v255
      %v345 = vunpack.c.h.b16 %v255
      %v346 = vunpack.c.l.b16 %v256
      %v347 = vunpack.c.h.b16 %v256
      %v348 = vunpack.c.l.b16 %v257
      %v349 = vunpack.c.h.b16 %v257
      %v350 = vunpack.c.l.b16 %v258
      %v351 = vunpack.c.h.b16 %v258
      %v352 = vunpack.c.l.b16 %v259
      %v353 = vunpack.c.h.b16 %v259
      %v354 = vunpack.c.l.b16 %v260
      %v355 = vunpack.c.h.b16 %v260
      %v356 = vunpack.c.l.b16 %v261
      %v357 = vunpack.c.h.b16 %v261
      %v358 = vunpack.c.l.b16 %v262
      %v359 = vunpack.c.h.b16 %v262
      %v360 = vunpack.c.l.b16 %v263
      %v361 = vunpack.c.h.b16 %v263
      %v362 = vunpack.c.l.b16 %v264
      %v363 = vunpack.c.h.b16 %v264
      %v364 = vunpack.c.l.b16 %v265
      %v365 = vunpack.c.h.b16 %v265
      %v366 = vunpack.c.l.b16 %v266
      %v367 = vunpack.c.h.b16 %v266
      %v368 = vunpack.c.l.b16 %v267
      %v369 = vunpack.c.h.b16 %v267
      %v370 = vpack.c.b16 %v342, %v338
      %v371 = vpack.c.b16 %v343, %v339
      %v372 = vpack.c.b16 %v344, %v340
      %v373 = vpack.c.b16 %v345, %v341
      %v374 = vpack.c.b16 %v350, %v346
      %v375 = vpack.c.b16 %v351, %v347
      %v376 = vpack.c.b16 %v352, %v348
      %v377 = vpack.c.b16 %v353, %v349
      %v378 = vpack.c.b16 %v358, %v354
      %v379 = vpack.c.b16 %v359, %v355
      %v380 = vpack.c.b16 %v360, %v356
      %v381 = vpack.c.b16 %v361, %v357
      %v382 = vpack.c.b16 %v366, %v362
      %v383 = vpack.c.b16 %v367, %v363
      %v384 = vpack.c.b16 %v368, %v364
      %v385 = vpack.c.b16 %v369, %v365
      %v448 = vunpack.c.l.b16 %v268
      %v449 = vunpack.c.l.b16 %v269
      %v450 = vunpack.c.l.b16 %v270
      %v451 = vunpack.c.l.b16 %v271
      %v452 = vunpack.c.l.b16 %v272
      %v453 = vunpack.c.l.b16 %v273
      %v454 = vunpack.c.l.b16 %v274
      %v455 = vunpack.c.l.b16 %v275
      %v456 = vunpack.c.l.b16 %v276
      %v457 = vunpack.c.l.b16 %v277
      %v458 = vunpack.c.l.b16 %v278
      %v459 = vunpack.c.l.b16 %v279
      %v460 = vunpack.c.l.b16 %v280
      %v461 = vunpack.c.l.b16 %v281
      %v462 = vunpack.c.l.b16 %v282
      %v463 = vunpack.c.l.b16 %v283
      %v464 = vunpack.c.l.b16 %v284
      %v465 = vunpack.c.l.b16 %v285
      %v466 = vunpack.c.l.b16 %v286
      %v467 = vunpack.c.l.b16 %v287
      %v468 = vunpack.c.l.b16 %v288
      %v469 = vunpack.c.l.b16 %v289
      %v470 = vunpack.c.l.b16 %v290
      %v471 = vunpack.c.l.b16 %v291
      %v472 = vunpack.c.l.b16 %v292
      %v473 = vunpack.c.l.b16 %v293
      %v474 = vunpack.c.l.b16 %v294
      %v475 = vunpack.c.l.b16 %v295
      %v476 = vunpack.c.l.b16 %v296
      %v477 = vunpack.c.l.b16 %v297
      %v478 = vunpack.c.l.b16 %v298
      %v479 = vunpack.c.l.b16 %v299
      %v480 = vunpack.c.l.b16 %v300
      %v481 = vunpack.c.l.b16 %v301
      %v482 = vunpack.c.l.b16 %v302
      %v483 = vunpack.c.l.b16 %v303
      %v484 = vunpack.c.l.b16 %v304
      %v485 = vunpack.c.l.b16 %v305
      %v486 = vunpack.c.l.b16 %v306
      %v487 = vunpack.c.l.b16 %v307
      %v488 = vunpack.c.l.b16 %v308
      %v489 = vunpack.c.l.b16 %v309
      %v490 = vunpack.c.l.b16 %v310
      %v491 = vunpack.c.l.b16 %v311
      %v492 = vunpack.c.l.b16 %v312
      %v493 = vunpack.c.l.b16 %v313
      %v494 = vunpack.c.l.b16 %v314
      %v495 = vunpack.c.l.b16 %v315
      %v496 = vunpack.c.l.b16 %v316
      %v497 = vunpack.c.l.b16 %v317
      %v498 = vpack.c.b16 %v449, %v448
      %v499 = vpack.c.b16 %v451, %v450
      %v500 = vpack.c.b16 %v453, %v452
      %v501 = vpack.c.b16 %v455, %v454
      %v502 = vpack.c.b16 %v457, %v456
      %v503 = vpack.c.b16 %v459, %v458
      %v504 = vpack.c.b16 %v461, %v460
      %v505 = vpack.c.b16 %v463, %v462
      %v506 = vpack.c.b16 %v465, %v464
      %v507 = vpack.c.b16 %v467, %v466
      %v508 = vpack.c.b16 %v469, %v468
      %v509 = vpack.c.b16 %v471, %v470
      %v510 = vpack.c.b16 %v473, %v472
      %v511 = vpack.c.b16 %v475, %v474
      %v512 = vpack.c.b16 %v477, %v476
      %v513 = vpack.c.b16 %v479, %v478
      %v514 = vpack.c.b16 %v481, %v480
      %v515 = vpack.c.b16 %v483, %v482
      %v516 = vpack.c.b16 %v485, %v484
      %v517 = vpack.c.b16 %v487, %v486
      %v518 = vpack.c.b16 %v489, %v488
      %v519 = vpack.c.b16 %v491, %v490
      %v520 = vpack.c.b16 %v493, %v492
      %v521 = vpack.c.b16 %v495, %v494
      %v522 = vpack.c.b16 %v497, %v496
      %vm548 = vcmask 130048
      %v550 = vsel %vm548, %v373, 0
      %v553 = vsel %vm548, %v377, 0
      %v556 = vsel %vm548, %v381, 0
      %v559 = vsel %vm548, %v385, 0
      %561 = vmatpush.bf16.msra.mxu0 %v505
      %562 = vmatpush.bf16.msra.mxu0 %v504
      %563 = vmatpush.bf16.msra.mxu0 %v503
      %564 = vmatpush.bf16.msra.mxu0 %v502
      %565 = vmatpush.bf16.msra.mxu0 %v501
      %566 = vmatpush.bf16.msra.mxu0 %v500
      %567 = vmatpush.bf16.msra.mxu0 %v499
      %568 = vmatpush.bf16.msra.mxu0 %v498
      %569 = vmatmul.bf16.gmra.mxu0 %v370
      %v570 = vpop.f32.mrf.mxu0
      %v571 = vadd.f32 %v320, %v570
      %v572 = vpop.f32.mrf.mxu0
      %v573 = vadd.f32 %v320, %v572
      %574 = vmatmul.bf16.gmra.mxu0 %v374
      %v575 = vpop.f32.mrf.mxu0
      %v576 = vadd.f32 %v320, %v575
      %v577 = vpop.f32.mrf.mxu0
      %v578 = vadd.f32 %v320, %v577
      %579 = vmatmul.bf16.gmra.mxu0 %v378
      %v580 = vpop.f32.mrf.mxu0
      %v581 = vadd.f32 %v320, %v580
      %v582 = vpop.f32.mrf.mxu0
      %v583 = vadd.f32 %v320, %v582
      %584 = vmatmul.bf16.gmra.mxu0 %v382
      %v585 = vpop.f32.mrf.mxu0
      %v586 = vadd.f32 %v320, %v585
      %v587 = vpop.f32.mrf.mxu0
      %v588 = vadd.f32 %v320, %v587
      %589 = vdwg.mxu0
      %590 = vmatpush.bf16.msra.mxu0 %v513
      %591 = vmatpush.bf16.msra.mxu0 %v512
      %592 = vmatpush.bf16.msra.mxu0 %v511
      %593 = vmatpush.bf16.msra.mxu0 %v510
      %594 = vmatpush.bf16.msra.mxu0 %v509
      %595 = vmatpush.bf16.msra.mxu0 %v508
      %596 = vmatpush.bf16.msra.mxu0 %v507
      %597 = vmatpush.bf16.msra.mxu0 %v506
      %598 = vmatmul.bf16.gmra.mxu0 %v371
      %v599 = vpop.f32.mrf.mxu0
      %v600 = vadd.f32 %v571, %v599
      %v601 = vpop.f32.mrf.mxu0
      %v602 = vadd.f32 %v573, %v601
      %603 = vmatmul.bf16.gmra.mxu0 %v375
      %v604 = vpop.f32.mrf.mxu0
      %v605 = vadd.f32 %v576, %v604
      %v606 = vpop.f32.mrf.mxu0
      %v607 = vadd.f32 %v578, %v606
      %608 = vmatmul.bf16.gmra.mxu0 %v379
      %v609 = vpop.f32.mrf.mxu0
      %v610 = vadd.f32 %v581, %v609
      %v611 = vpop.f32.mrf.mxu0
      %v612 = vadd.f32 %v583, %v611
      %613 = vmatmul.bf16.gmra.mxu0 %v383
      %v614 = vpop.f32.mrf.mxu0
      %v615 = vadd.f32 %v586, %v614
      %v616 = vpop.f32.mrf.mxu0
      %v617 = vadd.f32 %v588, %v616
      %618 = vdwg.mxu0
      %619 = vmatpush.bf16.msra.mxu0 %v521
      %620 = vmatpush.bf16.msra.mxu0 %v520
      %621 = vmatpush.bf16.msra.mxu0 %v519
      %622 = vmatpush.bf16.msra.mxu0 %v518
      %623 = vmatpush.bf16.msra.mxu0 %v517
      %624 = vmatpush.bf16.msra.mxu0 %v516
      %625 = vmatpush.bf16.msra.mxu0 %v515
      %626 = vmatpush.bf16.msra.mxu0 %v514
      %627 = vmatmul.bf16.gmra.mxu0 %v372
      %v628 = vpop.f32.mrf.mxu0
      %v629 = vadd.f32 %v600, %v628
      %v630 = vpop.f32.mrf.mxu0
      %v631 = vadd.f32 %v602, %v630
      %632 = vmatmul.bf16.gmra.mxu0 %v376
      %v633 = vpop.f32.mrf.mxu0
      %v634 = vadd.f32 %v605, %v633
      %v635 = vpop.f32.mrf.mxu0
      %v636 = vadd.f32 %v607, %v635
      %637 = vmatmul.bf16.gmra.mxu0 %v380
      %v638 = vpop.f32.mrf.mxu0
      %v639 = vadd.f32 %v610, %v638
      %v640 = vpop.f32.mrf.mxu0
      %v641 = vadd.f32 %v612, %v640
      %642 = vmatmul.bf16.gmra.mxu0 %v384
      %v643 = vpop.f32.mrf.mxu0
      %v644 = vadd.f32 %v615, %v643
      %v645 = vpop.f32.mrf.mxu0
      %v646 = vadd.f32 %v617, %v645
      %647 = vdwg.mxu0
      %648 = vmatpush.bf16.msra.mxu0 0
      %649 = vmatpush.bf16.msra.mxu0 0
      %650 = vmatpush.bf16.msra.mxu0 0
      %651 = vmatpush.bf16.msra.mxu0 0
      %652 = vmatpush.bf16.msra.mxu0 0
      %653 = vmatpush.bf16.msra.mxu0 0
      %654 = vmatpush.bf16.msra.mxu0 0
      %655 = vmatpush.bf16.msra.mxu0 %v522
      %656 = vmatmul.bf16.gmra.mxu0 %v550
      %v657 = vpop.f32.mrf.mxu0
      %v658 = vadd.f32 %v629, %v657
      %v659 = vpop.f32.mrf.mxu0
      %v660 = vadd.f32 %v631, %v659
      %661 = vmatmul.bf16.gmra.mxu0 %v553
      %v662 = vpop.f32.mrf.mxu0
      %v663 = vadd.f32 %v634, %v662
      %v664 = vpop.f32.mrf.mxu0
      %v665 = vadd.f32 %v636, %v664
      %666 = vmatmul.bf16.gmra.mxu0 %v556
      %v667 = vpop.f32.mrf.mxu0
      %v668 = vadd.f32 %v639, %v667
      %v669 = vpop.f32.mrf.mxu0
      %v670 = vadd.f32 %v641, %v669
      %671 = vmatmul.bf16.gmra.mxu0 %v559
      %v672 = vpop.f32.mrf.mxu0
      %v673 = vadd.f32 %v644, %v672
      %v674 = vpop.f32.mrf.mxu0
      %v675 = vadd.f32 %v646, %v674
      %676 = vdwg.mxu0
      %677 = vst [vmem:[%s245] sm:$0xff] %v658
      %678 = vst [vmem:[%s245 + $0x8] sm:$0xff] %v660
      %679 = vst [vmem:[%s245 + $0x10] sm:$0xff] %v663
      %680 = vst [vmem:[%s245 + $0x18] sm:$0xff] %v665
      %681 = vst [vmem:[%s245 + $0x20] sm:$0xff] %v668
      %682 = vst [vmem:[%s245 + $0x28] sm:$0xff] %v670
      %683 = vst [vmem:[%s245 + $0x30] sm:$0xff] %v673
      %684 = vst [vmem:[%s245 + $0x38] sm:$0xff] %v675
      %p685 = scmp.eq.s32.totalorder %s21, 0
      // Predicated region
      $region33: #{lr_branch_forward.17} parent=31 // pred_check
        %p686 = pneg %p685
      $region34: #{lr_branch_forward.17} parent=31 // pred_check_branch
        %688 = sbr.rel (%p686) target = $region36
      $region35: #{lr_branch_forward.17} parent=31 // pred_region
        %689 = vst [vmem:[%s250] sm:$0x3] 0.0
      $region36: #{lr_branch_forward.17} parent=31 // pred_fallthru
        _
      %v690 = vadd.f32 %v658, %v660
      %v691 = vadd.f32 %v690, %v663
      %v692 = vadd.f32 %v691, %v665
      %v693 = vadd.f32 %v692, %v668
      %v694 = vadd.f32 %v693, %v670
      %v695 = vadd.f32 %v694, %v673
      %v696 = vadd.f32 %v695, %v675
      %v697 = vrot.slane %v696, 4
      %v698 = vadd.f32 %v696, %v697
      %v699 = vrot.slane %v698, 2
      %v700 = vadd.f32 %v698, %v699
      %v701 = vrot.slane %v700, 1
      %v702 = vadd.f32 %v700, %v701
      %v703 = vmul.f32 %v658, %v658
      %v704 = vmul.f32 %v660, %v660
      %v705 = vmul.f32 %v663, %v663
      %v706 = vmul.f32 %v665, %v665
      %v707 = vmul.f32 %v668, %v668
      %v708 = vmul.f32 %v670, %v670
      %v709 = vmul.f32 %v673, %v673
      %v710 = vmul.f32 %v675, %v675
      %v711 = vadd.f32 %v703, %v704
      %v712 = vadd.f32 %v711, %v705
      %v713 = vadd.f32 %v712, %v706
      %v714 = vadd.f32 %v713, %v707
      %v715 = vadd.f32 %v714, %v708
      %v716 = vadd.f32 %v715, %v709
      %v717 = vadd.f32 %v716, %v710
      %v718 = vrot.slane %v717, 4
      %v719 = vadd.f32 %v717, %v718
      %v720 = vrot.slane %v719, 2
      %v721 = vadd.f32 %v719, %v720
      %v722 = vrot.slane %v721, 1
      %v723 = vadd.f32 %v721, %v722
      %vm724 = vcmask 1040384
      %v725 = vsel %vm724, %v702, %v723
      %v726 = vld [vmem:[%s250] sm:$0x3]
      %v727 = vadd.f32 %v726, %v725
      %728 = vst [vmem:[%s250] sm:$0x3] %v727
      %s729 = smul.u32 8, %s21
      %p730 = scmp.lt.s32.totalorder %s20, 1
      %s731 = scalar_select %p730, %s20, 1
      %p732 = scmp.lt.s32.totalorder %s729, 7
      %s733 = scalar_select %p732, %s729, 7
      %s734 = smul.addr %s731, 8
      %s735 = sadd.s32 %s733, %s734
      %s736 = smul.addr %s735, 8
      %s737 = scalar_lea.vmem %s3, %s736
      %p738 = scmp.lt.s32.totalorder %s20, 1
      %s739 = scalar_select %p738, %s20, 1
      %s740 = smul.addr %s739, 2
      %s741 = scalar_lea.vmem %s4, %s740
      // Predicated region
      $region37: #{lr_branch_forward.17} parent=31 // pred_check
        %p742 = pneg %p118
      $region38: #{lr_branch_forward.17} parent=31 // pred_check_branch
        %744 = sbr.rel (%p742) target = $region40
      $region39: #{lr_branch_forward.17} parent=31 // pred_region
        %s745 = smul.u32 8, %s21
      $region40: #{lr_branch_forward.17} parent=31 // pred_fallthru
        _
      // Predicated region
      $region41: #{lr_branch_forward.17} parent=31 // pred_check
        %p746 = pneg %p144
      $region42: #{lr_branch_forward.17} parent=31 // pred_check_branch
        %748 = sbr.rel (%p746) target = $region44
      $region43: #{lr_branch_forward.17} parent=31 // pred_region
        _
      $region44: #{lr_branch_forward.17} parent=31 // pred_fallthru
        _
    $region32: #{lr_branch_forward.17} parent=5 // pred_fallthru
      _
    %p749 = scmp.le.s32.totalorder 2, %s11
    // Predicated region
    $region45: #{lr_branch_forward.17} parent=5 // pred_check
      %p750 = pneg %p749
    $region46: #{lr_branch_forward.17} parent=5 // pred_check_branch
      %752 = sbr.rel (%p750) target = $region48
    $region47: #{lr_branch_forward.17} parent=5 // pred_region
      %s753 = ssub.s32 %s11, 2
      // Predicated region
      $region49: #{lr_branch_forward.17} parent=47 // pred_check
        %p754 = pneg %p124
      $region50: #{lr_branch_forward.17} parent=47 // pred_check_branch
        %756 = sbr.rel (%p754) target = $region52
      $region51: #{lr_branch_forward.17} parent=47 // pred_region
        %s757 = smul.u32 8, %s23
        %p758 = scmp.lt.s32.totalorder %s22, 1
        %s759 = scalar_select %p758, %s22, 1
        %p760 = scmp.lt.s32.totalorder %s757, 7
        %s761 = scalar_select %p760, %s757, 7
        %s762 = smul.addr %s759, 8
        %s763 = sadd.s32 %s761, %s762
        %s764 = smul.addr %s763, 8
        %s765 = scalar_lea.vmem %s3, %s764
      $region52: #{lr_branch_forward.17} parent=47 // pred_fallthru
        _
      // Predicated region
      $region53: #{lr_branch_forward.17} parent=47 // pred_check
        %p766 = pneg %p150
      $region54: #{lr_branch_forward.17} parent=47 // pred_check_branch
        %768 = sbr.rel (%p766) target = $region56
      $region55: #{lr_branch_forward.17} parent=47 // pred_region
        %p769 = scmp.lt.s32.totalorder %s22, 1
        %s770 = scalar_select %p769, %s22, 1
        %s771 = smul.addr %s770, 2
        %s772 = scalar_lea.vmem %s4, %s771
      $region56: #{lr_branch_forward.17} parent=47 // pred_fallthru
        _
    $region48: #{lr_branch_forward.17} parent=5 // pred_fallthru
      _
  $region6: #{lr_branch_forward.17} parent=0 // loop_footer
    %s15 = sadd.s32 1, %s11
  $region7: #{lr_branch_forward.17} parent=0 // loop_footer_branch
    %10 = sbr.rel target = $region3
  $region8: #{lr_branch_forward.17} parent=0 // loop_exit
    _

// kernel: lr_branch_forward.19
$region0: #{lr_branch_forward.19}
  #allocation0 [shape = 'u32[]', space=smem, size = 0x4, offset = 0x4, fixed_abs, tag = 'smem constant byte address 0x4 - core index']
  #allocation1 [shape = 'u32[72,128]{1,0:T(1,128)}', space=vmem, size = 0x9000, scoped, tag = 'internal scratch']
  %s0 = inlined_call_operand.vmem [shape: bf16[2,16,144], index: 0, kind: input, shape index: {}]
  %s1 = inlined_call_operand.vmem [shape: bf16[144,128], index: 1, kind: input, shape index: {}]
  %s2 = inlined_call_operand.vmem [shape: f32[1,128], index: 2, kind: input, shape index: {}]
  %s3 = inlined_call_operand.vmem [shape: f32[2,16,128], index: 3, kind: output, shape index: {}]
  %s4 = sld [smem:[#allocation0]]
  $region45: #{lr_branch_forward.19} parent=0
    _
  %s6 = ssub.s32 1, %s4
  %s7 = scalar_select 0, %s6, %s4
  loop: start=0, step=1, limit=4
  $region2: #{lr_branch_forward.19} parent=0 // loop_pre_header
    _
  $region3: #{lr_branch_forward.19} parent=0 // loop_header
    %s9 = sphi 0, %s13
    %p10 = scmp.ge.s32.totalorder %s9, 4
    %s16 = sphi 0, %s28
    %s17 = sphi 0, %s24
    %s18 = sphi 0, %s16
    %s19 = sphi 0, %s17
    %s20 = sphi 0, %s18
    %s21 = sphi 0, %s19
    %s33 = sphi 0, %s35
    %s36 = sphi 0, %s33
    %s37 = sphi 0, %s36
    %s53 = sphi 0, %s37
    %s57 = sphi 0, %s57
    %s59 = sphi 0, %s57
    %s60 = sphi 0, %s59
    %s74 = sphi 0, %s60
    %s78 = sphi 0, %s78
    %s80 = sphi 0, %s78
    %s81 = sphi 0, %s80
    %s95 = sphi 0, %s81
    %s103 = sphi 0, %s105
    %s106 = sphi 0, %s103
    %s107 = sphi 0, %s106
    %s123 = sphi 0, %s107
  $region4: #{lr_branch_forward.19} parent=0 // loop_header_branch
    %12 = sbr.rel (%p10) target = $region8
  $region5: #{lr_branch_forward.19} parent=0 // loop_body
    %s14 = ssub.s32 %s9, 1
    %s15 = ssub.s32 %s9, 2
    %s22 = sadd.s32 1, %s17
    %p23 = scmp.ge.s32.totalorder %s22, 1
    %s24 = scalar_select %p23, 0, %s22
    %s25 = sadd.s32 1, %s16
    %s26 = scalar_select %p23, %s25, %s16
    %p27 = scmp.ge.s32.totalorder %s26, 2
    %s28 = scalar_select %p27, 0, %s26
    %s29 = ssub.s32 %s16, %s28
    %s30 = ssub.s32 %s17, %s24
    %s31 = sor.u32 %s29, %s30
    %p32 = scmp.eq.s32.totalorder %s31, 0
    %s34 = sadd.s32 %s33, 1
    %s35 = scalar_select %p32, %s33, %s34
    %p38 = pneg %p32
    %p39 = scmp.eq.s32.totalorder %s9, 1
    %p40 = por %p38, %p39
    %p41 = scmp.ne.s32.totalorder %s33, %s36
    %p42 = scmp.eq.s32.totalorder %s9, 0
    %p43 = por %p41, %p42
    %p44 = scmp.ne.s32.totalorder %s33, %s36
    %p45 = scmp.eq.s32.totalorder %s14, 1
    %p46 = por %p44, %p45
    %p47 = scmp.ne.s32.totalorder %s36, %s37
    %p48 = scmp.eq.s32.totalorder %s14, 0
    %p49 = por %p47, %p48
    %p50 = scmp.ne.s32.totalorder %s36, %s37
    %p51 = scmp.eq.s32.totalorder %s15, 1
    %p52 = por %p50, %p51
    %p54 = scmp.ne.s32.totalorder %s37, %s53
    %p55 = scmp.eq.s32.totalorder %s15, 0
    %p56 = por %p54, %p55
    %s58 = sadd.s32 %s57, 1
    %p61 = scmp.eq.s32.totalorder %s9, 1
    %p62 = scmp.ne.s32.totalorder %s57, %s59
    %p63 = scmp.eq.s32.totalorder %s9, 0
    %p64 = por %p62, %p63
    %p65 = scmp.ne.s32.totalorder %s57, %s59
    %p66 = scmp.eq.s32.totalorder %s14, 1
    %p67 = por %p65, %p66
    %p68 = scmp.ne.s32.totalorder %s59, %s60
    %p69 = scmp.eq.s32.totalorder %s14, 0
    %p70 = por %p68, %p69
    %p71 = scmp.ne.s32.totalorder %s59, %s60
    %p72 = scmp.eq.s32.totalorder %s15, 1
    %p73 = por %p71, %p72
    %p75 = scmp.ne.s32.totalorder %s60, %s74
    %p76 = scmp.eq.s32.totalorder %s15, 0
    %p77 = por %p75, %p76
    %s79 = sadd.s32 %s78, 1
    %p82 = scmp.eq.s32.totalorder %s9, 1
    %p83 = scmp.ne.s32.totalorder %s78, %s80
    %p84 = scmp.eq.s32.totalorder %s9, 0
    %p85 = por %p83, %p84
    %p86 = scmp.ne.s32.totalorder %s78, %s80
    %p87 = scmp.eq.s32.totalorder %s14, 1
    %p88 = por %p86, %p87
    %p89 = scmp.ne.s32.totalorder %s80, %s81
    %p90 = scmp.eq.s32.totalorder %s14, 0
    %p91 = por %p89, %p90
    %p92 = scmp.ne.s32.totalorder %s80, %s81
    %p93 = scmp.eq.s32.totalorder %s15, 1
    %p94 = por %p92, %p93
    %p96 = scmp.ne.s32.totalorder %s81, %s95
    %p97 = scmp.eq.s32.totalorder %s15, 0
    %p98 = por %p96, %p97
    %s99 = ssub.s32 %s16, %s28
    %s100 = ssub.s32 %s17, %s24
    %s101 = sor.u32 %s99, %s100
    %p102 = scmp.eq.s32.totalorder %s101, 0
    %s104 = sadd.s32 %s103, 1
    %s105 = scalar_select %p102, %s103, %s104
    %p108 = pneg %p102
    %p109 = scmp.eq.s32.totalorder %s9, 1
    %p110 = por %p108, %p109
    %p111 = scmp.ne.s32.totalorder %s103, %s106
    %p112 = scmp.eq.s32.totalorder %s9, 0
    %p113 = por %p111, %p112
    %p114 = scmp.ne.s32.totalorder %s103, %s106
    %p115 = scmp.eq.s32.totalorder %s14, 1
    %p116 = por %p114, %p115
    %p117 = scmp.ne.s32.totalorder %s106, %s107
    %p118 = scmp.eq.s32.totalorder %s14, 0
    %p119 = por %p117, %p118
    %p120 = scmp.ne.s32.totalorder %s106, %s107
    %p121 = scmp.eq.s32.totalorder %s15, 1
    %p122 = por %p120, %p121
    %p124 = scmp.ne.s32.totalorder %s107, %s123
    %p125 = scmp.eq.s32.totalorder %s15, 0
    %p126 = por %p124, %p125
    %p127 = scmp.le.s32.totalorder 1, %s9
    %p128 = scmp.lt.s32.totalorder %s9, 3
    %p129 = pnand %p127, %p128
    %p130 = pneg %p129
    // Predicated region
    $region9: #{lr_branch_forward.19} parent=5 // pred_check
      _
    $region10: #{lr_branch_forward.19} parent=5 // pred_check_branch
      %132 = sbr.rel (%p129) target = $region12
    $region11: #{lr_branch_forward.19} parent=5 // pred_region
      %s133 = ssub.s32 %s9, 1
      // Predicated region
      $region13: #{lr_branch_forward.19} parent=11 // pred_check
        %p134 = pneg %p70
      $region14: #{lr_branch_forward.19} parent=11 // pred_check_branch
        %136 = sbr.rel (%p134) target = $region16
      $region15: #{lr_branch_forward.19} parent=11 // pred_region
        _
      $region16: #{lr_branch_forward.19} parent=11 // pred_fallthru
        _
      // Predicated region
      $region17: #{lr_branch_forward.19} parent=11 // pred_check
        %p137 = pneg %p91
      $region18: #{lr_branch_forward.19} parent=11 // pred_check_branch
        %139 = sbr.rel (%p137) target = $region20
      $region19: #{lr_branch_forward.19} parent=11 // pred_region
        _
      $region20: #{lr_branch_forward.19} parent=11 // pred_fallthru
        _
    $region12: #{lr_branch_forward.19} parent=5 // pred_fallthru
      _
    %p140 = scmp.lt.s32.totalorder %s9, 2
    // Predicated region
    $region21: #{lr_branch_forward.19} parent=5 // pred_check
      %p141 = pneg %p140
    $region22: #{lr_branch_forward.19} parent=5 // pred_check_branch
      %143 = sbr.rel (%p141) target = $region24
    $region23: #{lr_branch_forward.19} parent=5 // pred_region
      // Predicated region
      $region25: #{lr_branch_forward.19} parent=23 // pred_check
        %p144 = pneg %p43
      $region26: #{lr_branch_forward.19} parent=23 // pred_check_branch
        %146 = sbr.rel (%p144) target = $region28
      $region27: #{lr_branch_forward.19} parent=23 // pred_region
        %s147 = smul.u32 2, %s17
        %p148 = scmp.lt.s32.totalorder %s16, 1
        %s149 = scalar_select %p148, %s16, 1
        %p150 = scmp.lt.s32.totalorder %s147, 1
        %s151 = scalar_select %p150, %s147, 1
        %s152 = smul.addr %s151, 2
        %s153 = smul.addr %s149, 4
        %s154 = sadd.s32 %s152, %s153
        %s155 = smul.addr %s154, 4
        %s156 = scalar_lea.vmem %s0, %s155
        %s157 = smul.u32 2, %s17
      $region28: #{lr_branch_forward.19} parent=23 // pred_fallthru
        _
    $region24: #{lr_branch_forward.19} parent=5 // pred_fallthru
      _
    %p158 = scmp.le.s32.totalorder 1, %s9
    %p159 = scmp.lt.s32.totalorder %s9, 3
    %p160 = pnand %p158, %p159
    %p161 = pneg %p160
    // Predicated region
    $region29: #{lr_branch_forward.19} parent=5 // pred_check
      _
    $region30: #{lr_branch_forward.19} parent=5 // pred_check_branch
      %163 = sbr.rel (%p160) target = $region32
    $region31: #{lr_branch_forward.19} parent=5 // pred_region
      %s164 = ssub.s32 %s9, 1
      %s165 = smul.u32 2, %s19
      %p166 = scmp.lt.s32.totalorder %s18, 1
      %s167 = scalar_select %p166, %s18, 1
      %p168 = scmp.lt.s32.totalorder %s165, 1
      %s169 = scalar_select %p168, %s165, 1
      %s170 = smul.addr %s169, 2
      %s171 = smul.addr %s167, 4
      %s172 = sadd.s32 %s170, %s171
      %s173 = smul.addr %s172, 4
      %s174 = scalar_lea.vmem %s0, %s173
      %p175 = pneg %p49
      %p176 = pneg %p46
      %p177 = pneg %p70
      %p178 = pneg %p67
      %p179 = pneg %p91
      %p180 = pneg %p88
      %p181 = pneg %p119
      %p182 = pneg %p116
      %s183 = smul.u32 2, %s19
      %p184 = scmp.lt.s32.totalorder %s18, 1
      %s185 = scalar_select %p184, %s18, 1
      %p186 = scmp.lt.s32.totalorder %s183, 1
      %s187 = scalar_select %p186, %s183, 1
      %s188 = smul.addr %s185, 2
      %s189 = sadd.s32 %s187, %s188
      %s190 = smul.addr %s189, 8
      %s191 = scalar_lea.vmem %s3, %s190
      %s192 = smul.u32 2, %s19
      %p193 = scmp.lt.s32.totalorder %s18, 1
      %s194 = scalar_select %p193, %s18, 1
      %p195 = scmp.lt.s32.totalorder %s192, 1
      %s196 = scalar_select %p195, %s192, 1
      %s197 = smul.addr %s196, 2
      %s198 = smul.addr %s194, 4
      %s199 = sadd.s32 %s197, %s198
      %s200 = smul.addr %s199, 4
      %s201 = scalar_lea.vmem %s0, %s200
      %s202 = smul.u32 2, %s19
      %s203 = smul.u32 2, %s19
      %p204 = scmp.lt.s32.totalorder %s18, 1
      %s205 = scalar_select %p204, %s18, 1
      %p206 = scmp.lt.s32.totalorder %s203, 1
      %s207 = scalar_select %p206, %s203, 1
      %s208 = smul.addr %s205, 2
      %s209 = sadd.s32 %s207, %s208
      %s210 = smul.addr %s209, 8
      %s211 = scalar_lea.vmem %s3, %s210
      %s212 = smul.u32 2, %s19
      %v214 = vld [vmem:[%s201] sm:$0xff]
      %v215 = vld [vmem:[%s201 + $0x8] sm:$0xff]
      %v216 = vld [vmem:[%s1] sm:$0xf]
      %v217 = vld [vmem:[%s1 + $0x4] sm:$0xf]
      %v218 = vld [vmem:[%s1 + $0x8] sm:$0xf]
      %v219 = vld [vmem:[%s1 + $0xc] sm:$0xf]
      %v220 = vld [vmem:[%s1 + $0x10] sm:$0xf]
      %v221 = vld [vmem:[%s1 + $0x14] sm:$0xf]
      %v222 = vld [vmem:[%s1 + $0x18] sm:$0xf]
      %v223 = vld [vmem:[%s1 + $0x1c] sm:$0xf]
      %v224 = vld [vmem:[%s1 + $0x20] sm:$0xf]
      %v225 = vld [vmem:[%s1 + $0x24] sm:$0xf]
      %v226 = vld [vmem:[%s1 + $0x28] sm:$0xf]
      %v227 = vld [vmem:[%s1 + $0x2c] sm:$0xf]
      %v228 = vld [vmem:[%s1 + $0x30] sm:$0xf]
      %v229 = vld [vmem:[%s1 + $0x34] sm:$0xf]
      %v230 = vld [vmem:[%s1 + $0x38] sm:$0xf]
      %v231 = vld [vmem:[%s1 + $0x3c] sm:$0xf]
      %v232 = vld [vmem:[%s1 + $0x40] sm:$0xf]
      %v233 = vld [vmem:[%s1 + $0x44] sm:$0xf]
      %v234 = vld [vmem:[%s2] sm:$0x1]
      %v236 = vperm.slane %v234, 0
      %v240 = vunpack.c.l.b16 %v214
      %v241 = vunpack.c.h.b16 %v214
      %v242 = vunpack.c.l.b16 %v215
      %v243 = vunpack.c.h.b16 %v215
      %v244 = vpack.c.b16 %v242, %v240
      %v245 = vpack.c.b16 %v243, %v241
      %v265 = vunpack.c.l.b16 %v216
      %v266 = vunpack.c.l.b16 %v217
      %v267 = vunpack.c.l.b16 %v218
      %v268 = vunpack.c.l.b16 %v219
      %v269 = vunpack.c.l.b16 %v220
      %v270 = vunpack.c.l.b16 %v221
      %v271 = vunpack.c.l.b16 %v222
      %v272 = vunpack.c.l.b16 %v223
      %v273 = vunpack.c.l.b16 %v224
      %v274 = vunpack.c.l.b16 %v225
      %v275 = vunpack.c.l.b16 %v226
      %v276 = vunpack.c.l.b16 %v227
      %v277 = vunpack.c.l.b16 %v228
      %v278 = vunpack.c.l.b16 %v229
      %v279 = vunpack.c.l.b16 %v230
      %v280 = vunpack.c.l.b16 %v231
      %v281 = vunpack.c.l.b16 %v232
      %v282 = vunpack.c.l.b16 %v233
      %v283 = vpack.c.b16 %v266, %v265
      %v284 = vpack.c.b16 %v268, %v267
      %v285 = vpack.c.b16 %v270, %v269
      %v286 = vpack.c.b16 %v272, %v271
      %v287 = vpack.c.b16 %v274, %v273
      %v288 = vpack.c.b16 %v276, %v275
      %v289 = vpack.c.b16 %v278, %v277
      %v290 = vpack.c.b16 %v280, %v279
      %v291 = vpack.c.b16 %v282, %v281
      %vm301 = vcmask 130048
      %v303 = vsel %vm301, %v245, 0
      %305 = vmatpush.bf16.msra.mxu0 %v290
      %306 = vmatpush.bf16.msra.mxu0 %v289
      %307 = vmatpush.bf16.msra.mxu0 %v288
      %308 = vmatpush.bf16.msra.mxu0 %v287
      %309 = vmatpush.bf16.msra.mxu0 %v286
      %310 = vmatpush.bf16.msra.mxu0 %v285
      %311 = vmatpush.bf16.msra.mxu0 %v284
      %312 = vmatpush.bf16.msra.mxu0 %v283
      %313 = vmatmul.bf16.gmra.mxu0 %v244
      %v314 = vpop.f32.mrf.mxu0
      %v315 = vadd.f32 %v236, %v314
      %v316 = vpop.f32.mrf.mxu0
      %v317 = vadd.f32 %v236, %v316
      %318 = vdwg.mxu0
      %319 = vmatpush.bf16.msra.mxu0 0
      %320 = vmatpush.bf16.msra.mxu0 0
      %321 = vmatpush.bf16.msra.mxu0 0
      %322 = vmatpush.bf16.msra.mxu0 0
      %323 = vmatpush.bf16.msra.mxu0 0
      %324 = vmatpush.bf16.msra.mxu0 0
      %325 = vmatpush.bf16.msra.mxu0 0
      %326 = vmatpush.bf16.msra.mxu0 %v291
      %327 = vmatmul.bf16.gmra.mxu0 %v303
      %v328 = vpop.f32.mrf.mxu0
      %v329 = vadd.f32 %v315, %v328
      %v330 = vpop.f32.mrf.mxu0
      %v331 = vadd.f32 %v317, %v330
      %332 = vdwg.mxu0
      %v333 = vxor.u32 %v329, 2147483648
      %v334 = vxor.u32 %v331, 2147483648
      %v335 = vmul.f32 %v333, 1.442695
      %v336 = vpow.pop %v335
      %v337 = vmul.f32 %v334, 1.442695
      %v338 = vpow.pop %v337
      %v339 = vadd.f32 %v336, 1.0
      %v340 = vadd.f32 %v338, 1.0
      %v341 = vrcp.pop %v339
      %v342 = vmul.f32 %v339, %v341
      %v343 = vsub.f32 1.0, %v342
      %v344 = vmul.f32 %v341, %v343
      %v345 = vadd.f32 %v341, %v344
      %vm346 = vweird.f32 %v339
      %vm347 = vweird.f32 %v341
      %vm348 = vmor %vm346, %vm347
      %v349 = vsel %vm348, %v341, %v345
      %v350 = vand.u32 2147483647, %v339
      %vm351 = vcmp.eq.f32.partialorder %v350, 8.507059e+37
      %v352 = vand.u32 %v339, 2147483648
      %v353 = vor.u32 1.1754944e-38, %v352
      %v354 = vsel %vm351, %v353, %v349
      %v355 = vmul.f32 1.0, %v354
      %v356 = vrcp.pop %v340
      %v357 = vmul.f32 %v340, %v356
      %v358 = vsub.f32 1.0, %v357
      %v359 = vmul.f32 %v356, %v358
      %v360 = vadd.f32 %v356, %v359
      %vm361 = vweird.f32 %v340
      %vm362 = vweird.f32 %v356
      %vm363 = vmor %vm361, %vm362
      %v364 = vsel %vm363, %v356, %v360
      %v365 = vand.u32 2147483647, %v340
      %vm366 = vcmp.eq.f32.partialorder %v365, 8.507059e+37
      %v367 = vand.u32 %v340, 2147483648
      %v368 = vor.u32 1.1754944e-38, %v367
      %v369 = vsel %vm366, %v368, %v364
      %v370 = vmul.f32 1.0, %v369
      %371 = vst [vmem:[%s211] sm:$0xff] %v355
      %372 = vst [vmem:[%s211 + $0x8] sm:$0xff] %v370
      %s373 = smul.u32 2, %s19
      %p374 = scmp.lt.s32.totalorder %s18, 1
      %s375 = scalar_select %p374, %s18, 1
      %p376 = scmp.lt.s32.totalorder %s373, 1
      %s377 = scalar_select %p376, %s373, 1
      %s378 = smul.addr %s375, 2
      %s379 = sadd.s32 %s377, %s378
      %s380 = smul.addr %s379, 8
      %s381 = scalar_lea.vmem %s3, %s380
      // Predicated region
      $region33: #{lr_branch_forward.19} parent=31 // pred_check
        %p382 = pneg %p116
      $region34: #{lr_branch_forward.19} parent=31 // pred_check_branch
        %384 = sbr.rel (%p382) target = $region36
      $region35: #{lr_branch_forward.19} parent=31 // pred_region
        %s385 = smul.u32 2, %s19
      $region36: #{lr_branch_forward.19} parent=31 // pred_fallthru
        _
    $region32: #{lr_branch_forward.19} parent=5 // pred_fallthru
      _
    %p386 = scmp.le.s32.totalorder 2, %s9
    // Predicated region
    $region37: #{lr_branch_forward.19} parent=5 // pred_check
      %p387 = pneg %p386
    $region38: #{lr_branch_forward.19} parent=5 // pred_check_branch
      %389 = sbr.rel (%p387) target = $region40
    $region39: #{lr_branch_forward.19} parent=5 // pred_region
      %s390 = ssub.s32 %s9, 2
      // Predicated region
      $region41: #{lr_branch_forward.19} parent=39 // pred_check
        %p391 = pneg %p122
      $region42: #{lr_branch_forward.19} parent=39 // pred_check_branch
        %393 = sbr.rel (%p391) target = $region44
      $region43: #{lr_branch_forward.19} parent=39 // pred_region
        %s394 = smul.u32 2, %s21
        %p395 = scmp.lt.s32.totalorder %s20, 1
        %s396 = scalar_select %p395, %s20, 1
        %p397 = scmp.lt.s32.totalorder %s394, 1
        %s398 = scalar_select %p397, %s394, 1
        %s399 = smul.addr %s396, 2
        %s400 = sadd.s32 %s398, %s399
        %s401 = smul.addr %s400, 8
        %s402 = scalar_lea.vmem %s3, %s401
      $region44: #{lr_branch_forward.19} parent=39 // pred_fallthru
        _
    $region40: #{lr_branch_forward.19} parent=5 // pred_fallthru
      _
  $region6: #{lr_branch_forward.19} parent=0 // loop_footer
    %s13 = sadd.s32 1, %s9
  $region7: #{lr_branch_forward.19} parent=0 // loop_footer_branch
    %8 = sbr.rel target = $region3
  $region8: #{lr_branch_forward.19} parent=0 // loop_exit
    _

</llo_original>
